<compile_context>
chip_gen: v7x
topology: tpu7x:2x2x1
jax: 0.10.0
libtpu: 0.0.40
codegen_flags: <defaults>
</compile_context>

<pallas_src>
import math
from functools import partial

import numpy as np
import jax
import jax.numpy as jnp
from jax import lax
from jax.experimental import pallas as pl
from jax.experimental.pallas import tpu as pltpu

K = 4          # kernel_size
STRIDE = 2
PAD = 1
EPS = 1e-5     # InstanceNorm3d default eps
P = 8          # output parities (2*2*2)
NSHIFT = 27    # unique (sd, sh, sw) input shifts, each in {0,1,2}
NSLOT = 28     # shift slots padded by one zero slot -> contraction 28*Cin (nicer tiling)


def _make_kernel(Cin, CT, D, H, W):
    """Kernel for one (sample, cout-tile) grid step."""
    M = D * H * W
    HW = H * W
    shifts = [(sd, sh, sw) for sd in range(3) for sh in range(3) for sw in range(3)]

    def kernel(x_ref, mask_ref, w_ref, b_ref, o_ref, slabs_ref, acc_ref):
        # x_ref    : (1, Cin, Mext)       bf16  flattened sample, zero-extended by HW+W+1 each side
        # mask_ref : (NSHIFT, M)          bf16  per-shift boundary masks (resident)
        # w_ref    : (1, P*CT, NSLOT*Cin) bf16  fused (parity, cout) x (shift, cin) weights
        # b_ref    : (1, P*CT, 1)         f32   bias per (parity, cout) row
        # o_ref    : (1, 1, P, CT, M)     bf16  normalized output for this (sample, cout tile)
        # slabs_ref: (NSLOT*Cin, M)       bf16  in-kernel im2col patch matrix (scratch)
        # acc_ref  : (P*CT, M)            f32   conv+bias accumulator (scratch)

        # In-kernel im2col: the window of the zero-extended flat input starting at
        # sd*H*W + sh*W + sw is exactly the (sd,sh,sw)-shifted volume; positions where the shift
        # crosses a D/H/W boundary are zeroed by the precomputed mask.
        for s_idx, (sd, sh, sw) in enumerate(shifts):
            start = sd * HW + sh * W + sw                       # static
            window = x_ref[0, :, pl.ds(start, M)]               # (Cin, M) bf16
            slabs_ref[pl.ds(s_idx * Cin, Cin), :] = (
                window * mask_ref[pl.ds(s_idx, 1), :])
        # Zero the padded shift slot (its weight columns are zero, but uninitialized VMEM may
        # hold NaN payloads which would poison 0*NaN in the f32 accumulation).
        slabs_ref[pl.ds(NSHIFT * Cin, (NSLOT - NSHIFT) * Cin), :] = jnp.zeros(
            ((NSLOT - NSHIFT) * Cin, M), dtype=slabs_ref.dtype)

        # One fused MXU matmul for all 8 parities of this cout tile, f32 accumulation.
        acc_ref[...] = jnp.dot(w_ref[0], slabs_ref[...],
                               preferred_element_type=jnp.float32) + b_ref[0]

        # Exact two-pass InstanceNorm over the resident accumulator (per output channel,
        # over all 8 parities x M spatial positions).
        a3 = acc_ref[...].reshape(P, CT, M)                     # CT % 8 == 0 -> free regroup
        inv_n = 1.0 / float(P * M)
        mean = jnp.sum(jnp.sum(a3, axis=2, keepdims=True), axis=0, keepdims=True) * inv_n
        cen = a3 - mean
        var = jnp.sum(jnp.sum(cen * cen, axis=2, keepdims=True), axis=0, keepdims=True) * inv_n
        o_ref[0, 0] = (cen * lax.rsqrt(var + EPS)).astype(o_ref.dtype)

    return kernel


@partial(jax.jit, static_argnames=("cout_tile",))
def _upconv3d_forward(x_ncdhw, weight, bias, cout_tile=None):
    """ConvTranspose3d(k=4, s=2, p=1, bias) + InstanceNorm3d -> (N, Cout, 2D, 2H, 2W) f32."""
    N, Cin, D, H, W = x_ncdhw.shape
    Cout = weight.shape[1]
    M = D * H * W
    HW = H * W

    Cp = ((Cout + 7) // 8) * 8                       # pad channels to a multiple of 8 sublanes
    CT = Cp if cout_tile is None else cout_tile      # channel tile (v7x VMEM / parallelism knob)
    assert CT % 8 == 0 and Cp % CT == 0, (Cp, CT)
    n_ct = Cp // CT
    TCdim = NSLOT * Cin                              # matmul contraction

    # --- input: flatten, zero-extend by HW+W+1 on each side, bf16 (single cheap HBM pass) ---
    off = HW + W + 1
    Mext = ((M + 2 * off + 127) // 128) * 128
    xflat = x_ncdhw.astype(jnp.bfloat16).reshape(N, Cin, M)
    xext = jnp.pad(xflat, ((0, 0), (0, 0), (off, Mext - M - off)))

    # --- per-shift boundary masks (trace-time numpy constants, 27*M bf16) ---
    idx = np.arange(M)
    d_i, h_i, w_i = idx // HW, (idx // W) % H, idx % W

    def axis_mask(s, i, n):
        if s == 0:
            return i >= 1
        if s == 2:
            return i <= n - 2
        return np.ones(M, dtype=bool)

    masks = [axis_mask(sd, d_i, D) & axis_mask(sh, h_i, H) & axis_mask(sw, w_i, W)
             for sd in range(3) for sh in range(3) for sw in range(3)]
    mask_arr = jnp.asarray(np.stack(masks).astype(np.float32), dtype=jnp.bfloat16)   # (27, M)

    # --- fused (parity, cout) x (shift, cin) weight matrix (tiny, trace-time) ---
    # out[n,c,2d+pd,2h+ph,2w+pw] = b[c] + sum_{s,cin valid} x[n,cin,d+sd-1,h+sh-1,w+sw-1]
    #                                       * Wt[cin,c, 3+pd-2sd, 3+ph-2sh, 3+pw-2sw]
    wf = weight.astype(jnp.float32)                  # (Cin, Cout, K, K, K)
    pblocks = []
    for pd in range(2):
        for ph in range(2):
            for pw in range(2):
                srows = []
                for sd in range(3):
                    for sh in range(3):
                        for sw in range(3):
                            valid = ((0 <= sd - pd <= 1) and (0 <= sh - ph <= 1)
                                     and (0 <= sw - pw <= 1))
                            if valid:
                                srows.append(wf[:, :, 3 + pd - 2 * sd,
                                                3 + ph - 2 * sh,
                                                3 + pw - 2 * sw])          # (Cin, Cout)
                            else:
                                srows.append(jnp.zeros((Cin, Cout), jnp.float32))
                pblocks.append(jnp.stack(srows, axis=0))                   # (27, Cin, Cout)
    wbig = jnp.stack(pblocks, axis=0)                                      # (P, 27, Cin, Cout)
    wbig = jnp.pad(wbig, ((0, 0), (0, NSLOT - NSHIFT), (0, 0), (0, Cp - Cout)))
    wbig = jnp.transpose(wbig, (0, 3, 1, 2))                               # (P, Cp, NSLOT, Cin)
    wbig = wbig.reshape(P, n_ct, CT, TCdim)
    wbig = jnp.transpose(wbig, (1, 0, 2, 3)).reshape(n_ct, P * CT, TCdim).astype(jnp.bfloat16)

    bp = jnp.pad(bias.astype(jnp.float32), (0, Cp - Cout)).reshape(n_ct, 1, CT)
    bbig = jnp.broadcast_to(bp, (n_ct, P, CT)).reshape(n_ct, P * CT, 1)

    kernel = _make_kernel(Cin, CT, D, H, W)

    flops = 2 * N * n_ct * (P * CT) * TCdim * M
    bytes_accessed = (N * n_ct * Cin * Mext * 2 + NSHIFT * M * 2
                      + N * n_ct * (P * CT) * (TCdim * 2 + 4)
                      + N * n_ct * P * CT * M * 2)
    vmem_est = (2 * Cin * Mext * 2 + 2 * NSHIFT * M * 2 + 2 * P * CT * TCdim * 2
                + 2 * P * CT * 128 * 4 + 2 * P * CT * M * 2
                + NSLOT * Cin * M * 2 + P * CT * M * 4)
    vmem_limit = int(max(16 * 1024 * 1024, min(2 * vmem_est, 48 * 1024 * 1024)))

    out = pl.pallas_call(
        kernel,
        out_shape=jax.ShapeDtypeStruct((N, n_ct, P, CT, M), jnp.bfloat16),
        grid=(N, n_ct),
        in_specs=[
            pl.BlockSpec((1, Cin, Mext), lambda n, c: (n, 0, 0)),          # flattened sample
            pl.BlockSpec((NSHIFT, M), lambda n, c: (0, 0)),                # masks, resident
            pl.BlockSpec((1, P * CT, TCdim), lambda n, c: (c, 0, 0)),      # per-tile weights
            pl.BlockSpec((1, P * CT, 1), lambda n, c: (c, 0, 0)),          # per-tile bias
        ],
        out_specs=pl.BlockSpec((1, 1, P, CT, M), lambda n, c: (n, c, 0, 0, 0)),
        scratch_shapes=[
            pltpu.VMEM((NSLOT * Cin, M), jnp.bfloat16),                    # im2col patch matrix
            pltpu.VMEM((P * CT, M), jnp.float32),                          # conv+bias accumulator
        ],
        compiler_params=pltpu.CompilerParams(
            dimension_semantics=("parallel", "parallel"),
            vmem_limit_bytes=vmem_limit,
        ),
        cost_estimate=pl.CostEstimate(flops=int(flops), transcendentals=int(N * Cp),
                                      bytes_accessed=int(bytes_accessed)),
    )(xext, mask_arr, wbig, bbig)

    # Parity de-interleave at bf16 (half the bytes of an f32 pass), cast to f32 for the module API.
    out = out.reshape(N, n_ct, 2, 2, 2, CT, D, H, W)        # (n, ct, pd, ph, pw, c, d, h, w)
    out = jnp.transpose(out, (0, 1, 5, 6, 2, 7, 3, 8, 4))   # (n, ct, c, d, pd, h, ph, w, pw)
    out = out.reshape(N, Cp, 2 * D, 2 * H, 2 * W)[:, :Cout]
    return out.astype(jnp.float32)


def upconv3d_block(x_ncdhw, weight, bias, skip_input=None, cout_tile=None):
    """Forward of UpConv3DBlock (up_mode='upconv', use_dropout=False).

    x_ncdhw: (N, Cin, D, H, W) f32 (PyTorch NCDHW)
    weight : (Cin, Cout, K, K, K)  -- nn.ConvTranspose3d weight layout
    bias   : (Cout,)
    skip_input: optional (N, Cs, 2D, 2H, 2W)
    Returns (N, Cout[+Cs], 2D, 2H, 2W) f32 (NCDHW).
    Precision note: MXU operands and kernel output are bf16 (f32 accumulation); expect ~1e-2
    relative error vs a full-f32 PyTorch forward.
    """
    # TODO(synk): up_mode='upsample' (trilinear Upsample + Conv3d) branch not implemented.
    # TODO(synk): nn.Dropout(0.5) path (use_dropout=True) not implemented; module default is off.
    out = _upconv3d_forward(x_ncdhw, weight, bias, cout_tile=cout_tile)
    if skip_input is not None:
        out = jnp.concatenate([out, skip_input.astype(out.dtype)], axis=1)
    return out


def _ref_upconv3d_block(x, Wt, b, skip=None, eps=EPS):
    """Numpy reference implementing PyTorch ConvTranspose3d + InstanceNorm3d semantics."""
    x = np.asarray(x, np.float64)
    Wt = np.asarray(Wt, np.float64)
    b = np.asarray(b, np.float64)
    N, Cin, D, H, Wd = x.shape
    Cout = Wt.shape[1]
    Do, Ho, Wo = 2 * D, 2 * H, 2 * Wd
    outp = np.zeros((N, Cout, Do + 2, Ho + 2, Wo + 2), np.float64)
    for kd in range(K):
        for kh in range(K):
            for kw in range(K):
                contrib = np.einsum('ncdhw,co->nodhw', x, Wt[:, :, kd, kh, kw])
                outp[:, :, kd:kd + Do:2, kh:kh + Ho:2, kw:kw + Wo:2] += contrib
    out = outp[:, :, 1:1 + Do, 1:1 + Ho, 1:1 + Wo] + b[None, :, None, None, None]
    mean = out.mean(axis=(2, 3, 4), keepdims=True)
    var = out.var(axis=(2, 3, 4), keepdims=True)
    out = (out - mean) / np.sqrt(var + eps)
    if skip is not None:
        out = np.concatenate([out, np.asarray(skip, np.float64)], axis=1)
    return out


if __name__ == "__main__":
    key = jax.random.PRNGKey(0)
    N, Cin, Cout = 2, 4, 4
    D = H = W = 8  # output spatial = 16

    k1, k2, k3, k4 = jax.random.split(key, 4)
    x = jax.random.normal(k1, (N, Cin, D, H, W), jnp.float32)
    fan_in = Cin * K * K * K
    scale = 1.0 / math.sqrt(fan_in)
    weight = jax.random.uniform(k2, (Cin, Cout, K, K, K), jnp.float32, -scale, scale)
    bias = jax.random.uniform(k3, (Cout,), jnp.float32, -scale, scale)
    skip = jax.random.normal(k4, (N, Cout, 2 * D, 2 * H, 2 * W), jnp.float32)

    out = jax.block_until_ready(upconv3d_block(x, weight, bias, skip_input=skip))
    assert out.shape == (N, 2 * Cout, 2 * D, 2 * H, 2 * W), out.shape

    ref = _ref_upconv3d_block(np.asarray(x), np.asarray(weight), np.asarray(bias),
                              np.asarray(skip))
    out64 = np.asarray(out, np.float64)
    err = np.max(np.abs(out64 - ref))
    # Tolerance reflects the documented bf16 operand / bf16 output precision choice.
    if not np.allclose(out64, ref, atol=3e-2, rtol=3e-2):
        raise AssertionError(f"kernel/reference mismatch, max abs err = {err}")
    print("KERNEL_OK")
</pallas_src>

<mosaic_0001>
module attributes {stable_mosaic.version = 11 : i64} {
  func.func @kernel(%arg0: i32, %arg1: i32, %arg2: memref<1x4x768xbf16, #tpu.memory_space<vmem>>, %arg3: memref<27x512xbf16, #tpu.memory_space<vmem>>, %arg4: memref<1x64x112xbf16, #tpu.memory_space<vmem>>, %arg5: memref<1x64x1xf32, #tpu.memory_space<vmem>>, %arg6: memref<1x1x8x8x512xbf16, #tpu.memory_space<vmem>>, %arg7: memref<112x512xbf16, #tpu.memory_space<vmem>>, %arg8: memref<64x512xf32, #tpu.memory_space<vmem>>) attributes {dimension_semantics = [#tpu.dimension_semantics<parallel>, #tpu.dimension_semantics<parallel>], iteration_bounds = array<i64: 2, 1>, scalar_prefetch = 0 : i64, scratch_operands = 2 : i64, tpu.core_type = #tpu.core_type<tc>, window_params = [{transform_indices = @transform_0, window_bounds = array<i64: 1, 4, 768>}, {pipeline_mode = #tpu.pipeline_mode<synchronous>, transform_indices = @transform_1, window_bounds = array<i64: 27, 512>}, {transform_indices = @transform_2, window_bounds = array<i64: 1, 64, 112>}, {transform_indices = @transform_3, window_bounds = array<i64: 1, 64, 1>}, {transform_indices = @transform_4, window_bounds = array<i64: 1, 1, 8, 8, 512>}]} {
    %c0 = arith.constant 0 : index
    %c0_0 = arith.constant 0 : index
    %c0_1 = arith.constant 0 : index
    %0 = vector.load %arg2[%c0, %c0_0, %c0_1] : memref<1x4x768xbf16, #tpu.memory_space<vmem>>, vector<1x4x512xbf16>
    %1 = vector.shape_cast %0 : vector<1x4x512xbf16> to vector<4x512xbf16>
    %c0_2 = arith.constant 0 : index
    %c0_3 = arith.constant 0 : index
    %2 = vector.load %arg3[%c0_2, %c0_3] : memref<27x512xbf16, #tpu.memory_space<vmem>>, vector<1x512xbf16>
    %3 = vector.broadcast %2 : vector<1x512xbf16> to vector<4x512xbf16>
    %4 = arith.mulf %1, %3 : vector<4x512xbf16>
    %c0_4 = arith.constant 0 : index
    %c0_5 = arith.constant 0 : index
    %5 = vector.load %arg7[%c0_4, %c0_5] : memref<112x512xbf16, #tpu.memory_space<vmem>>, vector<4x512xbf16>
    tpu.vector_store %arg7[%c0_4, %c0_5], %4 {strides = array<i32>} : memref<112x512xbf16, #tpu.memory_space<vmem>>, vector<4x512xbf16>,
    %c0_6 = arith.constant 0 : index
    %c0_7 = arith.constant 0 : index
    %c1 = arith.constant 1 : index
    %6 = vector.load %arg2[%c0_6, %c0_7, %c1] : memref<1x4x768xbf16, #tpu.memory_space<vmem>>, vector<1x4x512xbf16>
    %7 = vector.shape_cast %6 : vector<1x4x512xbf16> to vector<4x512xbf16>
    %c1_8 = arith.constant 1 : index
    %c0_9 = arith.constant 0 : index
    %8 = vector.load %arg3[%c1_8, %c0_9] : memref<27x512xbf16, #tpu.memory_space<vmem>>, vector<1x512xbf16>
    %9 = vector.broadcast %8 : vector<1x512xbf16> to vector<4x512xbf16>
    %10 = arith.mulf %7, %9 : vector<4x512xbf16>
    %c4 = arith.constant 4 : index
    %c0_10 = arith.constant 0 : index
    %11 = vector.load %arg7[%c4, %c0_10] : memref<112x512xbf16, #tpu.memory_space<vmem>>, vector<4x512xbf16>
    tpu.vector_store %arg7[%c4, %c0_10], %10 {strides = array<i32>} : memref<112x512xbf16, #tpu.memory_space<vmem>>, vector<4x512xbf16>,
    %c0_11 = arith.constant 0 : index
    %c0_12 = arith.constant 0 : index
    %c2 = arith.constant 2 : index
    %12 = vector.load %arg2[%c0_11, %c0_12, %c2] : memref<1x4x768xbf16, #tpu.memory_space<vmem>>, vector<1x4x512xbf16>
    %13 = vector.shape_cast %12 : vector<1x4x512xbf16> to vector<4x512xbf16>
    %c2_13 = arith.constant 2 : index
    %c0_14 = arith.constant 0 : index
    %14 = vector.load %arg3[%c2_13, %c0_14] : memref<27x512xbf16, #tpu.memory_space<vmem>>, vector<1x512xbf16>
    %15 = vector.broadcast %14 : vector<1x512xbf16> to vector<4x512xbf16>
    %16 = arith.mulf %13, %15 : vector<4x512xbf16>
    %c8 = arith.constant 8 : index
    %c0_15 = arith.constant 0 : index
    %17 = vector.load %arg7[%c8, %c0_15] : memref<112x512xbf16, #tpu.memory_space<vmem>>, vector<4x512xbf16>
    tpu.vector_store %arg7[%c8, %c0_15], %16 {strides = array<i32>} : memref<112x512xbf16, #tpu.memory_space<vmem>>, vector<4x512xbf16>,
    %c0_16 = arith.constant 0 : index
    %c0_17 = arith.constant 0 : index
    %c8_18 = arith.constant 8 : index
    %18 = vector.load %arg2[%c0_16, %c0_17, %c8_18] : memref<1x4x768xbf16, #tpu.memory_space<vmem>>, vector<1x4x512xbf16>
    %19 = vector.shape_cast %18 : vector<1x4x512xbf16> to vector<4x512xbf16>
    %c3 = arith.constant 3 : index
    %c0_19 = arith.constant 0 : index
    %20 = vector.load %arg3[%c3, %c0_19] : memref<27x512xbf16, #tpu.memory_space<vmem>>, vector<1x512xbf16>
    %21 = vector.broadcast %20 : vector<1x512xbf16> to vector<4x512xbf16>
    %22 = arith.mulf %19, %21 : vector<4x512xbf16>
    %c12 = arith.constant 12 : index
    %c0_20 = arith.constant 0 : index
    %23 = vector.load %arg7[%c12, %c0_20] : memref<112x512xbf16, #tpu.memory_space<vmem>>, vector<4x512xbf16>
    tpu.vector_store %arg7[%c12, %c0_20], %22 {strides = array<i32>} : memref<112x512xbf16, #tpu.memory_space<vmem>>, vector<4x512xbf16>,
    %c0_21 = arith.constant 0 : index
    %c0_22 = arith.constant 0 : index
    %c9 = arith.constant 9 : index
    %24 = vector.load %arg2[%c0_21, %c0_22, %c9] : memref<1x4x768xbf16, #tpu.memory_space<vmem>>, vector<1x4x512xbf16>
    %25 = vector.shape_cast %24 : vector<1x4x512xbf16> to vector<4x512xbf16>
    %c4_23 = arith.constant 4 : index
    %c0_24 = arith.constant 0 : index
    %26 = vector.load %arg3[%c4_23, %c0_24] : memref<27x512xbf16, #tpu.memory_space<vmem>>, vector<1x512xbf16>
    %27 = vector.broadcast %26 : vector<1x512xbf16> to vector<4x512xbf16>
    %28 = arith.mulf %25, %27 : vector<4x512xbf16>
    %c16 = arith.constant 16 : index
    %c0_25 = arith.constant 0 : index
    %29 = vector.load %arg7[%c16, %c0_25] : memref<112x512xbf16, #tpu.memory_space<vmem>>, vector<4x512xbf16>
    tpu.vector_store %arg7[%c16, %c0_25], %28 {strides = array<i32>} : memref<112x512xbf16, #tpu.memory_space<vmem>>, vector<4x512xbf16>,
    %c0_26 = arith.constant 0 : index
    %c0_27 = arith.constant 0 : index
    %c10 = arith.constant 10 : index
    %30 = vector.load %arg2[%c0_26, %c0_27, %c10] : memref<1x4x768xbf16, #tpu.memory_space<vmem>>, vector<1x4x512xbf16>
    %31 = vector.shape_cast %30 : vector<1x4x512xbf16> to vector<4x512xbf16>
    %c5 = arith.constant 5 : index
    %c0_28 = arith.constant 0 : index
    %32 = vector.load %arg3[%c5, %c0_28] : memref<27x512xbf16, #tpu.memory_space<vmem>>, vector<1x512xbf16>
    %33 = vector.broadcast %32 : vector<1x512xbf16> to vector<4x512xbf16>
    %34 = arith.mulf %31, %33 : vector<4x512xbf16>
    %c20 = arith.constant 20 : index
    %c0_29 = arith.constant 0 : index
    %35 = vector.load %arg7[%c20, %c0_29] : memref<112x512xbf16, #tpu.memory_space<vmem>>, vector<4x512xbf16>
    tpu.vector_store %arg7[%c20, %c0_29], %34 {strides = array<i32>} : memref<112x512xbf16, #tpu.memory_space<vmem>>, vector<4x512xbf16>,
    %c0_30 = arith.constant 0 : index
    %c0_31 = arith.constant 0 : index
    %c16_32 = arith.constant 16 : index
    %36 = vector.load %arg2[%c0_30, %c0_31, %c16_32] : memref<1x4x768xbf16, #tpu.memory_space<vmem>>, vector<1x4x512xbf16>
    %37 = vector.shape_cast %36 : vector<1x4x512xbf16> to vector<4x512xbf16>
    %c6 = arith.constant 6 : index
    %c0_33 = arith.constant 0 : index
    %38 = vector.load %arg3[%c6, %c0_33] : memref<27x512xbf16, #tpu.memory_space<vmem>>, vector<1x512xbf16>
    %39 = vector.broadcast %38 : vector<1x512xbf16> to vector<4x512xbf16>
    %40 = arith.mulf %37, %39 : vector<4x512xbf16>
    %c24 = arith.constant 24 : index
    %c0_34 = arith.constant 0 : index
    %41 = vector.load %arg7[%c24, %c0_34] : memref<112x512xbf16, #tpu.memory_space<vmem>>, vector<4x512xbf16>
    tpu.vector_store %arg7[%c24, %c0_34], %40 {strides = array<i32>} : memref<112x512xbf16, #tpu.memory_space<vmem>>, vector<4x512xbf16>,
    %c0_35 = arith.constant 0 : index
    %c0_36 = arith.constant 0 : index
    %c17 = arith.constant 17 : index
    %42 = vector.load %arg2[%c0_35, %c0_36, %c17] : memref<1x4x768xbf16, #tpu.memory_space<vmem>>, vector<1x4x512xbf16>
    %43 = vector.shape_cast %42 : vector<1x4x512xbf16> to vector<4x512xbf16>
    %c7 = arith.constant 7 : index
    %c0_37 = arith.constant 0 : index
    %44 = vector.load %arg3[%c7, %c0_37] : memref<27x512xbf16, #tpu.memory_space<vmem>>, vector<1x512xbf16>
    %45 = vector.broadcast %44 : vector<1x512xbf16> to vector<4x512xbf16>
    %46 = arith.mulf %43, %45 : vector<4x512xbf16>
    %c28 = arith.constant 28 : index
    %c0_38 = arith.constant 0 : index
    %47 = vector.load %arg7[%c28, %c0_38] : memref<112x512xbf16, #tpu.memory_space<vmem>>, vector<4x512xbf16>
    tpu.vector_store %arg7[%c28, %c0_38], %46 {strides = array<i32>} : memref<112x512xbf16, #tpu.memory_space<vmem>>, vector<4x512xbf16>,
    %c0_39 = arith.constant 0 : index
    %c0_40 = arith.constant 0 : index
    %c18 = arith.constant 18 : index
    %48 = vector.load %arg2[%c0_39, %c0_40, %c18] : memref<1x4x768xbf16, #tpu.memory_space<vmem>>, vector<1x4x512xbf16>
    %49 = vector.shape_cast %48 : vector<1x4x512xbf16> to vector<4x512xbf16>
    %c8_41 = arith.constant 8 : index
    %c0_42 = arith.constant 0 : index
    %50 = vector.load %arg3[%c8_41, %c0_42] : memref<27x512xbf16, #tpu.memory_space<vmem>>, vector<1x512xbf16>
    %51 = vector.broadcast %50 : vector<1x512xbf16> to vector<4x512xbf16>
    %52 = arith.mulf %49, %51 : vector<4x512xbf16>
    %c32 = arith.constant 32 : index
    %c0_43 = arith.constant 0 : index
    %53 = vector.load %arg7[%c32, %c0_43] : memref<112x512xbf16, #tpu.memory_space<vmem>>, vector<4x512xbf16>
    tpu.vector_store %arg7[%c32, %c0_43], %52 {strides = array<i32>} : memref<112x512xbf16, #tpu.memory_space<vmem>>, vector<4x512xbf16>,
    %c0_44 = arith.constant 0 : index
    %c0_45 = arith.constant 0 : index
    %c64 = arith.constant 64 : index
    %54 = vector.load %arg2[%c0_44, %c0_45, %c64] : memref<1x4x768xbf16, #tpu.memory_space<vmem>>, vector<1x4x512xbf16>
    %55 = vector.shape_cast %54 : vector<1x4x512xbf16> to vector<4x512xbf16>
    %c9_46 = arith.constant 9 : index
    %c0_47 = arith.constant 0 : index
    %56 = vector.load %arg3[%c9_46, %c0_47] : memref<27x512xbf16, #tpu.memory_space<vmem>>, vector<1x512xbf16>
    %57 = vector.broadcast %56 : vector<1x512xbf16> to vector<4x512xbf16>
    %58 = arith.mulf %55, %57 : vector<4x512xbf16>
    %c36 = arith.constant 36 : index
    %c0_48 = arith.constant 0 : index
    %59 = vector.load %arg7[%c36, %c0_48] : memref<112x512xbf16, #tpu.memory_space<vmem>>, vector<4x512xbf16>
    tpu.vector_store %arg7[%c36, %c0_48], %58 {strides = array<i32>} : memref<112x512xbf16, #tpu.memory_space<vmem>>, vector<4x512xbf16>,
    %c0_49 = arith.constant 0 : index
    %c0_50 = arith.constant 0 : index
    %c65 = arith.constant 65 : index
    %60 = vector.load %arg2[%c0_49, %c0_50, %c65] : memref<1x4x768xbf16, #tpu.memory_space<vmem>>, vector<1x4x512xbf16>
    %61 = vector.shape_cast %60 : vector<1x4x512xbf16> to vector<4x512xbf16>
    %c10_51 = arith.constant 10 : index
    %c0_52 = arith.constant 0 : index
    %62 = vector.load %arg3[%c10_51, %c0_52] : memref<27x512xbf16, #tpu.memory_space<vmem>>, vector<1x512xbf16>
    %63 = vector.broadcast %62 : vector<1x512xbf16> to vector<4x512xbf16>
    %64 = arith.mulf %61, %63 : vector<4x512xbf16>
    %c40 = arith.constant 40 : index
    %c0_53 = arith.constant 0 : index
    %65 = vector.load %arg7[%c40, %c0_53] : memref<112x512xbf16, #tpu.memory_space<vmem>>, vector<4x512xbf16>
    tpu.vector_store %arg7[%c40, %c0_53], %64 {strides = array<i32>} : memref<112x512xbf16, #tpu.memory_space<vmem>>, vector<4x512xbf16>,
    %c0_54 = arith.constant 0 : index
    %c0_55 = arith.constant 0 : index
    %c66 = arith.constant 66 : index
    %66 = vector.load %arg2[%c0_54, %c0_55, %c66] : memref<1x4x768xbf16, #tpu.memory_space<vmem>>, vector<1x4x512xbf16>
    %67 = vector.shape_cast %66 : vector<1x4x512xbf16> to vector<4x512xbf16>
    %c11 = arith.constant 11 : index
    %c0_56 = arith.constant 0 : index
    %68 = vector.load %arg3[%c11, %c0_56] : memref<27x512xbf16, #tpu.memory_space<vmem>>, vector<1x512xbf16>
    %69 = vector.broadcast %68 : vector<1x512xbf16> to vector<4x512xbf16>
    %70 = arith.mulf %67, %69 : vector<4x512xbf16>
    %c44 = arith.constant 44 : index
    %c0_57 = arith.constant 0 : index
    %71 = vector.load %arg7[%c44, %c0_57] : memref<112x512xbf16, #tpu.memory_space<vmem>>, vector<4x512xbf16>
    tpu.vector_store %arg7[%c44, %c0_57], %70 {strides = array<i32>} : memref<112x512xbf16, #tpu.memory_space<vmem>>, vector<4x512xbf16>,
    %c0_58 = arith.constant 0 : index
    %c0_59 = arith.constant 0 : index
    %c72 = arith.constant 72 : index
    %72 = vector.load %arg2[%c0_58, %c0_59, %c72] : memref<1x4x768xbf16, #tpu.memory_space<vmem>>, vector<1x4x512xbf16>
    %73 = vector.shape_cast %72 : vector<1x4x512xbf16> to vector<4x512xbf16>
    %c12_60 = arith.constant 12 : index
    %c0_61 = arith.constant 0 : index
    %74 = vector.load %arg3[%c12_60, %c0_61] : memref<27x512xbf16, #tpu.memory_space<vmem>>, vector<1x512xbf16>
    %75 = vector.broadcast %74 : vector<1x512xbf16> to vector<4x512xbf16>
    %76 = arith.mulf %73, %75 : vector<4x512xbf16>
    %c48 = arith.constant 48 : index
    %c0_62 = arith.constant 0 : index
    %77 = vector.load %arg7[%c48, %c0_62] : memref<112x512xbf16, #tpu.memory_space<vmem>>, vector<4x512xbf16>
    tpu.vector_store %arg7[%c48, %c0_62], %76 {strides = array<i32>} : memref<112x512xbf16, #tpu.memory_space<vmem>>, vector<4x512xbf16>,
    %c0_63 = arith.constant 0 : index
    %c0_64 = arith.constant 0 : index
    %c73 = arith.constant 73 : index
    %78 = vector.load %arg2[%c0_63, %c0_64, %c73] : memref<1x4x768xbf16, #tpu.memory_space<vmem>>, vector<1x4x512xbf16>
    %79 = vector.shape_cast %78 : vector<1x4x512xbf16> to vector<4x512xbf16>
    %c13 = arith.constant 13 : index
    %c0_65 = arith.constant 0 : index
    %80 = vector.load %arg3[%c13, %c0_65] : memref<27x512xbf16, #tpu.memory_space<vmem>>, vector<1x512xbf16>
    %81 = vector.broadcast %80 : vector<1x512xbf16> to vector<4x512xbf16>
    %82 = arith.mulf %79, %81 : vector<4x512xbf16>
    %c52 = arith.constant 52 : index
    %c0_66 = arith.constant 0 : index
    %83 = vector.load %arg7[%c52, %c0_66] : memref<112x512xbf16, #tpu.memory_space<vmem>>, vector<4x512xbf16>
    tpu.vector_store %arg7[%c52, %c0_66], %82 {strides = array<i32>} : memref<112x512xbf16, #tpu.memory_space<vmem>>, vector<4x512xbf16>,
    %c0_67 = arith.constant 0 : index
    %c0_68 = arith.constant 0 : index
    %c74 = arith.constant 74 : index
    %84 = vector.load %arg2[%c0_67, %c0_68, %c74] : memref<1x4x768xbf16, #tpu.memory_space<vmem>>, vector<1x4x512xbf16>
    %85 = vector.shape_cast %84 : vector<1x4x512xbf16> to vector<4x512xbf16>
    %c14 = arith.constant 14 : index
    %c0_69 = arith.constant 0 : index
    %86 = vector.load %arg3[%c14, %c0_69] : memref<27x512xbf16, #tpu.memory_space<vmem>>, vector<1x512xbf16>
    %87 = vector.broadcast %86 : vector<1x512xbf16> to vector<4x512xbf16>
    %88 = arith.mulf %85, %87 : vector<4x512xbf16>
    %c56 = arith.constant 56 : index
    %c0_70 = arith.constant 0 : index
    %89 = vector.load %arg7[%c56, %c0_70] : memref<112x512xbf16, #tpu.memory_space<vmem>>, vector<4x512xbf16>
    tpu.vector_store %arg7[%c56, %c0_70], %88 {strides = array<i32>} : memref<112x512xbf16, #tpu.memory_space<vmem>>, vector<4x512xbf16>,
    %c0_71 = arith.constant 0 : index
    %c0_72 = arith.constant 0 : index
    %c80 = arith.constant 80 : index
    %90 = vector.load %arg2[%c0_71, %c0_72, %c80] : memref<1x4x768xbf16, #tpu.memory_space<vmem>>, vector<1x4x512xbf16>
    %91 = vector.shape_cast %90 : vector<1x4x512xbf16> to vector<4x512xbf16>
    %c15 = arith.constant 15 : index
    %c0_73 = arith.constant 0 : index
    %92 = vector.load %arg3[%c15, %c0_73] : memref<27x512xbf16, #tpu.memory_space<vmem>>, vector<1x512xbf16>
    %93 = vector.broadcast %92 : vector<1x512xbf16> to vector<4x512xbf16>
    %94 = arith.mulf %91, %93 : vector<4x512xbf16>
    %c60 = arith.constant 60 : index
    %c0_74 = arith.constant 0 : index
    %95 = vector.load %arg7[%c60, %c0_74] : memref<112x512xbf16, #tpu.memory_space<vmem>>, vector<4x512xbf16>
    tpu.vector_store %arg7[%c60, %c0_74], %94 {strides = array<i32>} : memref<112x512xbf16, #tpu.memory_space<vmem>>, vector<4x512xbf16>,
    %c0_75 = arith.constant 0 : index
    %c0_76 = arith.constant 0 : index
    %c81 = arith.constant 81 : index
    %96 = vector.load %arg2[%c0_75, %c0_76, %c81] : memref<1x4x768xbf16, #tpu.memory_space<vmem>>, vector<1x4x512xbf16>
    %97 = vector.shape_cast %96 : vector<1x4x512xbf16> to vector<4x512xbf16>
    %c16_77 = arith.constant 16 : index
    %c0_78 = arith.constant 0 : index
    %98 = vector.load %arg3[%c16_77, %c0_78] : memref<27x512xbf16, #tpu.memory_space<vmem>>, vector<1x512xbf16>
    %99 = vector.broadcast %98 : vector<1x512xbf16> to vector<4x512xbf16>
    %100 = arith.mulf %97, %99 : vector<4x512xbf16>
    %c64_79 = arith.constant 64 : index
    %c0_80 = arith.constant 0 : index
    %101 = vector.load %arg7[%c64_79, %c0_80] : memref<112x512xbf16, #tpu.memory_space<vmem>>, vector<4x512xbf16>
    tpu.vector_store %arg7[%c64_79, %c0_80], %100 {strides = array<i32>} : memref<112x512xbf16, #tpu.memory_space<vmem>>, vector<4x512xbf16>,
    %c0_81 = arith.constant 0 : index
    %c0_82 = arith.constant 0 : index
    %c82 = arith.constant 82 : index
    %102 = vector.load %arg2[%c0_81, %c0_82, %c82] : memref<1x4x768xbf16, #tpu.memory_space<vmem>>, vector<1x4x512xbf16>
    %103 = vector.shape_cast %102 : vector<1x4x512xbf16> to vector<4x512xbf16>
    %c17_83 = arith.constant 17 : index
    %c0_84 = arith.constant 0 : index
    %104 = vector.load %arg3[%c17_83, %c0_84] : memref<27x512xbf16, #tpu.memory_space<vmem>>, vector<1x512xbf16>
    %105 = vector.broadcast %104 : vector<1x512xbf16> to vector<4x512xbf16>
    %106 = arith.mulf %103, %105 : vector<4x512xbf16>
    %c68 = arith.constant 68 : index
    %c0_85 = arith.constant 0 : index
    %107 = vector.load %arg7[%c68, %c0_85] : memref<112x512xbf16, #tpu.memory_space<vmem>>, vector<4x512xbf16>
    tpu.vector_store %arg7[%c68, %c0_85], %106 {strides = array<i32>} : memref<112x512xbf16, #tpu.memory_space<vmem>>, vector<4x512xbf16>,
    %c0_86 = arith.constant 0 : index
    %c0_87 = arith.constant 0 : index
    %c128 = arith.constant 128 : index
    %108 = vector.load %arg2[%c0_86, %c0_87, %c128] : memref<1x4x768xbf16, #tpu.memory_space<vmem>>, vector<1x4x512xbf16>
    %109 = vector.shape_cast %108 : vector<1x4x512xbf16> to vector<4x512xbf16>
    %c18_88 = arith.constant 18 : index
    %c0_89 = arith.constant 0 : index
    %110 = vector.load %arg3[%c18_88, %c0_89] : memref<27x512xbf16, #tpu.memory_space<vmem>>, vector<1x512xbf16>
    %111 = vector.broadcast %110 : vector<1x512xbf16> to vector<4x512xbf16>
    %112 = arith.mulf %109, %111 : vector<4x512xbf16>
    %c72_90 = arith.constant 72 : index
    %c0_91 = arith.constant 0 : index
    %113 = vector.load %arg7[%c72_90, %c0_91] : memref<112x512xbf16, #tpu.memory_space<vmem>>, vector<4x512xbf16>
    tpu.vector_store %arg7[%c72_90, %c0_91], %112 {strides = array<i32>} : memref<112x512xbf16, #tpu.memory_space<vmem>>, vector<4x512xbf16>,
    %c0_92 = arith.constant 0 : index
    %c0_93 = arith.constant 0 : index
    %c129 = arith.constant 129 : index
    %114 = vector.load %arg2[%c0_92, %c0_93, %c129] : memref<1x4x768xbf16, #tpu.memory_space<vmem>>, vector<1x4x512xbf16>
    %115 = vector.shape_cast %114 : vector<1x4x512xbf16> to vector<4x512xbf16>
    %c19 = arith.constant 19 : index
    %c0_94 = arith.constant 0 : index
    %116 = vector.load %arg3[%c19, %c0_94] : memref<27x512xbf16, #tpu.memory_space<vmem>>, vector<1x512xbf16>
    %117 = vector.broadcast %116 : vector<1x512xbf16> to vector<4x512xbf16>
    %118 = arith.mulf %115, %117 : vector<4x512xbf16>
    %c76 = arith.constant 76 : index
    %c0_95 = arith.constant 0 : index
    %119 = vector.load %arg7[%c76, %c0_95] : memref<112x512xbf16, #tpu.memory_space<vmem>>, vector<4x512xbf16>
    tpu.vector_store %arg7[%c76, %c0_95], %118 {strides = array<i32>} : memref<112x512xbf16, #tpu.memory_space<vmem>>, vector<4x512xbf16>,
    %c0_96 = arith.constant 0 : index
    %c0_97 = arith.constant 0 : index
    %c130 = arith.constant 130 : index
    %120 = vector.load %arg2[%c0_96, %c0_97, %c130] : memref<1x4x768xbf16, #tpu.memory_space<vmem>>, vector<1x4x512xbf16>
    %121 = vector.shape_cast %120 : vector<1x4x512xbf16> to vector<4x512xbf16>
    %c20_98 = arith.constant 20 : index
    %c0_99 = arith.constant 0 : index
    %122 = vector.load %arg3[%c20_98, %c0_99] : memref<27x512xbf16, #tpu.memory_space<vmem>>, vector<1x512xbf16>
    %123 = vector.broadcast %122 : vector<1x512xbf16> to vector<4x512xbf16>
    %124 = arith.mulf %121, %123 : vector<4x512xbf16>
    %c80_100 = arith.constant 80 : index
    %c0_101 = arith.constant 0 : index
    %125 = vector.load %arg7[%c80_100, %c0_101] : memref<112x512xbf16, #tpu.memory_space<vmem>>, vector<4x512xbf16>
    tpu.vector_store %arg7[%c80_100, %c0_101], %124 {strides = array<i32>} : memref<112x512xbf16, #tpu.memory_space<vmem>>, vector<4x512xbf16>,
    %c0_102 = arith.constant 0 : index
    %c0_103 = arith.constant 0 : index
    %c136 = arith.constant 136 : index
    %126 = vector.load %arg2[%c0_102, %c0_103, %c136] : memref<1x4x768xbf16, #tpu.memory_space<vmem>>, vector<1x4x512xbf16>
    %127 = vector.shape_cast %126 : vector<1x4x512xbf16> to vector<4x512xbf16>
    %c21 = arith.constant 21 : index
    %c0_104 = arith.constant 0 : index
    %128 = vector.load %arg3[%c21, %c0_104] : memref<27x512xbf16, #tpu.memory_space<vmem>>, vector<1x512xbf16>
    %129 = vector.broadcast %128 : vector<1x512xbf16> to vector<4x512xbf16>
    %130 = arith.mulf %127, %129 : vector<4x512xbf16>
    %c84 = arith.constant 84 : index
    %c0_105 = arith.constant 0 : index
    %131 = vector.load %arg7[%c84, %c0_105] : memref<112x512xbf16, #tpu.memory_space<vmem>>, vector<4x512xbf16>
    tpu.vector_store %arg7[%c84, %c0_105], %130 {strides = array<i32>} : memref<112x512xbf16, #tpu.memory_space<vmem>>, vector<4x512xbf16>,
    %c0_106 = arith.constant 0 : index
    %c0_107 = arith.constant 0 : index
    %c137 = arith.constant 137 : index
    %132 = vector.load %arg2[%c0_106, %c0_107, %c137] : memref<1x4x768xbf16, #tpu.memory_space<vmem>>, vector<1x4x512xbf16>
    %133 = vector.shape_cast %132 : vector<1x4x512xbf16> to vector<4x512xbf16>
    %c22 = arith.constant 22 : index
    %c0_108 = arith.constant 0 : index
    %134 = vector.load %arg3[%c22, %c0_108] : memref<27x512xbf16, #tpu.memory_space<vmem>>, vector<1x512xbf16>
    %135 = vector.broadcast %134 : vector<1x512xbf16> to vector<4x512xbf16>
    %136 = arith.mulf %133, %135 : vector<4x512xbf16>
    %c88 = arith.constant 88 : index
    %c0_109 = arith.constant 0 : index
    %137 = vector.load %arg7[%c88, %c0_109] : memref<112x512xbf16, #tpu.memory_space<vmem>>, vector<4x512xbf16>
    tpu.vector_store %arg7[%c88, %c0_109], %136 {strides = array<i32>} : memref<112x512xbf16, #tpu.memory_space<vmem>>, vector<4x512xbf16>,
    %c0_110 = arith.constant 0 : index
    %c0_111 = arith.constant 0 : index
    %c138 = arith.constant 138 : index
    %138 = vector.load %arg2[%c0_110, %c0_111, %c138] : memref<1x4x768xbf16, #tpu.memory_space<vmem>>, vector<1x4x512xbf16>
    %139 = vector.shape_cast %138 : vector<1x4x512xbf16> to vector<4x512xbf16>
    %c23 = arith.constant 23 : index
    %c0_112 = arith.constant 0 : index
    %140 = vector.load %arg3[%c23, %c0_112] : memref<27x512xbf16, #tpu.memory_space<vmem>>, vector<1x512xbf16>
    %141 = vector.broadcast %140 : vector<1x512xbf16> to vector<4x512xbf16>
    %142 = arith.mulf %139, %141 : vector<4x512xbf16>
    %c92 = arith.constant 92 : index
    %c0_113 = arith.constant 0 : index
    %143 = vector.load %arg7[%c92, %c0_113] : memref<112x512xbf16, #tpu.memory_space<vmem>>, vector<4x512xbf16>
    tpu.vector_store %arg7[%c92, %c0_113], %142 {strides = array<i32>} : memref<112x512xbf16, #tpu.memory_space<vmem>>, vector<4x512xbf16>,
    %c0_114 = arith.constant 0 : index
    %c0_115 = arith.constant 0 : index
    %c144 = arith.constant 144 : index
    %144 = vector.load %arg2[%c0_114, %c0_115, %c144] : memref<1x4x768xbf16, #tpu.memory_space<vmem>>, vector<1x4x512xbf16>
    %145 = vector.shape_cast %144 : vector<1x4x512xbf16> to vector<4x512xbf16>
    %c24_116 = arith.constant 24 : index
    %c0_117 = arith.constant 0 : index
    %146 = vector.load %arg3[%c24_116, %c0_117] : memref<27x512xbf16, #tpu.memory_space<vmem>>, vector<1x512xbf16>
    %147 = vector.broadcast %146 : vector<1x512xbf16> to vector<4x512xbf16>
    %148 = arith.mulf %145, %147 : vector<4x512xbf16>
    %c96 = arith.constant 96 : index
    %c0_118 = arith.constant 0 : index
    %149 = vector.load %arg7[%c96, %c0_118] : memref<112x512xbf16, #tpu.memory_space<vmem>>, vector<4x512xbf16>
    tpu.vector_store %arg7[%c96, %c0_118], %148 {strides = array<i32>} : memref<112x512xbf16, #tpu.memory_space<vmem>>, vector<4x512xbf16>,
    %c0_119 = arith.constant 0 : index
    %c0_120 = arith.constant 0 : index
    %c145 = arith.constant 145 : index
    %150 = vector.load %arg2[%c0_119, %c0_120, %c145] : memref<1x4x768xbf16, #tpu.memory_space<vmem>>, vector<1x4x512xbf16>
    %151 = vector.shape_cast %150 : vector<1x4x512xbf16> to vector<4x512xbf16>
    %c25 = arith.constant 25 : index
    %c0_121 = arith.constant 0 : index
    %152 = vector.load %arg3[%c25, %c0_121] : memref<27x512xbf16, #tpu.memory_space<vmem>>, vector<1x512xbf16>
    %153 = vector.broadcast %152 : vector<1x512xbf16> to vector<4x512xbf16>
    %154 = arith.mulf %151, %153 : vector<4x512xbf16>
    %c100 = arith.constant 100 : index
    %c0_122 = arith.constant 0 : index
    %155 = vector.load %arg7[%c100, %c0_122] : memref<112x512xbf16, #tpu.memory_space<vmem>>, vector<4x512xbf16>
    tpu.vector_store %arg7[%c100, %c0_122], %154 {strides = array<i32>} : memref<112x512xbf16, #tpu.memory_space<vmem>>, vector<4x512xbf16>,
    %c0_123 = arith.constant 0 : index
    %c0_124 = arith.constant 0 : index
    %c146 = arith.constant 146 : index
    %156 = vector.load %arg2[%c0_123, %c0_124, %c146] : memref<1x4x768xbf16, #tpu.memory_space<vmem>>, vector<1x4x512xbf16>
    %157 = vector.shape_cast %156 : vector<1x4x512xbf16> to vector<4x512xbf16>
    %c26 = arith.constant 26 : index
    %c0_125 = arith.constant 0 : index
    %158 = vector.load %arg3[%c26, %c0_125] : memref<27x512xbf16, #tpu.memory_space<vmem>>, vector<1x512xbf16>
    %159 = vector.broadcast %158 : vector<1x512xbf16> to vector<4x512xbf16>
    %160 = arith.mulf %157, %159 : vector<4x512xbf16>
    %c104 = arith.constant 104 : index
    %c0_126 = arith.constant 0 : index
    %161 = vector.load %arg7[%c104, %c0_126] : memref<112x512xbf16, #tpu.memory_space<vmem>>, vector<4x512xbf16>
    tpu.vector_store %arg7[%c104, %c0_126], %160 {strides = array<i32>} : memref<112x512xbf16, #tpu.memory_space<vmem>>, vector<4x512xbf16>,
    %cst = arith.constant 0.000000e+00 : bf16
    %162 = vector.broadcast %cst : bf16 to vector<4x512xbf16>
    %c108 = arith.constant 108 : index
    %c0_127 = arith.constant 0 : index
    %163 = vector.load %arg7[%c108, %c0_127] : memref<112x512xbf16, #tpu.memory_space<vmem>>, vector<4x512xbf16>
    tpu.vector_store %arg7[%c108, %c0_127], %162 {strides = array<i32>} : memref<112x512xbf16, #tpu.memory_space<vmem>>, vector<4x512xbf16>,
    %c0_128 = arith.constant 0 : index
    %c0_129 = arith.constant 0 : index
    %c0_130 = arith.constant 0 : index
    %164 = vector.load %arg4[%c0_128, %c0_129, %c0_130] : memref<1x64x112xbf16, #tpu.memory_space<vmem>>, vector<1x64x112xbf16>
    %165 = vector.shape_cast %164 : vector<1x64x112xbf16> to vector<64x112xbf16>
    %c0_131 = arith.constant 0 : index
    %c0_132 = arith.constant 0 : index
    %166 = vector.load %arg7[%c0_131, %c0_132] : memref<112x512xbf16, #tpu.memory_space<vmem>>, vector<112x512xbf16>
    %cst_133 = arith.constant dense<0.000000e+00> : vector<64x512xf32>
    %167 = tpu.matmul %165, %166, %cst_133 {dimension_numbers = #tpu.dot_dimension_numbers<[1], [0], [0], [1], [0, 0, 1, 1], [], []>} : vector<64x112xbf16>, vector<112x512xbf16>, vector<64x512xf32> -> vector<64x512xf32>
    %c0_134 = arith.constant 0 : index
    %c0_135 = arith.constant 0 : index
    %c0_136 = arith.constant 0 : index
    %168 = vector.load %arg5[%c0_134, %c0_135, %c0_136] : memref<1x64x1xf32, #tpu.memory_space<vmem>>, vector<1x64x1xf32>
    %169 = vector.shape_cast %168 : vector<1x64x1xf32> to vector<64x1xf32>
    %170 = vector.broadcast %169 : vector<64x1xf32> to vector<64x512xf32>
    %171 = arith.addf %167, %170 : vector<64x512xf32>
    %c0_137 = arith.constant 0 : index
    %c0_138 = arith.constant 0 : index
    %172 = vector.load %arg8[%c0_137, %c0_138] : memref<64x512xf32, #tpu.memory_space<vmem>>, vector<64x512xf32>
    tpu.vector_store %arg8[%c0_137, %c0_138], %171 {strides = array<i32>} : memref<64x512xf32, #tpu.memory_space<vmem>>, vector<64x512xf32>,
    %c0_139 = arith.constant 0 : index
    %c0_140 = arith.constant 0 : index
    %173 = vector.load %arg8[%c0_139, %c0_140] : memref<64x512xf32, #tpu.memory_space<vmem>>, vector<64x512xf32>
    %174 = vector.shape_cast %173 : vector<64x512xf32> to vector<8x8x512xf32>
    %cst_141 = arith.constant dense<0.000000e+00> : vector<8x8xf32>
    %175 = vector.multi_reduction <add>, %174, %cst_141 [2] : vector<8x8x512xf32> to vector<8x8xf32>
    %176 = vector.shape_cast %175 : vector<8x8xf32> to vector<8x8x1xf32>
    %cst_142 = arith.constant dense<0.000000e+00> : vector<8x1xf32>
    %177 = vector.multi_reduction <add>, %176, %cst_142 [0] : vector<8x8x1xf32> to vector<8x1xf32>
    %178 = vector.shape_cast %177 : vector<8x1xf32> to vector<1x8x1xf32>
    %cst_143 = arith.constant 2.44140625E-4 : f32
    %179 = vector.broadcast %cst_143 : f32 to vector<1x8x1xf32>
    %180 = arith.mulf %178, %179 : vector<1x8x1xf32>
    %181 = vector.broadcast %180 : vector<1x8x1xf32> to vector<8x8x512xf32>
    %182 = arith.subf %174, %181 : vector<8x8x512xf32>
    %183 = arith.mulf %182, %182 : vector<8x8x512xf32>
    %cst_144 = arith.constant dense<0.000000e+00> : vector<8x8xf32>
    %184 = vector.multi_reduction <add>, %183, %cst_144 [2] : vector<8x8x512xf32> to vector<8x8xf32>
    %185 = vector.shape_cast %184 : vector<8x8xf32> to vector<8x8x1xf32>
    %cst_145 = arith.constant dense<0.000000e+00> : vector<8x1xf32>
    %186 = vector.multi_reduction <add>, %185, %cst_145 [0] : vector<8x8x1xf32> to vector<8x1xf32>
    %187 = vector.shape_cast %186 : vector<8x1xf32> to vector<1x8x1xf32>
    %cst_146 = arith.constant 2.44140625E-4 : f32
    %188 = vector.broadcast %cst_146 : f32 to vector<1x8x1xf32>
    %189 = arith.mulf %187, %188 : vector<1x8x1xf32>
    %cst_147 = arith.constant 9.99999974E-6 : f32
    %190 = vector.broadcast %cst_147 : f32 to vector<1x8x1xf32>
    %191 = arith.addf %189, %190 : vector<1x8x1xf32>
    %192 = math.rsqrt %191 : vector<1x8x1xf32>
    %193 = vector.broadcast %192 : vector<1x8x1xf32> to vector<8x8x512xf32>
    %194 = arith.mulf %182, %193 : vector<8x8x512xf32>
    %195 = arith.truncf %194 : vector<8x8x512xf32> to vector<8x8x512xbf16>
    %c0_148 = arith.constant 0 : index
    %c0_149 = arith.constant 0 : index
    %c0_150 = arith.constant 0 : index
    %c0_151 = arith.constant 0 : index
    %c0_152 = arith.constant 0 : index
    %196 = vector.load %arg6[%c0_148, %c0_149, %c0_150, %c0_151, %c0_152] : memref<1x1x8x8x512xbf16, #tpu.memory_space<vmem>>, vector<1x1x8x8x512xbf16>
    %197 = vector.shape_cast %196 : vector<1x1x8x8x512xbf16> to vector<8x8x512xbf16>
    %198 = vector.shape_cast %195 : vector<8x8x512xbf16> to vector<1x1x8x8x512xbf16>
    tpu.vector_store %arg6[%c0_148, %c0_149, %c0_150, %c0_151, %c0_152], %198 {strides = array<i32>} : memref<1x1x8x8x512xbf16, #tpu.memory_space<vmem>>, vector<1x1x8x8x512xbf16>,
    return
  }
  func.func @transform_0(%arg0: i32, %arg1: i32) -> (i32, i32, i32) {
    %c0_i32 = arith.constant 0 : i32
    %c0_i32_0 = arith.constant 0 : i32
    %c0_i32_1 = arith.constant 0 : i32
    return %arg0, %c0_i32, %c0_i32_0 : i32, i32, i32
  }
  func.func @transform_1(%arg0: i32, %arg1: i32) -> (i32, i32) {
    %c0_i32 = arith.constant 0 : i32
    %c0_i32_0 = arith.constant 0 : i32
    %c0_i32_1 = arith.constant 0 : i32
    return %c0_i32, %c0_i32_0 : i32, i32
  }
  func.func @transform_2(%arg0: i32, %arg1: i32) -> (i32, i32, i32) {
    %c0_i32 = arith.constant 0 : i32
    %c0_i32_0 = arith.constant 0 : i32
    %c0_i32_1 = arith.constant 0 : i32
    return %arg1, %c0_i32, %c0_i32_0 : i32, i32, i32
  }
  func.func @transform_3(%arg0: i32, %arg1: i32) -> (i32, i32, i32) {
    %c0_i32 = arith.constant 0 : i32
    %c0_i32_0 = arith.constant 0 : i32
    %c0_i32_1 = arith.constant 0 : i32
    return %arg1, %c0_i32, %c0_i32_0 : i32, i32, i32
  }
  func.func @transform_4(%arg0: i32, %arg1: i32) -> (i32, i32, i32, i32, i32) {
    %c0_i32 = arith.constant 0 : i32
    %c0_i32_0 = arith.constant 0 : i32
    %c0_i32_1 = arith.constant 0 : i32
    %c0_i32_2 = arith.constant 0 : i32
    return %arg0, %arg1, %c0_i32, %c0_i32_0, %c0_i32_1 : i32, i32, i32, i32, i32
  }
}

</mosaic_0001>

<llo_original>
// kernel: _upconv3d_forward.1
$region0: #{_upconv3d_forward.1}
  #allocation0 [shape = 'u32[]', space=smem, size = 0x4, offset = 0x4, fixed_abs, tag = 'smem constant byte address 0x4 - core index']
  #allocation1 [shape = 'u32[144,128]{1,0:T(1,128)}', space=vmem, size = 0x12000, scoped, tag = 'internal scratch']
  #allocation2 [shape = 'bf16[112,512]{1,0:T(16,128)(2,1)}', space=vmem, size = 0x1c000, scoped, tag = 'scratch operand']
  #allocation3 [shape = 'f32[64,512]{1,0:T(8,128)}', space=vmem, size = 0x20000, scoped, tag = 'scratch operand']
  %s0 = inlined_call_operand.vmem [shape: bf16[2,4,768], index: 0, kind: input, shape index: {}]
  %s1 = inlined_call_operand.vmem [shape: bf16[27,512], index: 1, kind: input, shape index: {}]
  %s2 = inlined_call_operand.vmem [shape: bf16[1,64,112], index: 2, kind: input, shape index: {}]
  %s3 = inlined_call_operand.vmem [shape: f32[1,64,1], index: 3, kind: input, shape index: {}]
  %s4 = inlined_call_operand.vmem [shape: bf16[2,1,8,8,512], index: 4, kind: output, shape index: {}]
  %s5 = sld [smem:[#allocation0]]
  $region49: #{_upconv3d_forward.1} parent=0
    _
  %s7 = ssub.s32 1, %s5
  %s8 = scalar_select 0, %s7, %s5
  loop: start=0, step=1, limit=4
  $region2: #{_upconv3d_forward.1} parent=0 // loop_pre_header
    _
  $region3: #{_upconv3d_forward.1} parent=0 // loop_header
    %s10 = sphi 0, %s14
    %p11 = scmp.ge.s32.totalorder %s10, 4
    %s17 = sphi 0, %s29
    %s18 = sphi 0, %s25
    %s19 = sphi 0, %s17
    %s20 = sphi 0, %s18
    %s21 = sphi 0, %s19
    %s22 = sphi 0, %s20
    %s32 = sphi 0, %s34
    %s35 = sphi 0, %s32
    %s36 = sphi 0, %s35
    %s52 = sphi 0, %s36
    %s56 = sphi 0, %s56
    %s58 = sphi 0, %s56
    %s59 = sphi 0, %s58
    %s73 = sphi 0, %s59
    %s79 = sphi 0, %s81
    %s82 = sphi 0, %s79
    %s83 = sphi 0, %s82
    %s99 = sphi 0, %s83
    %s105 = sphi 0, %s107
    %s108 = sphi 0, %s105
    %s109 = sphi 0, %s108
    %s125 = sphi 0, %s109
    %s133 = sphi 0, %s135
    %s136 = sphi 0, %s133
    %s137 = sphi 0, %s136
    %s153 = sphi 0, %s137
  $region4: #{_upconv3d_forward.1} parent=0 // loop_header_branch
    %13 = sbr.rel (%p11) target = $region8
  $region5: #{_upconv3d_forward.1} parent=0 // loop_body
    %s15 = ssub.s32 %s10, 1
    %s16 = ssub.s32 %s10, 2
    %s23 = sadd.s32 1, %s18
    %p24 = scmp.ge.s32.totalorder %s23, 1
    %s25 = scalar_select %p24, 0, %s23
    %s26 = sadd.s32 1, %s17
    %s27 = scalar_select %p24, %s26, %s17
    %p28 = scmp.ge.s32.totalorder %s27, 2
    %s29 = scalar_select %p28, 0, %s27
    %s30 = ssub.s32 %s17, %s29
    %p31 = scmp.eq.s32.totalorder %s30, 0
    %s33 = sadd.s32 %s32, 1
    %s34 = scalar_select %p31, %s32, %s33
    %p37 = pneg %p31
    %p38 = scmp.eq.s32.totalorder %s10, 1
    %p39 = por %p37, %p38
    %p40 = scmp.ne.s32.totalorder %s32, %s35
    %p41 = scmp.eq.s32.totalorder %s10, 0
    %p42 = por %p40, %p41
    %p43 = scmp.ne.s32.totalorder %s32, %s35
    %p44 = scmp.eq.s32.totalorder %s15, 1
    %p45 = por %p43, %p44
    %p46 = scmp.ne.s32.totalorder %s35, %s36
    %p47 = scmp.eq.s32.totalorder %s15, 0
    %p48 = por %p46, %p47
    %p49 = scmp.ne.s32.totalorder %s35, %s36
    %p50 = scmp.eq.s32.totalorder %s16, 1
    %p51 = por %p49, %p50
    %p53 = scmp.ne.s32.totalorder %s36, %s52
    %p54 = scmp.eq.s32.totalorder %s16, 0
    %p55 = por %p53, %p54
    %s57 = sadd.s32 %s56, 1
    %p60 = scmp.eq.s32.totalorder %s10, 1
    %p61 = scmp.ne.s32.totalorder %s56, %s58
    %p62 = scmp.eq.s32.totalorder %s10, 0
    %p63 = por %p61, %p62
    %p64 = scmp.ne.s32.totalorder %s56, %s58
    %p65 = scmp.eq.s32.totalorder %s15, 1
    %p66 = por %p64, %p65
    %p67 = scmp.ne.s32.totalorder %s58, %s59
    %p68 = scmp.eq.s32.totalorder %s15, 0
    %p69 = por %p67, %p68
    %p70 = scmp.ne.s32.totalorder %s58, %s59
    %p71 = scmp.eq.s32.totalorder %s16, 1
    %p72 = por %p70, %p71
    %p74 = scmp.ne.s32.totalorder %s59, %s73
    %p75 = scmp.eq.s32.totalorder %s16, 0
    %p76 = por %p74, %p75
    %s77 = ssub.s32 %s18, %s25
    %p78 = scmp.eq.s32.totalorder %s77, 0
    %s80 = sadd.s32 %s79, 1
    %s81 = scalar_select %p78, %s79, %s80
    %p84 = pneg %p78
    %p85 = scmp.eq.s32.totalorder %s10, 1
    %p86 = por %p84, %p85
    %p87 = scmp.ne.s32.totalorder %s79, %s82
    %p88 = scmp.eq.s32.totalorder %s10, 0
    %p89 = por %p87, %p88
    %p90 = scmp.ne.s32.totalorder %s79, %s82
    %p91 = scmp.eq.s32.totalorder %s15, 1
    %p92 = por %p90, %p91
    %p93 = scmp.ne.s32.totalorder %s82, %s83
    %p94 = scmp.eq.s32.totalorder %s15, 0
    %p95 = por %p93, %p94
    %p96 = scmp.ne.s32.totalorder %s82, %s83
    %p97 = scmp.eq.s32.totalorder %s16, 1
    %p98 = por %p96, %p97
    %p100 = scmp.ne.s32.totalorder %s83, %s99
    %p101 = scmp.eq.s32.totalorder %s16, 0
    %p102 = por %p100, %p101
    %s103 = ssub.s32 %s18, %s25
    %p104 = scmp.eq.s32.totalorder %s103, 0
    %s106 = sadd.s32 %s105, 1
    %s107 = scalar_select %p104, %s105, %s106
    %p110 = pneg %p104
    %p111 = scmp.eq.s32.totalorder %s10, 1
    %p112 = por %p110, %p111
    %p113 = scmp.ne.s32.totalorder %s105, %s108
    %p114 = scmp.eq.s32.totalorder %s10, 0
    %p115 = por %p113, %p114
    %p116 = scmp.ne.s32.totalorder %s105, %s108
    %p117 = scmp.eq.s32.totalorder %s15, 1
    %p118 = por %p116, %p117
    %p119 = scmp.ne.s32.totalorder %s108, %s109
    %p120 = scmp.eq.s32.totalorder %s15, 0
    %p121 = por %p119, %p120
    %p122 = scmp.ne.s32.totalorder %s108, %s109
    %p123 = scmp.eq.s32.totalorder %s16, 1
    %p124 = por %p122, %p123
    %p126 = scmp.ne.s32.totalorder %s109, %s125
    %p127 = scmp.eq.s32.totalorder %s16, 0
    %p128 = por %p126, %p127
    %s129 = ssub.s32 %s17, %s29
    %s130 = ssub.s32 %s18, %s25
    %s131 = sor.u32 %s129, %s130
    %p132 = scmp.eq.s32.totalorder %s131, 0
    %s134 = sadd.s32 %s133, 1
    %s135 = scalar_select %p132, %s133, %s134
    %p138 = pneg %p132
    %p139 = scmp.eq.s32.totalorder %s10, 1
    %p140 = por %p138, %p139
    %p141 = scmp.ne.s32.totalorder %s133, %s136
    %p142 = scmp.eq.s32.totalorder %s10, 0
    %p143 = por %p141, %p142
    %p144 = scmp.ne.s32.totalorder %s133, %s136
    %p145 = scmp.eq.s32.totalorder %s15, 1
    %p146 = por %p144, %p145
    %p147 = scmp.ne.s32.totalorder %s136, %s137
    %p148 = scmp.eq.s32.totalorder %s15, 0
    %p149 = por %p147, %p148
    %p150 = scmp.ne.s32.totalorder %s136, %s137
    %p151 = scmp.eq.s32.totalorder %s16, 1
    %p152 = por %p150, %p151
    %p154 = scmp.ne.s32.totalorder %s137, %s153
    %p155 = scmp.eq.s32.totalorder %s16, 0
    %p156 = por %p154, %p155
    %p157 = scmp.le.s32.totalorder 1, %s10
    %p158 = scmp.lt.s32.totalorder %s10, 3
    %p159 = pnand %p157, %p158
    %p160 = pneg %p159
    // Predicated region
    $region9: #{_upconv3d_forward.1} parent=5 // pred_check
      _
    $region10: #{_upconv3d_forward.1} parent=5 // pred_check_branch
      %162 = sbr.rel (%p159) target = $region12
    $region11: #{_upconv3d_forward.1} parent=5 // pred_region
      %s163 = ssub.s32 %s10, 1
      // Predicated region
      $region13: #{_upconv3d_forward.1} parent=11 // pred_check
        %p164 = pneg %p69
      $region14: #{_upconv3d_forward.1} parent=11 // pred_check_branch
        %166 = sbr.rel (%p164) target = $region16
      $region15: #{_upconv3d_forward.1} parent=11 // pred_region
        _
      $region16: #{_upconv3d_forward.1} parent=11 // pred_fallthru
        _
      // Predicated region
      $region17: #{_upconv3d_forward.1} parent=11 // pred_check
        %p167 = pneg %p95
      $region18: #{_upconv3d_forward.1} parent=11 // pred_check_branch
        %169 = sbr.rel (%p167) target = $region20
      $region19: #{_upconv3d_forward.1} parent=11 // pred_region
        %p170 = scmp.lt.s32.totalorder %s20, 0
        %s171 = scalar_select %p170, %s20, 0
        %s172 = smul.addr %s171, 8
        %s173 = smul.addr %s172, 4
        %s174 = scalar_lea.vmem %s2, %s173
      $region20: #{_upconv3d_forward.1} parent=11 // pred_fallthru
        _
      // Predicated region
      $region21: #{_upconv3d_forward.1} parent=11 // pred_check
        %p175 = pneg %p121
      $region22: #{_upconv3d_forward.1} parent=11 // pred_check_branch
        %177 = sbr.rel (%p175) target = $region24
      $region23: #{_upconv3d_forward.1} parent=11 // pred_region
        %p178 = scmp.lt.s32.totalorder %s20, 0
        %s179 = scalar_select %p178, %s20, 0
        %s180 = smul.addr %s179, 8
        %s181 = smul.addr %s180, 8
        %s182 = scalar_lea.vmem %s3, %s181
      $region24: #{_upconv3d_forward.1} parent=11 // pred_fallthru
        _
    $region12: #{_upconv3d_forward.1} parent=5 // pred_fallthru
      _
    %p183 = scmp.lt.s32.totalorder %s10, 2
    // Predicated region
    $region25: #{_upconv3d_forward.1} parent=5 // pred_check
      %p184 = pneg %p183
    $region26: #{_upconv3d_forward.1} parent=5 // pred_check_branch
      %186 = sbr.rel (%p184) target = $region28
    $region27: #{_upconv3d_forward.1} parent=5 // pred_region
      // Predicated region
      $region29: #{_upconv3d_forward.1} parent=27 // pred_check
        %p187 = pneg %p42
      $region30: #{_upconv3d_forward.1} parent=27 // pred_check_branch
        %189 = sbr.rel (%p187) target = $region32
      $region31: #{_upconv3d_forward.1} parent=27 // pred_region
        %p190 = scmp.lt.s32.totalorder %s17, 1
        %s191 = scalar_select %p190, %s17, 1
        %s192 = smul.addr %s191, 6
        %s193 = smul.addr %s192, 2
        %s194 = scalar_lea.vmem %s0, %s193
      $region32: #{_upconv3d_forward.1} parent=27 // pred_fallthru
        _
    $region28: #{_upconv3d_forward.1} parent=5 // pred_fallthru
      _
    %p195 = scmp.le.s32.totalorder 1, %s10
    %p196 = scmp.lt.s32.totalorder %s10, 3
    %p197 = pnand %p195, %p196
    %p198 = pneg %p197
    // Predicated region
    $region33: #{_upconv3d_forward.1} parent=5 // pred_check
      _
    $region34: #{_upconv3d_forward.1} parent=5 // pred_check_branch
      %200 = sbr.rel (%p197) target = $region36
    $region35: #{_upconv3d_forward.1} parent=5 // pred_region
      %s201 = ssub.s32 %s10, 1
      %p202 = scmp.lt.s32.totalorder %s19, 1
      %s203 = scalar_select %p202, %s19, 1
      %s204 = smul.addr %s203, 6
      %s205 = smul.addr %s204, 2
      %s206 = scalar_lea.vmem %s0, %s205
      %p207 = pneg %p48
      %p208 = pneg %p45
      %p209 = pneg %p69
      %p210 = pneg %p66
      %p211 = scmp.lt.s32.totalorder %s20, 0
      %s212 = scalar_select %p211, %s20, 0
      %s213 = smul.addr %s212, 8
      %s214 = smul.addr %s213, 4
      %s215 = scalar_lea.vmem %s2, %s214
      %p216 = pneg %p95
      %p217 = pneg %p92
      %p218 = scmp.lt.s32.totalorder %s20, 0
      %s219 = scalar_select %p218, %s20, 0
      %s220 = smul.addr %s219, 8
      %s221 = smul.addr %s220, 8
      %s222 = scalar_lea.vmem %s3, %s221
      %p223 = pneg %p121
      %p224 = pneg %p118
      %p225 = pneg %p149
      %p226 = pneg %p146
      %p227 = scmp.lt.s32.totalorder %s19, 1
      %s228 = scalar_select %p227, %s19, 1
      %p229 = scmp.lt.s32.totalorder %s20, 0
      %s230 = scalar_select %p229, %s20, 0
      %s231 = smul.addr %s230, 32
      %s232 = smul.addr %s228, 32
      %s233 = sadd.s32 %s231, %s232
      %s234 = smul.addr %s233, 4
      %s235 = scalar_lea.vmem %s4, %s234
      %p236 = scmp.lt.s32.totalorder %s19, 1
      %s237 = scalar_select %p236, %s19, 1
      %s238 = smul.addr %s237, 6
      %s239 = smul.addr %s238, 2
      %s240 = scalar_lea.vmem %s0, %s239
      %p241 = scmp.lt.s32.totalorder %s20, 0
      %s242 = scalar_select %p241, %s20, 0
      %s243 = smul.addr %s242, 8
      %s244 = smul.addr %s243, 4
      %s245 = scalar_lea.vmem %s2, %s244
      %p246 = scmp.lt.s32.totalorder %s20, 0
      %s247 = scalar_select %p246, %s20, 0
      %s248 = smul.addr %s247, 8
      %s249 = smul.addr %s248, 8
      %s250 = scalar_lea.vmem %s3, %s249
      %p251 = scmp.lt.s32.totalorder %s19, 1
      %s252 = scalar_select %p251, %s19, 1
      %p253 = scmp.lt.s32.totalorder %s20, 0
      %s254 = scalar_select %p253, %s20, 0
      %s255 = smul.addr %s254, 32
      %s256 = smul.addr %s252, 32
      %s257 = sadd.s32 %s255, %s256
      %s258 = smul.addr %s257, 4
      %s259 = scalar_lea.vmem %s4, %s258
      %v261 = vld [vmem:[%s240] sm:$0xff]
      %v262 = vld [vmem:[%s1] sm:$0x11]
      %v263 = vld [vmem:[%s1 + $0x8] sm:$0x11]
      %v266 = vunpack.c.l.b16 %v262
      %v267 = vunpack.c.h.b16 %v262
      %v268 = vunpack.c.l.b16 %v263
      %v269 = vunpack.c.h.b16 %v263
      %v270 = vpack.c.b16 %v266, %v266
      %v271 = vpack.c.b16 %v267, %v267
      %v272 = vpack.c.b16 %v268, %v268
      %v273 = vpack.c.b16 %v269, %v269
      %v275 = vpack.i.b16 %v270, %v270
      %v277 = vlaneseq
      %v278 = vshrl.u32 %v277, 7
      %v279 = vsub.s32 0, %v278
      %v280 = vrot.slane %v275, %v279
      %v282 = vpack.i.b16 %v271, %v271
      %v284 = vlaneseq
      %v285 = vshrl.u32 %v284, 7
      %v286 = vsub.s32 0, %v285
      %v287 = vrot.slane %v282, %v286
      %v289 = vpack.i.b16 %v272, %v272
      %v291 = vlaneseq
      %v292 = vshrl.u32 %v291, 7
      %v293 = vsub.s32 0, %v292
      %v294 = vrot.slane %v289, %v293
      %v296 = vpack.i.b16 %v273, %v273
      %v298 = vlaneseq
      %v299 = vshrl.u32 %v298, 7
      %v300 = vsub.s32 0, %v299
      %v301 = vrot.slane %v296, %v300
      %v306 = vcombine.low %v280, %v287
      %v307 = vcombine.low %v294, %v301
      %v309 = vunpack.c.l.s4 1983009808
      %v310 = vunpack.c.0.s8 %v309
      %v311 = vlaneseq
      %v312 = vshrl.u32 %v311, 7
      %v313 = vsub.s32 %v310, %v312
      %v314 = vrot.slane %v306, %v313
      %v316 = vunpack.c.l.s4 1983009808
      %v317 = vunpack.c.0.s8 %v316
      %v318 = vlaneseq
      %v319 = vshrl.u32 %v318, 7
      %v320 = vsub.s32 %v317, %v319
      %v321 = vrot.slane %v307, %v320
      %v322 = vcombine.low %v314, %v321
      %v324 = vmul.bf16 %v261, %v322
      %v326 = vcombine.high %v324, %v324
      %v328 = vunpack.c.l.s4 1983009808
      %v329 = vunpack.c.0.s8 %v328
      %v330 = vlaneseq
      %v331 = vshrl.u32 %v330, 7
      %v332 = vsub.s32 %v329, %v331
      %v333 = vrot.slane %v324, %v332
      %v335 = vunpack.c.l.s4 1983009808
      %v336 = vunpack.c.0.s8 %v335
      %v337 = vlaneseq
      %v338 = vshrl.u32 %v337, 7
      %v339 = vsub.s32 %v336, %v338
      %v340 = vrot.slane %v326, %v339
      %v341 = vcombine.high %v333, %v333
      %v342 = vcombine.high %v340, %v340
      %347 = vst [vmem:[#allocation2] sm:$0x3] %v333
      %348 = vst [vmem:[#allocation2 + $0x8] sm:$0x3] %v341
      %349 = vst [vmem:[#allocation2 + $0x10] sm:$0x3] %v340
      %350 = vst [vmem:[#allocation2 + $0x18] sm:$0x3] %v342
      %v351 = vld [vmem:[%s240] sm:$0xff]
      %v352 = vld [vmem:[%s240 + $0x8] sm:$0x3]
      %v353 = vld [vmem:[%s1] sm:$0x11]
      %v354 = vld [vmem:[%s1 + $0x8] sm:$0x11]
      %v357 = vunpack.c.l.b16 %v353
      %v358 = vunpack.c.h.b16 %v353
      %v359 = vunpack.c.l.b16 %v354
      %v360 = vunpack.c.h.b16 %v354
      %v361 = vpack.c.b16 %v357, %v357
      %v362 = vpack.c.b16 %v358, %v358
      %v363 = vpack.c.b16 %v359, %v359
      %v364 = vpack.c.b16 %v360, %v360
      %v366 = vshrl.u32 %v361, 16
      %v367 = vpack.i.b16 %v366, %v366
      %v369 = vlaneseq
      %v370 = vshrl.u32 %v369, 7
      %v371 = vsub.s32 0, %v370
      %v372 = vrot.slane %v367, %v371
      %v374 = vshrl.u32 %v362, 16
      %v375 = vpack.i.b16 %v374, %v374
      %v377 = vlaneseq
      %v378 = vshrl.u32 %v377, 7
      %v379 = vsub.s32 0, %v378
      %v380 = vrot.slane %v375, %v379
      %v382 = vshrl.u32 %v363, 16
      %v383 = vpack.i.b16 %v382, %v382
      %v385 = vlaneseq
      %v386 = vshrl.u32 %v385, 7
      %v387 = vsub.s32 0, %v386
      %v388 = vrot.slane %v383, %v387
      %v390 = vshrl.u32 %v364, 16
      %v391 = vpack.i.b16 %v390, %v390
      %v393 = vlaneseq
      %v394 = vshrl.u32 %v393, 7
      %v395 = vsub.s32 0, %v394
      %v396 = vrot.slane %v391, %v395
      %v401 = vcombine.low %v372, %v380
      %v402 = vcombine.low %v388, %v396
      %v404 = vunpack.c.l.s4 1983009808
      %v405 = vunpack.c.0.s8 %v404
      %v406 = vlaneseq
      %v407 = vshrl.u32 %v406, 7
      %v408 = vsub.s32 %v405, %v407
      %v409 = vrot.slane %v401, %v408
      %v411 = vunpack.c.l.s4 1983009808
      %v412 = vunpack.c.0.s8 %v411
      %v413 = vlaneseq
      %v414 = vshrl.u32 %v413, 7
      %v415 = vsub.s32 %v412, %v414
      %v416 = vrot.slane %v402, %v415
      %v417 = vcombine.low %v409, %v416
      %418 = vrot.lane.b32.xlu0 %v417, 1
      %v419 = vpop.permute.xlu0 %418
      %v420 = vrot.slane %v419, 6
      %vm421 = vcmask 7168
      %v422 = vsel %vm421, %v420, %v419
      %v425 = vmul.bf16 %v351, %v422
      %v426 = vmul.bf16 %v352, %v420
      %v429 = vcombine.low %v425, %v425
      %v431 = vunpack.c.l.s4 1983009808
      %v432 = vunpack.c.0.s8 %v431
      %v433 = vlaneseq
      %v434 = vshrl.u32 %v433, 7
      %v435 = vsub.s32 %v432, %v434
      %v436 = vrot.slane %v429, %v435
      %v438 = vunpack.c.l.s4 1983009808
      %v439 = vunpack.c.0.s8 %v438
      %v440 = vlaneseq
      %v441 = vshrl.u32 %v440, 7
      %v442 = vsub.s32 %v439, %v441
      %v443 = vrot.slane %v425, %v442
      %v444 = vcombine.high %v436, %v436
      %v445 = vcombine.high %v443, %v443
      %v446 = vcombine.low %v426, %v426
      %v448 = vunpack.c.l.s4 1983009808
      %v449 = vunpack.c.0.s8 %v448
      %v450 = vlaneseq
      %v451 = vshrl.u32 %v450, 7
      %v452 = vsub.s32 %v449, %v451
      %v453 = vrot.slane %v446, %v452
      %454 = vrot.lane.b32.xlu0 %v436, 127
      %v455 = vpop.permute.xlu0 %454
      %456 = vrot.lane.b32.xlu0 %v444, 127
      %v457 = vpop.permute.xlu0 %456
      %458 = vrot.lane.b32.xlu0 %v443, 127
      %v459 = vpop.permute.xlu0 %458
      %460 = vrot.lane.b32.xlu0 %v445, 127
      %v461 = vpop.permute.xlu0 %460
      %462 = vrot.lane.b32.xlu0 %v453, 127
      %v463 = vpop.permute.xlu0 %462
      %vm464 = vcmask 1039360
      %v465 = vsel %vm464, %v455, %v457
      %v466 = vsel %vm464, %v457, %v459
      %v467 = vsel %vm464, %v459, %v461
      %v468 = vsel %vm464, %v461, %v463
      %473 = vst [vmem:[#allocation2] sm:$0xc] %v465
      %474 = vst [vmem:[#allocation2 + $0x8] sm:$0xc] %v466
      %475 = vst [vmem:[#allocation2 + $0x10] sm:$0xc] %v467
      %476 = vst [vmem:[#allocation2 + $0x18] sm:$0xc] %v468
      %v477 = vld [vmem:[%s240] sm:$0xff]
      %v478 = vld [vmem:[%s240 + $0x8] sm:$0x3]
      %v479 = vld [vmem:[%s1] sm:$0x22]
      %v480 = vld [vmem:[%s1 + $0x8] sm:$0x22]
      %v483 = vunpack.c.l.b16 %v479
      %v484 = vunpack.c.h.b16 %v479
      %v485 = vunpack.c.l.b16 %v480
      %v486 = vunpack.c.h.b16 %v480
      %v487 = vpack.c.b16 %v483, %v483
      %v488 = vpack.c.b16 %v484, %v484
      %v489 = vpack.c.b16 %v485, %v485
      %v490 = vpack.c.b16 %v486, %v486
      %v492 = vpack.i.b16 %v487, %v487
      %v494 = vlaneseq
      %v495 = vshrl.u32 %v494, 7
      %v496 = vsub.s32 1, %v495
      %v497 = vrot.slane %v492, %v496
      %v499 = vpack.i.b16 %v488, %v488
      %v501 = vlaneseq
      %v502 = vshrl.u32 %v501, 7
      %v503 = vsub.s32 1, %v502
      %v504 = vrot.slane %v499, %v503
      %v506 = vpack.i.b16 %v489, %v489
      %v508 = vlaneseq
      %v509 = vshrl.u32 %v508, 7
      %v510 = vsub.s32 1, %v509
      %v511 = vrot.slane %v506, %v510
      %v513 = vpack.i.b16 %v490, %v490
      %v515 = vlaneseq
      %v516 = vshrl.u32 %v515, 7
      %v517 = vsub.s32 1, %v516
      %v518 = vrot.slane %v513, %v517
      %v523 = vcombine.low %v497, %v504
      %v524 = vcombine.low %v511, %v518
      %v526 = vunpack.c.l.s4 1983009808
      %v527 = vunpack.c.0.s8 %v526
      %v528 = vlaneseq
      %v529 = vshrl.u32 %v528, 7
      %v530 = vsub.s32 %v527, %v529
      %v531 = vrot.slane %v523, %v530
      %v533 = vunpack.c.l.s4 1983009808
      %v534 = vunpack.c.0.s8 %v533
      %v535 = vlaneseq
      %v536 = vshrl.u32 %v535, 7
      %v537 = vsub.s32 %v534, %v536
      %v538 = vrot.slane %v524, %v537
      %v539 = vcombine.low %v531, %v538
      %540 = vrot.lane.b32.xlu0 %v539, 2
      %v541 = vpop.permute.xlu0 %540
      %v542 = vrot.slane %v541, 6
      %vm543 = vcmask 15360
      %v544 = vsel %vm543, %v542, %v541
      %v547 = vmul.bf16 %v477, %v544
      %v548 = vmul.bf16 %v478, %v542
      %v551 = vcombine.high %v547, %v547
      %v553 = vunpack.c.l.s4 1983009808
      %v554 = vunpack.c.0.s8 %v553
      %v555 = vlaneseq
      %v556 = vshrl.u32 %v555, 7
      %v557 = vsub.s32 %v554, %v556
      %v558 = vrot.slane %v547, %v557
      %v560 = vunpack.c.l.s4 1983009808
      %v561 = vunpack.c.0.s8 %v560
      %v562 = vlaneseq
      %v563 = vshrl.u32 %v562, 7
      %v564 = vsub.s32 %v561, %v563
      %v565 = vrot.slane %v551, %v564
      %v566 = vcombine.low %v558, %v558
      %v567 = vcombine.low %v565, %v565
      %v569 = vunpack.c.l.s4 1983009808
      %v570 = vunpack.c.0.s8 %v569
      %v571 = vlaneseq
      %v572 = vshrl.u32 %v571, 7
      %v573 = vsub.s32 %v570, %v572
      %v574 = vrot.slane %v548, %v573
      %v575 = vcombine.low %v574, %v574
      %576 = vrot.lane.b32.xlu0 %v566, 126
      %v577 = vpop.permute.xlu0 %576
      %578 = vrot.lane.b32.xlu0 %v558, 126
      %v579 = vpop.permute.xlu0 %578
      %580 = vrot.lane.b32.xlu0 %v567, 126
      %v581 = vpop.permute.xlu0 %580
      %582 = vrot.lane.b32.xlu0 %v565, 126
      %v583 = vpop.permute.xlu0 %582
      %584 = vrot.lane.b32.xlu0 %v575, 126
      %v585 = vpop.permute.xlu0 %584
      %vm586 = vcmask 1031168
      %v587 = vsel %vm586, %v577, %v579
      %v588 = vsel %vm586, %v579, %v581
      %v589 = vsel %vm586, %v581, %v583
      %v590 = vsel %vm586, %v583, %v585
      %595 = vst [vmem:[#allocation2] sm:$0x30] %v587
      %596 = vst [vmem:[#allocation2 + $0x8] sm:$0x30] %v588
      %597 = vst [vmem:[#allocation2 + $0x10] sm:$0x30] %v589
      %598 = vst [vmem:[#allocation2 + $0x18] sm:$0x30] %v590
      %v599 = vld [vmem:[%s240] sm:$0xff]
      %v600 = vld [vmem:[%s240 + $0x8] sm:$0x3]
      %v601 = vld [vmem:[%s1] sm:$0x22]
      %v602 = vld [vmem:[%s1 + $0x8] sm:$0x22]
      %v605 = vunpack.c.l.b16 %v601
      %v606 = vunpack.c.h.b16 %v601
      %v607 = vunpack.c.l.b16 %v602
      %v608 = vunpack.c.h.b16 %v602
      %v609 = vpack.c.b16 %v605, %v605
      %v610 = vpack.c.b16 %v606, %v606
      %v611 = vpack.c.b16 %v607, %v607
      %v612 = vpack.c.b16 %v608, %v608
      %v614 = vshrl.u32 %v609, 16
      %v615 = vpack.i.b16 %v614, %v614
      %v617 = vlaneseq
      %v618 = vshrl.u32 %v617, 7
      %v619 = vsub.s32 1, %v618
      %v620 = vrot.slane %v615, %v619
      %v622 = vshrl.u32 %v610, 16
      %v623 = vpack.i.b16 %v622, %v622
      %v625 = vlaneseq
      %v626 = vshrl.u32 %v625, 7
      %v627 = vsub.s32 1, %v626
      %v628 = vrot.slane %v623, %v627
      %v630 = vshrl.u32 %v611, 16
      %v631 = vpack.i.b16 %v630, %v630
      %v633 = vlaneseq
      %v634 = vshrl.u32 %v633, 7
      %v635 = vsub.s32 1, %v634
      %v636 = vrot.slane %v631, %v635
      %v638 = vshrl.u32 %v612, 16
      %v639 = vpack.i.b16 %v638, %v638
      %v641 = vlaneseq
      %v642 = vshrl.u32 %v641, 7
      %v643 = vsub.s32 1, %v642
      %v644 = vrot.slane %v639, %v643
      %v649 = vcombine.low %v620, %v628
      %v650 = vcombine.low %v636, %v644
      %v652 = vunpack.c.l.s4 1983009808
      %v653 = vunpack.c.0.s8 %v652
      %v654 = vlaneseq
      %v655 = vshrl.u32 %v654, 7
      %v656 = vsub.s32 %v653, %v655
      %v657 = vrot.slane %v649, %v656
      %v659 = vunpack.c.l.s4 1983009808
      %v660 = vunpack.c.0.s8 %v659
      %v661 = vlaneseq
      %v662 = vshrl.u32 %v661, 7
      %v663 = vsub.s32 %v660, %v662
      %v664 = vrot.slane %v650, %v663
      %v665 = vcombine.low %v657, %v664
      %666 = vrot.lane.b32.xlu0 %v665, 8
      %v667 = vpop.permute.xlu0 %666
      %v668 = vrot.slane %v667, 6
      %vm669 = vcmask 64512
      %v670 = vsel %vm669, %v668, %v667
      %v673 = vmul.bf16 %v599, %v670
      %v674 = vmul.bf16 %v600, %v668
      %v677 = vcombine.low %v673, %v673
      %v679 = vunpack.c.l.s4 1983009808
      %v680 = vunpack.c.0.s8 %v679
      %v681 = vlaneseq
      %v682 = vshrl.u32 %v681, 7
      %v683 = vsub.s32 %v680, %v682
      %v684 = vrot.slane %v677, %v683
      %v686 = vunpack.c.l.s4 1983009808
      %v687 = vunpack.c.0.s8 %v686
      %v688 = vlaneseq
      %v689 = vshrl.u32 %v688, 7
      %v690 = vsub.s32 %v687, %v689
      %v691 = vrot.slane %v673, %v690
      %v692 = vcombine.low %v684, %v684
      %v693 = vcombine.low %v691, %v691
      %v694 = vcombine.low %v674, %v674
      %v696 = vunpack.c.l.s4 1983009808
      %v697 = vunpack.c.0.s8 %v696
      %v698 = vlaneseq
      %v699 = vshrl.u32 %v698, 7
      %v700 = vsub.s32 %v697, %v699
      %v701 = vrot.slane %v694, %v700
      %v702 = vcombine.low %v701, %v701
      %703 = vrot.lane.b32.xlu0 %v692, 120
      %v704 = vpop.permute.xlu0 %703
      %705 = vrot.lane.b32.xlu0 %v684, 120
      %v706 = vpop.permute.xlu0 %705
      %707 = vrot.lane.b32.xlu0 %v693, 120
      %v708 = vpop.permute.xlu0 %707
      %709 = vrot.lane.b32.xlu0 %v691, 120
      %v710 = vpop.permute.xlu0 %709
      %711 = vrot.lane.b32.xlu0 %v702, 120
      %v712 = vpop.permute.xlu0 %711
      %vm713 = vcmask 982016
      %v714 = vsel %vm713, %v704, %v706
      %v715 = vsel %vm713, %v706, %v708
      %v716 = vsel %vm713, %v708, %v710
      %v717 = vsel %vm713, %v710, %v712
      %722 = vst [vmem:[#allocation2] sm:$0xc0] %v714
      %723 = vst [vmem:[#allocation2 + $0x8] sm:$0xc0] %v715
      %724 = vst [vmem:[#allocation2 + $0x10] sm:$0xc0] %v716
      %725 = vst [vmem:[#allocation2 + $0x18] sm:$0xc0] %v717
      %v726 = vld [vmem:[%s240] sm:$0xff]
      %v727 = vld [vmem:[%s240 + $0x8] sm:$0x3]
      %v728 = vld [vmem:[%s1] sm:$0x44]
      %v729 = vld [vmem:[%s1 + $0x8] sm:$0x44]
      %v732 = vunpack.c.l.b16 %v728
      %v733 = vunpack.c.h.b16 %v728
      %v734 = vunpack.c.l.b16 %v729
      %v735 = vunpack.c.h.b16 %v729
      %v736 = vpack.c.b16 %v732, %v732
      %v737 = vpack.c.b16 %v733, %v733
      %v738 = vpack.c.b16 %v734, %v734
      %v739 = vpack.c.b16 %v735, %v735
      %v741 = vpack.i.b16 %v736, %v736
      %v743 = vlaneseq
      %v744 = vshrl.u32 %v743, 7
      %v745 = vsub.s32 2, %v744
      %v746 = vrot.slane %v741, %v745
      %v748 = vpack.i.b16 %v737, %v737
      %v750 = vlaneseq
      %v751 = vshrl.u32 %v750, 7
      %v752 = vsub.s32 2, %v751
      %v753 = vrot.slane %v748, %v752
      %v755 = vpack.i.b16 %v738, %v738
      %v757 = vlaneseq
      %v758 = vshrl.u32 %v757, 7
      %v759 = vsub.s32 2, %v758
      %v760 = vrot.slane %v755, %v759
      %v762 = vpack.i.b16 %v739, %v739
      %v764 = vlaneseq
      %v765 = vshrl.u32 %v764, 7
      %v766 = vsub.s32 2, %v765
      %v767 = vrot.slane %v762, %v766
      %v772 = vcombine.low %v746, %v753
      %v773 = vcombine.low %v760, %v767
      %v775 = vunpack.c.l.s4 1983009808
      %v776 = vunpack.c.0.s8 %v775
      %v777 = vlaneseq
      %v778 = vshrl.u32 %v777, 7
      %v779 = vsub.s32 %v776, %v778
      %v780 = vrot.slane %v772, %v779
      %v782 = vunpack.c.l.s4 1983009808
      %v783 = vunpack.c.0.s8 %v782
      %v784 = vlaneseq
      %v785 = vshrl.u32 %v784, 7
      %v786 = vsub.s32 %v783, %v785
      %v787 = vrot.slane %v773, %v786
      %v788 = vcombine.low %v780, %v787
      %789 = vrot.lane.b32.xlu0 %v788, 9
      %v790 = vpop.permute.xlu0 %789
      %v791 = vrot.slane %v790, 6
      %vm792 = vcmask 72704
      %v793 = vsel %vm792, %v791, %v790
      %v796 = vmul.bf16 %v726, %v793
      %v797 = vmul.bf16 %v727, %v791
      %v800 = vcombine.high %v796, %v796
      %v802 = vunpack.c.l.s4 1983009808
      %v803 = vunpack.c.0.s8 %v802
      %v804 = vlaneseq
      %v805 = vshrl.u32 %v804, 7
      %v806 = vsub.s32 %v803, %v805
      %v807 = vrot.slane %v796, %v806
      %v809 = vunpack.c.l.s4 1983009808
      %v810 = vunpack.c.0.s8 %v809
      %v811 = vlaneseq
      %v812 = vshrl.u32 %v811, 7
      %v813 = vsub.s32 %v810, %v812
      %v814 = vrot.slane %v800, %v813
      %v815 = vcombine.high %v807, %v807
      %v816 = vcombine.high %v814, %v814
      %v818 = vunpack.c.l.s4 1983009808
      %v819 = vunpack.c.0.s8 %v818
      %v820 = vlaneseq
      %v821 = vshrl.u32 %v820, 7
      %v822 = vsub.s32 %v819, %v821
      %v823 = vrot.slane %v797, %v822
      %824 = vrot.lane.b32.xlu0 %v807, 119
      %v825 = vpop.permute.xlu0 %824
      %826 = vrot.lane.b32.xlu0 %v815, 119
      %v827 = vpop.permute.xlu0 %826
      %828 = vrot.lane.b32.xlu0 %v814, 119
      %v829 = vpop.permute.xlu0 %828
      %830 = vrot.lane.b32.xlu0 %v816, 119
      %v831 = vpop.permute.xlu0 %830
      %832 = vrot.lane.b32.xlu0 %v823, 119
      %v833 = vpop.permute.xlu0 %832
      %vm834 = vcmask 973824
      %v835 = vsel %vm834, %v825, %v827
      %v836 = vsel %vm834, %v827, %v829
      %v837 = vsel %vm834, %v829, %v831
      %v838 = vsel %vm834, %v831, %v833
      %843 = vst [vmem:[#allocation2 + $0x20] sm:$0x3] %v835
      %844 = vst [vmem:[#allocation2 + $0x28] sm:$0x3] %v836
      %845 = vst [vmem:[#allocation2 + $0x30] sm:$0x3] %v837
      %846 = vst [vmem:[#allocation2 + $0x38] sm:$0x3] %v838
      %v847 = vld [vmem:[%s240] sm:$0xff]
      %v848 = vld [vmem:[%s240 + $0x8] sm:$0x3]
      %v849 = vld [vmem:[%s1] sm:$0x44]
      %v850 = vld [vmem:[%s1 + $0x8] sm:$0x44]
      %v853 = vunpack.c.l.b16 %v849
      %v854 = vunpack.c.h.b16 %v849
      %v855 = vunpack.c.l.b16 %v850
      %v856 = vunpack.c.h.b16 %v850
      %v857 = vpack.c.b16 %v853, %v853
      %v858 = vpack.c.b16 %v854, %v854
      %v859 = vpack.c.b16 %v855, %v855
      %v860 = vpack.c.b16 %v856, %v856
      %v862 = vshrl.u32 %v857, 16
      %v863 = vpack.i.b16 %v862, %v862
      %v865 = vlaneseq
      %v866 = vshrl.u32 %v865, 7
      %v867 = vsub.s32 2, %v866
      %v868 = vrot.slane %v863, %v867
      %v870 = vshrl.u32 %v858, 16
      %v871 = vpack.i.b16 %v870, %v870
      %v873 = vlaneseq
      %v874 = vshrl.u32 %v873, 7
      %v875 = vsub.s32 2, %v874
      %v876 = vrot.slane %v871, %v875
      %v878 = vshrl.u32 %v859, 16
      %v879 = vpack.i.b16 %v878, %v878
      %v881 = vlaneseq
      %v882 = vshrl.u32 %v881, 7
      %v883 = vsub.s32 2, %v882
      %v884 = vrot.slane %v879, %v883
      %v886 = vshrl.u32 %v860, 16
      %v887 = vpack.i.b16 %v886, %v886
      %v889 = vlaneseq
      %v890 = vshrl.u32 %v889, 7
      %v891 = vsub.s32 2, %v890
      %v892 = vrot.slane %v887, %v891
      %v897 = vcombine.low %v868, %v876
      %v898 = vcombine.low %v884, %v892
      %v900 = vunpack.c.l.s4 1983009808
      %v901 = vunpack.c.0.s8 %v900
      %v902 = vlaneseq
      %v903 = vshrl.u32 %v902, 7
      %v904 = vsub.s32 %v901, %v903
      %v905 = vrot.slane %v897, %v904
      %v907 = vunpack.c.l.s4 1983009808
      %v908 = vunpack.c.0.s8 %v907
      %v909 = vlaneseq
      %v910 = vshrl.u32 %v909, 7
      %v911 = vsub.s32 %v908, %v910
      %v912 = vrot.slane %v898, %v911
      %v913 = vcombine.low %v905, %v912
      %914 = vrot.lane.b32.xlu0 %v913, 10
      %v915 = vpop.permute.xlu0 %914
      %v916 = vrot.slane %v915, 6
      %vm917 = vcmask 80896
      %v918 = vsel %vm917, %v916, %v915
      %v921 = vmul.bf16 %v847, %v918
      %v922 = vmul.bf16 %v848, %v916
      %v925 = vcombine.low %v921, %v921
      %v927 = vunpack.c.l.s4 1983009808
      %v928 = vunpack.c.0.s8 %v927
      %v929 = vlaneseq
      %v930 = vshrl.u32 %v929, 7
      %v931 = vsub.s32 %v928, %v930
      %v932 = vrot.slane %v925, %v931
      %v934 = vunpack.c.l.s4 1983009808
      %v935 = vunpack.c.0.s8 %v934
      %v936 = vlaneseq
      %v937 = vshrl.u32 %v936, 7
      %v938 = vsub.s32 %v935, %v937
      %v939 = vrot.slane %v921, %v938
      %v940 = vcombine.high %v932, %v932
      %v941 = vcombine.high %v939, %v939
      %v942 = vcombine.low %v922, %v922
      %v944 = vunpack.c.l.s4 1983009808
      %v945 = vunpack.c.0.s8 %v944
      %v946 = vlaneseq
      %v947 = vshrl.u32 %v946, 7
      %v948 = vsub.s32 %v945, %v947
      %v949 = vrot.slane %v942, %v948
      %950 = vrot.lane.b32.xlu0 %v932, 118
      %v951 = vpop.permute.xlu0 %950
      %952 = vrot.lane.b32.xlu0 %v940, 118
      %v953 = vpop.permute.xlu0 %952
      %954 = vrot.lane.b32.xlu0 %v939, 118
      %v955 = vpop.permute.xlu0 %954
      %956 = vrot.lane.b32.xlu0 %v941, 118
      %v957 = vpop.permute.xlu0 %956
      %958 = vrot.lane.b32.xlu0 %v949, 118
      %v959 = vpop.permute.xlu0 %958
      %vm960 = vcmask 965632
      %v961 = vsel %vm960, %v951, %v953
      %v962 = vsel %vm960, %v953, %v955
      %v963 = vsel %vm960, %v955, %v957
      %v964 = vsel %vm960, %v957, %v959
      %969 = vst [vmem:[#allocation2 + $0x20] sm:$0xc] %v961
      %970 = vst [vmem:[#allocation2 + $0x28] sm:$0xc] %v962
      %971 = vst [vmem:[#allocation2 + $0x30] sm:$0xc] %v963
      %972 = vst [vmem:[#allocation2 + $0x38] sm:$0xc] %v964
      %v973 = vld [vmem:[%s240] sm:$0xff]
      %v974 = vld [vmem:[%s240 + $0x8] sm:$0x3]
      %v975 = vld [vmem:[%s1] sm:$0x88]
      %v976 = vld [vmem:[%s1 + $0x8] sm:$0x88]
      %v979 = vunpack.c.l.b16 %v975
      %v980 = vunpack.c.h.b16 %v975
      %v981 = vunpack.c.l.b16 %v976
      %v982 = vunpack.c.h.b16 %v976
      %v983 = vpack.c.b16 %v979, %v979
      %v984 = vpack.c.b16 %v980, %v980
      %v985 = vpack.c.b16 %v981, %v981
      %v986 = vpack.c.b16 %v982, %v982
      %v988 = vpack.i.b16 %v983, %v983
      %v990 = vlaneseq
      %v991 = vshrl.u32 %v990, 7
      %v992 = vsub.s32 3, %v991
      %v993 = vrot.slane %v988, %v992
      %v995 = vpack.i.b16 %v984, %v984
      %v997 = vlaneseq
      %v998 = vshrl.u32 %v997, 7
      %v999 = vsub.s32 3, %v998
      %v1000 = vrot.slane %v995, %v999
      %v1002 = vpack.i.b16 %v985, %v985
      %v1004 = vlaneseq
      %v1005 = vshrl.u32 %v1004, 7
      %v1006 = vsub.s32 3, %v1005
      %v1007 = vrot.slane %v1002, %v1006
      %v1009 = vpack.i.b16 %v986, %v986
      %v1011 = vlaneseq
      %v1012 = vshrl.u32 %v1011, 7
      %v1013 = vsub.s32 3, %v1012
      %v1014 = vrot.slane %v1009, %v1013
      %v1019 = vcombine.low %v993, %v1000
      %v1020 = vcombine.low %v1007, %v1014
      %v1022 = vunpack.c.l.s4 1983009808
      %v1023 = vunpack.c.0.s8 %v1022
      %v1024 = vlaneseq
      %v1025 = vshrl.u32 %v1024, 7
      %v1026 = vsub.s32 %v1023, %v1025
      %v1027 = vrot.slane %v1019, %v1026
      %v1029 = vunpack.c.l.s4 1983009808
      %v1030 = vunpack.c.0.s8 %v1029
      %v1031 = vlaneseq
      %v1032 = vshrl.u32 %v1031, 7
      %v1033 = vsub.s32 %v1030, %v1032
      %v1034 = vrot.slane %v1020, %v1033
      %v1035 = vcombine.low %v1027, %v1034
      %1036 = vrot.lane.b32.xlu0 %v1035, 16
      %v1037 = vpop.permute.xlu0 %1036
      %v1038 = vrot.slane %v1037, 6
      %vm1039 = vcmask 130048
      %v1040 = vsel %vm1039, %v1038, %v1037
      %v1043 = vmul.bf16 %v973, %v1040
      %v1044 = vmul.bf16 %v974, %v1038
      %v1047 = vcombine.high %v1043, %v1043
      %v1049 = vunpack.c.l.s4 1983009808
      %v1050 = vunpack.c.0.s8 %v1049
      %v1051 = vlaneseq
      %v1052 = vshrl.u32 %v1051, 7
      %v1053 = vsub.s32 %v1050, %v1052
      %v1054 = vrot.slane %v1043, %v1053
      %v1056 = vunpack.c.l.s4 1983009808
      %v1057 = vunpack.c.0.s8 %v1056
      %v1058 = vlaneseq
      %v1059 = vshrl.u32 %v1058, 7
      %v1060 = vsub.s32 %v1057, %v1059
      %v1061 = vrot.slane %v1047, %v1060
      %v1062 = vcombine.low %v1054, %v1054
      %v1063 = vcombine.low %v1061, %v1061
      %v1065 = vunpack.c.l.s4 1983009808
      %v1066 = vunpack.c.0.s8 %v1065
      %v1067 = vlaneseq
      %v1068 = vshrl.u32 %v1067, 7
      %v1069 = vsub.s32 %v1066, %v1068
      %v1070 = vrot.slane %v1044, %v1069
      %v1071 = vcombine.low %v1070, %v1070
      %1072 = vrot.lane.b32.xlu0 %v1062, 112
      %v1073 = vpop.permute.xlu0 %1072
      %1074 = vrot.lane.b32.xlu0 %v1054, 112
      %v1075 = vpop.permute.xlu0 %1074
      %1076 = vrot.lane.b32.xlu0 %v1063, 112
      %v1077 = vpop.permute.xlu0 %1076
      %1078 = vrot.lane.b32.xlu0 %v1061, 112
      %v1079 = vpop.permute.xlu0 %1078
      %1080 = vrot.lane.b32.xlu0 %v1071, 112
      %v1081 = vpop.permute.xlu0 %1080
      %vm1082 = vcmask 916480
      %v1083 = vsel %vm1082, %v1073, %v1075
      %v1084 = vsel %vm1082, %v1075, %v1077
      %v1085 = vsel %vm1082, %v1077, %v1079
      %v1086 = vsel %vm1082, %v1079, %v1081
      %1091 = vst [vmem:[#allocation2 + $0x20] sm:$0x30] %v1083
      %1092 = vst [vmem:[#allocation2 + $0x28] sm:$0x30] %v1084
      %1093 = vst [vmem:[#allocation2 + $0x30] sm:$0x30] %v1085
      %1094 = vst [vmem:[#allocation2 + $0x38] sm:$0x30] %v1086
      %v1095 = vld [vmem:[%s240] sm:$0xff]
      %v1096 = vld [vmem:[%s240 + $0x8] sm:$0x3]
      %v1097 = vld [vmem:[%s1] sm:$0x88]
      %v1098 = vld [vmem:[%s1 + $0x8] sm:$0x88]
      %v1101 = vunpack.c.l.b16 %v1097
      %v1102 = vunpack.c.h.b16 %v1097
      %v1103 = vunpack.c.l.b16 %v1098
      %v1104 = vunpack.c.h.b16 %v1098
      %v1105 = vpack.c.b16 %v1101, %v1101
      %v1106 = vpack.c.b16 %v1102, %v1102
      %v1107 = vpack.c.b16 %v1103, %v1103
      %v1108 = vpack.c.b16 %v1104, %v1104
      %v1110 = vshrl.u32 %v1105, 16
      %v1111 = vpack.i.b16 %v1110, %v1110
      %v1113 = vlaneseq
      %v1114 = vshrl.u32 %v1113, 7
      %v1115 = vsub.s32 3, %v1114
      %v1116 = vrot.slane %v1111, %v1115
      %v1118 = vshrl.u32 %v1106, 16
      %v1119 = vpack.i.b16 %v1118, %v1118
      %v1121 = vlaneseq
      %v1122 = vshrl.u32 %v1121, 7
      %v1123 = vsub.s32 3, %v1122
      %v1124 = vrot.slane %v1119, %v1123
      %v1126 = vshrl.u32 %v1107, 16
      %v1127 = vpack.i.b16 %v1126, %v1126
      %v1129 = vlaneseq
      %v1130 = vshrl.u32 %v1129, 7
      %v1131 = vsub.s32 3, %v1130
      %v1132 = vrot.slane %v1127, %v1131
      %v1134 = vshrl.u32 %v1108, 16
      %v1135 = vpack.i.b16 %v1134, %v1134
      %v1137 = vlaneseq
      %v1138 = vshrl.u32 %v1137, 7
      %v1139 = vsub.s32 3, %v1138
      %v1140 = vrot.slane %v1135, %v1139
      %v1145 = vcombine.low %v1116, %v1124
      %v1146 = vcombine.low %v1132, %v1140
      %v1148 = vunpack.c.l.s4 1983009808
      %v1149 = vunpack.c.0.s8 %v1148
      %v1150 = vlaneseq
      %v1151 = vshrl.u32 %v1150, 7
      %v1152 = vsub.s32 %v1149, %v1151
      %v1153 = vrot.slane %v1145, %v1152
      %v1155 = vunpack.c.l.s4 1983009808
      %v1156 = vunpack.c.0.s8 %v1155
      %v1157 = vlaneseq
      %v1158 = vshrl.u32 %v1157, 7
      %v1159 = vsub.s32 %v1156, %v1158
      %v1160 = vrot.slane %v1146, %v1159
      %v1161 = vcombine.low %v1153, %v1160
      %1162 = vrot.lane.b32.xlu0 %v1161, 17
      %v1163 = vpop.permute.xlu0 %1162
      %v1164 = vrot.slane %v1163, 6
      %vm1165 = vcmask 138240
      %v1166 = vsel %vm1165, %v1164, %v1163
      %v1169 = vmul.bf16 %v1095, %v1166
      %v1170 = vmul.bf16 %v1096, %v1164
      %v1173 = vcombine.low %v1169, %v1169
      %v1175 = vunpack.c.l.s4 1983009808
      %v1176 = vunpack.c.0.s8 %v1175
      %v1177 = vlaneseq
      %v1178 = vshrl.u32 %v1177, 7
      %v1179 = vsub.s32 %v1176, %v1178
      %v1180 = vrot.slane %v1173, %v1179
      %v1182 = vunpack.c.l.s4 1983009808
      %v1183 = vunpack.c.0.s8 %v1182
      %v1184 = vlaneseq
      %v1185 = vshrl.u32 %v1184, 7
      %v1186 = vsub.s32 %v1183, %v1185
      %v1187 = vrot.slane %v1169, %v1186
      %v1188 = vcombine.low %v1180, %v1180
      %v1189 = vcombine.low %v1187, %v1187
      %v1190 = vcombine.low %v1170, %v1170
      %v1192 = vunpack.c.l.s4 1983009808
      %v1193 = vunpack.c.0.s8 %v1192
      %v1194 = vlaneseq
      %v1195 = vshrl.u32 %v1194, 7
      %v1196 = vsub.s32 %v1193, %v1195
      %v1197 = vrot.slane %v1190, %v1196
      %v1198 = vcombine.low %v1197, %v1197
      %1199 = vrot.lane.b32.xlu0 %v1188, 111
      %v1200 = vpop.permute.xlu0 %1199
      %1201 = vrot.lane.b32.xlu0 %v1180, 111
      %v1202 = vpop.permute.xlu0 %1201
      %1203 = vrot.lane.b32.xlu0 %v1189, 111
      %v1204 = vpop.permute.xlu0 %1203
      %1205 = vrot.lane.b32.xlu0 %v1187, 111
      %v1206 = vpop.permute.xlu0 %1205
      %1207 = vrot.lane.b32.xlu0 %v1198, 111
      %v1208 = vpop.permute.xlu0 %1207
      %vm1209 = vcmask 908288
      %v1210 = vsel %vm1209, %v1200, %v1202
      %v1211 = vsel %vm1209, %v1202, %v1204
      %v1212 = vsel %vm1209, %v1204, %v1206
      %v1213 = vsel %vm1209, %v1206, %v1208
      %1218 = vst [vmem:[#allocation2 + $0x20] sm:$0xc0] %v1210
      %1219 = vst [vmem:[#allocation2 + $0x28] sm:$0xc0] %v1211
      %1220 = vst [vmem:[#allocation2 + $0x30] sm:$0xc0] %v1212
      %1221 = vst [vmem:[#allocation2 + $0x38] sm:$0xc0] %v1213
      %v1222 = vld [vmem:[%s240] sm:$0xff]
      %v1223 = vld [vmem:[%s240 + $0x8] sm:$0x3]
      %v1224 = vld [vmem:[%s1 + $0x10] sm:$0x11]
      %v1225 = vld [vmem:[%s1 + $0x18] sm:$0x11]
      %v1228 = vunpack.c.l.b16 %v1224
      %v1229 = vunpack.c.h.b16 %v1224
      %v1230 = vunpack.c.l.b16 %v1225
      %v1231 = vunpack.c.h.b16 %v1225
      %v1232 = vpack.c.b16 %v1228, %v1228
      %v1233 = vpack.c.b16 %v1229, %v1229
      %v1234 = vpack.c.b16 %v1230, %v1230
      %v1235 = vpack.c.b16 %v1231, %v1231
      %v1237 = vpack.i.b16 %v1232, %v1232
      %v1239 = vlaneseq
      %v1240 = vshrl.u32 %v1239, 7
      %v1241 = vsub.s32 0, %v1240
      %v1242 = vrot.slane %v1237, %v1241
      %v1244 = vpack.i.b16 %v1233, %v1233
      %v1246 = vlaneseq
      %v1247 = vshrl.u32 %v1246, 7
      %v1248 = vsub.s32 0, %v1247
      %v1249 = vrot.slane %v1244, %v1248
      %v1251 = vpack.i.b16 %v1234, %v1234
      %v1253 = vlaneseq
      %v1254 = vshrl.u32 %v1253, 7
      %v1255 = vsub.s32 0, %v1254
      %v1256 = vrot.slane %v1251, %v1255
      %v1258 = vpack.i.b16 %v1235, %v1235
      %v1260 = vlaneseq
      %v1261 = vshrl.u32 %v1260, 7
      %v1262 = vsub.s32 0, %v1261
      %v1263 = vrot.slane %v1258, %v1262
      %v1268 = vcombine.low %v1242, %v1249
      %v1269 = vcombine.low %v1256, %v1263
      %v1271 = vunpack.c.l.s4 1983009808
      %v1272 = vunpack.c.0.s8 %v1271
      %v1273 = vlaneseq
      %v1274 = vshrl.u32 %v1273, 7
      %v1275 = vsub.s32 %v1272, %v1274
      %v1276 = vrot.slane %v1268, %v1275
      %v1278 = vunpack.c.l.s4 1983009808
      %v1279 = vunpack.c.0.s8 %v1278
      %v1280 = vlaneseq
      %v1281 = vshrl.u32 %v1280, 7
      %v1282 = vsub.s32 %v1279, %v1281
      %v1283 = vrot.slane %v1269, %v1282
      %v1284 = vcombine.low %v1276, %v1283
      %1285 = vrot.lane.b32.xlu0 %v1284, 18
      %v1286 = vpop.permute.xlu0 %1285
      %v1287 = vrot.slane %v1286, 6
      %vm1288 = vcmask 146432
      %v1289 = vsel %vm1288, %v1287, %v1286
      %v1292 = vmul.bf16 %v1222, %v1289
      %v1293 = vmul.bf16 %v1223, %v1287
      %v1296 = vcombine.high %v1292, %v1292
      %v1298 = vunpack.c.l.s4 1983009808
      %v1299 = vunpack.c.0.s8 %v1298
      %v1300 = vlaneseq
      %v1301 = vshrl.u32 %v1300, 7
      %v1302 = vsub.s32 %v1299, %v1301
      %v1303 = vrot.slane %v1292, %v1302
      %v1305 = vunpack.c.l.s4 1983009808
      %v1306 = vunpack.c.0.s8 %v1305
      %v1307 = vlaneseq
      %v1308 = vshrl.u32 %v1307, 7
      %v1309 = vsub.s32 %v1306, %v1308
      %v1310 = vrot.slane %v1296, %v1309
      %v1311 = vcombine.high %v1303, %v1303
      %v1312 = vcombine.high %v1310, %v1310
      %v1314 = vunpack.c.l.s4 1983009808
      %v1315 = vunpack.c.0.s8 %v1314
      %v1316 = vlaneseq
      %v1317 = vshrl.u32 %v1316, 7
      %v1318 = vsub.s32 %v1315, %v1317
      %v1319 = vrot.slane %v1293, %v1318
      %1320 = vrot.lane.b32.xlu0 %v1303, 110
      %v1321 = vpop.permute.xlu0 %1320
      %1322 = vrot.lane.b32.xlu0 %v1311, 110
      %v1323 = vpop.permute.xlu0 %1322
      %1324 = vrot.lane.b32.xlu0 %v1310, 110
      %v1325 = vpop.permute.xlu0 %1324
      %1326 = vrot.lane.b32.xlu0 %v1312, 110
      %v1327 = vpop.permute.xlu0 %1326
      %1328 = vrot.lane.b32.xlu0 %v1319, 110
      %v1329 = vpop.permute.xlu0 %1328
      %vm1330 = vcmask 900096
      %v1331 = vsel %vm1330, %v1321, %v1323
      %v1332 = vsel %vm1330, %v1323, %v1325
      %v1333 = vsel %vm1330, %v1325, %v1327
      %v1334 = vsel %vm1330, %v1327, %v1329
      %1339 = vst [vmem:[#allocation2 + $0x40] sm:$0x3] %v1331
      %1340 = vst [vmem:[#allocation2 + $0x48] sm:$0x3] %v1332
      %1341 = vst [vmem:[#allocation2 + $0x50] sm:$0x3] %v1333
      %1342 = vst [vmem:[#allocation2 + $0x58] sm:$0x3] %v1334
      %v1343 = vld [vmem:[%s240] sm:$0xff]
      %v1344 = vld [vmem:[%s240 + $0x8] sm:$0x3]
      %v1345 = vld [vmem:[%s1 + $0x10] sm:$0x11]
      %v1346 = vld [vmem:[%s1 + $0x18] sm:$0x11]
      %v1349 = vunpack.c.l.b16 %v1345
      %v1350 = vunpack.c.h.b16 %v1345
      %v1351 = vunpack.c.l.b16 %v1346
      %v1352 = vunpack.c.h.b16 %v1346
      %v1353 = vpack.c.b16 %v1349, %v1349
      %v1354 = vpack.c.b16 %v1350, %v1350
      %v1355 = vpack.c.b16 %v1351, %v1351
      %v1356 = vpack.c.b16 %v1352, %v1352
      %v1358 = vshrl.u32 %v1353, 16
      %v1359 = vpack.i.b16 %v1358, %v1358
      %v1361 = vlaneseq
      %v1362 = vshrl.u32 %v1361, 7
      %v1363 = vsub.s32 0, %v1362
      %v1364 = vrot.slane %v1359, %v1363
      %v1366 = vshrl.u32 %v1354, 16
      %v1367 = vpack.i.b16 %v1366, %v1366
      %v1369 = vlaneseq
      %v1370 = vshrl.u32 %v1369, 7
      %v1371 = vsub.s32 0, %v1370
      %v1372 = vrot.slane %v1367, %v1371
      %v1374 = vshrl.u32 %v1355, 16
      %v1375 = vpack.i.b16 %v1374, %v1374
      %v1377 = vlaneseq
      %v1378 = vshrl.u32 %v1377, 7
      %v1379 = vsub.s32 0, %v1378
      %v1380 = vrot.slane %v1375, %v1379
      %v1382 = vshrl.u32 %v1356, 16
      %v1383 = vpack.i.b16 %v1382, %v1382
      %v1385 = vlaneseq
      %v1386 = vshrl.u32 %v1385, 7
      %v1387 = vsub.s32 0, %v1386
      %v1388 = vrot.slane %v1383, %v1387
      %v1393 = vcombine.low %v1364, %v1372
      %v1394 = vcombine.low %v1380, %v1388
      %v1396 = vunpack.c.l.s4 1983009808
      %v1397 = vunpack.c.0.s8 %v1396
      %v1398 = vlaneseq
      %v1399 = vshrl.u32 %v1398, 7
      %v1400 = vsub.s32 %v1397, %v1399
      %v1401 = vrot.slane %v1393, %v1400
      %v1403 = vunpack.c.l.s4 1983009808
      %v1404 = vunpack.c.0.s8 %v1403
      %v1405 = vlaneseq
      %v1406 = vshrl.u32 %v1405, 7
      %v1407 = vsub.s32 %v1404, %v1406
      %v1408 = vrot.slane %v1394, %v1407
      %v1409 = vcombine.low %v1401, %v1408
      %1410 = vrot.lane.b32.xlu0 %v1409, 64
      %v1411 = vpop.permute.xlu0 %1410
      %v1412 = vrot.slane %v1411, 6
      %vm1413 = vcmask 523264
      %v1414 = vsel %vm1413, %v1412, %v1411
      %v1417 = vmul.bf16 %v1343, %v1414
      %v1418 = vmul.bf16 %v1344, %v1412
      %v1421 = vcombine.low %v1417, %v1417
      %v1423 = vunpack.c.l.s4 1983009808
      %v1424 = vunpack.c.0.s8 %v1423
      %v1425 = vlaneseq
      %v1426 = vshrl.u32 %v1425, 7
      %v1427 = vsub.s32 %v1424, %v1426
      %v1428 = vrot.slane %v1421, %v1427
      %v1430 = vunpack.c.l.s4 1983009808
      %v1431 = vunpack.c.0.s8 %v1430
      %v1432 = vlaneseq
      %v1433 = vshrl.u32 %v1432, 7
      %v1434 = vsub.s32 %v1431, %v1433
      %v1435 = vrot.slane %v1417, %v1434
      %v1436 = vcombine.high %v1428, %v1428
      %v1437 = vcombine.high %v1435, %v1435
      %v1438 = vcombine.low %v1418, %v1418
      %v1440 = vunpack.c.l.s4 1983009808
      %v1441 = vunpack.c.0.s8 %v1440
      %v1442 = vlaneseq
      %v1443 = vshrl.u32 %v1442, 7
      %v1444 = vsub.s32 %v1441, %v1443
      %v1445 = vrot.slane %v1438, %v1444
      %1446 = vrot.lane.b32.xlu0 %v1428, 64
      %v1447 = vpop.permute.xlu0 %1446
      %1448 = vrot.lane.b32.xlu0 %v1436, 64
      %v1449 = vpop.permute.xlu0 %1448
      %1450 = vrot.lane.b32.xlu0 %v1435, 64
      %v1451 = vpop.permute.xlu0 %1450
      %1452 = vrot.lane.b32.xlu0 %v1437, 64
      %v1453 = vpop.permute.xlu0 %1452
      %1454 = vrot.lane.b32.xlu0 %v1445, 64
      %v1455 = vpop.permute.xlu0 %1454
      %v1456 = vsel %vm1413, %v1447, %v1449
      %v1457 = vsel %vm1413, %v1449, %v1451
      %v1458 = vsel %vm1413, %v1451, %v1453
      %v1459 = vsel %vm1413, %v1453, %v1455
      %1464 = vst [vmem:[#allocation2 + $0x40] sm:$0xc] %v1456
      %1465 = vst [vmem:[#allocation2 + $0x48] sm:$0xc] %v1457
      %1466 = vst [vmem:[#allocation2 + $0x50] sm:$0xc] %v1458
      %1467 = vst [vmem:[#allocation2 + $0x58] sm:$0xc] %v1459
      %v1468 = vld [vmem:[%s240] sm:$0xff]
      %v1469 = vld [vmem:[%s240 + $0x8] sm:$0x3]
      %v1470 = vld [vmem:[%s1 + $0x10] sm:$0x22]
      %v1471 = vld [vmem:[%s1 + $0x18] sm:$0x22]
      %v1474 = vunpack.c.l.b16 %v1470
      %v1475 = vunpack.c.h.b16 %v1470
      %v1476 = vunpack.c.l.b16 %v1471
      %v1477 = vunpack.c.h.b16 %v1471
      %v1478 = vpack.c.b16 %v1474, %v1474
      %v1479 = vpack.c.b16 %v1475, %v1475
      %v1480 = vpack.c.b16 %v1476, %v1476
      %v1481 = vpack.c.b16 %v1477, %v1477
      %v1483 = vpack.i.b16 %v1478, %v1478
      %v1485 = vlaneseq
      %v1486 = vshrl.u32 %v1485, 7
      %v1487 = vsub.s32 1, %v1486
      %v1488 = vrot.slane %v1483, %v1487
      %v1490 = vpack.i.b16 %v1479, %v1479
      %v1492 = vlaneseq
      %v1493 = vshrl.u32 %v1492, 7
      %v1494 = vsub.s32 1, %v1493
      %v1495 = vrot.slane %v1490, %v1494
      %v1497 = vpack.i.b16 %v1480, %v1480
      %v1499 = vlaneseq
      %v1500 = vshrl.u32 %v1499, 7
      %v1501 = vsub.s32 1, %v1500
      %v1502 = vrot.slane %v1497, %v1501
      %v1504 = vpack.i.b16 %v1481, %v1481
      %v1506 = vlaneseq
      %v1507 = vshrl.u32 %v1506, 7
      %v1508 = vsub.s32 1, %v1507
      %v1509 = vrot.slane %v1504, %v1508
      %v1514 = vcombine.low %v1488, %v1495
      %v1515 = vcombine.low %v1502, %v1509
      %v1517 = vunpack.c.l.s4 1983009808
      %v1518 = vunpack.c.0.s8 %v1517
      %v1519 = vlaneseq
      %v1520 = vshrl.u32 %v1519, 7
      %v1521 = vsub.s32 %v1518, %v1520
      %v1522 = vrot.slane %v1514, %v1521
      %v1524 = vunpack.c.l.s4 1983009808
      %v1525 = vunpack.c.0.s8 %v1524
      %v1526 = vlaneseq
      %v1527 = vshrl.u32 %v1526, 7
      %v1528 = vsub.s32 %v1525, %v1527
      %v1529 = vrot.slane %v1515, %v1528
      %v1530 = vcombine.low %v1522, %v1529
      %1531 = vrot.lane.b32.xlu0 %v1530, 65
      %v1532 = vpop.permute.xlu0 %1531
      %v1533 = vrot.slane %v1532, 6
      %vm1534 = vcmask 531456
      %v1535 = vsel %vm1534, %v1533, %v1532
      %v1538 = vmul.bf16 %v1468, %v1535
      %v1539 = vmul.bf16 %v1469, %v1533
      %v1542 = vcombine.high %v1538, %v1538
      %v1544 = vunpack.c.l.s4 1983009808
      %v1545 = vunpack.c.0.s8 %v1544
      %v1546 = vlaneseq
      %v1547 = vshrl.u32 %v1546, 7
      %v1548 = vsub.s32 %v1545, %v1547
      %v1549 = vrot.slane %v1538, %v1548
      %v1551 = vunpack.c.l.s4 1983009808
      %v1552 = vunpack.c.0.s8 %v1551
      %v1553 = vlaneseq
      %v1554 = vshrl.u32 %v1553, 7
      %v1555 = vsub.s32 %v1552, %v1554
      %v1556 = vrot.slane %v1542, %v1555
      %v1557 = vcombine.low %v1549, %v1549
      %v1558 = vcombine.low %v1556, %v1556
      %v1560 = vunpack.c.l.s4 1983009808
      %v1561 = vunpack.c.0.s8 %v1560
      %v1562 = vlaneseq
      %v1563 = vshrl.u32 %v1562, 7
      %v1564 = vsub.s32 %v1561, %v1563
      %v1565 = vrot.slane %v1539, %v1564
      %v1566 = vcombine.low %v1565, %v1565
      %1567 = vrot.lane.b32.xlu0 %v1557, 63
      %v1568 = vpop.permute.xlu0 %1567
      %1569 = vrot.lane.b32.xlu0 %v1549, 63
      %v1570 = vpop.permute.xlu0 %1569
      %1571 = vrot.lane.b32.xlu0 %v1558, 63
      %v1572 = vpop.permute.xlu0 %1571
      %1573 = vrot.lane.b32.xlu0 %v1556, 63
      %v1574 = vpop.permute.xlu0 %1573
      %1575 = vrot.lane.b32.xlu0 %v1566, 63
      %v1576 = vpop.permute.xlu0 %1575
      %vm1577 = vcmask 515072
      %v1578 = vsel %vm1577, %v1568, %v1570
      %v1579 = vsel %vm1577, %v1570, %v1572
      %v1580 = vsel %vm1577, %v1572, %v1574
      %v1581 = vsel %vm1577, %v1574, %v1576
      %1586 = vst [vmem:[#allocation2 + $0x40] sm:$0x30] %v1578
      %1587 = vst [vmem:[#allocation2 + $0x48] sm:$0x30] %v1579
      %1588 = vst [vmem:[#allocation2 + $0x50] sm:$0x30] %v1580
      %1589 = vst [vmem:[#allocation2 + $0x58] sm:$0x30] %v1581
      %v1590 = vld [vmem:[%s240] sm:$0xff]
      %v1591 = vld [vmem:[%s240 + $0x8] sm:$0x3]
      %v1592 = vld [vmem:[%s1 + $0x10] sm:$0x22]
      %v1593 = vld [vmem:[%s1 + $0x18] sm:$0x22]
      %v1596 = vunpack.c.l.b16 %v1592
      %v1597 = vunpack.c.h.b16 %v1592
      %v1598 = vunpack.c.l.b16 %v1593
      %v1599 = vunpack.c.h.b16 %v1593
      %v1600 = vpack.c.b16 %v1596, %v1596
      %v1601 = vpack.c.b16 %v1597, %v1597
      %v1602 = vpack.c.b16 %v1598, %v1598
      %v1603 = vpack.c.b16 %v1599, %v1599
      %v1605 = vshrl.u32 %v1600, 16
      %v1606 = vpack.i.b16 %v1605, %v1605
      %v1608 = vlaneseq
      %v1609 = vshrl.u32 %v1608, 7
      %v1610 = vsub.s32 1, %v1609
      %v1611 = vrot.slane %v1606, %v1610
      %v1613 = vshrl.u32 %v1601, 16
      %v1614 = vpack.i.b16 %v1613, %v1613
      %v1616 = vlaneseq
      %v1617 = vshrl.u32 %v1616, 7
      %v1618 = vsub.s32 1, %v1617
      %v1619 = vrot.slane %v1614, %v1618
      %v1621 = vshrl.u32 %v1602, 16
      %v1622 = vpack.i.b16 %v1621, %v1621
      %v1624 = vlaneseq
      %v1625 = vshrl.u32 %v1624, 7
      %v1626 = vsub.s32 1, %v1625
      %v1627 = vrot.slane %v1622, %v1626
      %v1629 = vshrl.u32 %v1603, 16
      %v1630 = vpack.i.b16 %v1629, %v1629
      %v1632 = vlaneseq
      %v1633 = vshrl.u32 %v1632, 7
      %v1634 = vsub.s32 1, %v1633
      %v1635 = vrot.slane %v1630, %v1634
      %v1640 = vcombine.low %v1611, %v1619
      %v1641 = vcombine.low %v1627, %v1635
      %v1643 = vunpack.c.l.s4 1983009808
      %v1644 = vunpack.c.0.s8 %v1643
      %v1645 = vlaneseq
      %v1646 = vshrl.u32 %v1645, 7
      %v1647 = vsub.s32 %v1644, %v1646
      %v1648 = vrot.slane %v1640, %v1647
      %v1650 = vunpack.c.l.s4 1983009808
      %v1651 = vunpack.c.0.s8 %v1650
      %v1652 = vlaneseq
      %v1653 = vshrl.u32 %v1652, 7
      %v1654 = vsub.s32 %v1651, %v1653
      %v1655 = vrot.slane %v1641, %v1654
      %v1656 = vcombine.low %v1648, %v1655
      %1657 = vrot.lane.b32.xlu0 %v1656, 66
      %v1658 = vpop.permute.xlu0 %1657
      %v1659 = vrot.slane %v1658, 6
      %vm1660 = vcmask 539648
      %v1661 = vsel %vm1660, %v1659, %v1658
      %v1664 = vmul.bf16 %v1590, %v1661
      %v1665 = vmul.bf16 %v1591, %v1659
      %v1668 = vcombine.low %v1664, %v1664
      %v1670 = vunpack.c.l.s4 1983009808
      %v1671 = vunpack.c.0.s8 %v1670
      %v1672 = vlaneseq
      %v1673 = vshrl.u32 %v1672, 7
      %v1674 = vsub.s32 %v1671, %v1673
      %v1675 = vrot.slane %v1668, %v1674
      %v1677 = vunpack.c.l.s4 1983009808
      %v1678 = vunpack.c.0.s8 %v1677
      %v1679 = vlaneseq
      %v1680 = vshrl.u32 %v1679, 7
      %v1681 = vsub.s32 %v1678, %v1680
      %v1682 = vrot.slane %v1664, %v1681
      %v1683 = vcombine.low %v1675, %v1675
      %v1684 = vcombine.low %v1682, %v1682
      %v1685 = vcombine.low %v1665, %v1665
      %v1687 = vunpack.c.l.s4 1983009808
      %v1688 = vunpack.c.0.s8 %v1687
      %v1689 = vlaneseq
      %v1690 = vshrl.u32 %v1689, 7
      %v1691 = vsub.s32 %v1688, %v1690
      %v1692 = vrot.slane %v1685, %v1691
      %v1693 = vcombine.low %v1692, %v1692
      %1694 = vrot.lane.b32.xlu0 %v1683, 62
      %v1695 = vpop.permute.xlu0 %1694
      %1696 = vrot.lane.b32.xlu0 %v1675, 62
      %v1697 = vpop.permute.xlu0 %1696
      %1698 = vrot.lane.b32.xlu0 %v1684, 62
      %v1699 = vpop.permute.xlu0 %1698
      %1700 = vrot.lane.b32.xlu0 %v1682, 62
      %v1701 = vpop.permute.xlu0 %1700
      %1702 = vrot.lane.b32.xlu0 %v1693, 62
      %v1703 = vpop.permute.xlu0 %1702
      %vm1704 = vcmask 506880
      %v1705 = vsel %vm1704, %v1695, %v1697
      %v1706 = vsel %vm1704, %v1697, %v1699
      %v1707 = vsel %vm1704, %v1699, %v1701
      %v1708 = vsel %vm1704, %v1701, %v1703
      %1713 = vst [vmem:[#allocation2 + $0x40] sm:$0xc0] %v1705
      %1714 = vst [vmem:[#allocation2 + $0x48] sm:$0xc0] %v1706
      %1715 = vst [vmem:[#allocation2 + $0x50] sm:$0xc0] %v1707
      %1716 = vst [vmem:[#allocation2 + $0x58] sm:$0xc0] %v1708
      %v1717 = vld [vmem:[%s240] sm:$0xff]
      %v1718 = vld [vmem:[%s240 + $0x8] sm:$0x3]
      %v1719 = vld [vmem:[%s1 + $0x10] sm:$0x44]
      %v1720 = vld [vmem:[%s1 + $0x18] sm:$0x44]
      %v1723 = vunpack.c.l.b16 %v1719
      %v1724 = vunpack.c.h.b16 %v1719
      %v1725 = vunpack.c.l.b16 %v1720
      %v1726 = vunpack.c.h.b16 %v1720
      %v1727 = vpack.c.b16 %v1723, %v1723
      %v1728 = vpack.c.b16 %v1724, %v1724
      %v1729 = vpack.c.b16 %v1725, %v1725
      %v1730 = vpack.c.b16 %v1726, %v1726
      %v1732 = vpack.i.b16 %v1727, %v1727
      %v1734 = vlaneseq
      %v1735 = vshrl.u32 %v1734, 7
      %v1736 = vsub.s32 2, %v1735
      %v1737 = vrot.slane %v1732, %v1736
      %v1739 = vpack.i.b16 %v1728, %v1728
      %v1741 = vlaneseq
      %v1742 = vshrl.u32 %v1741, 7
      %v1743 = vsub.s32 2, %v1742
      %v1744 = vrot.slane %v1739, %v1743
      %v1746 = vpack.i.b16 %v1729, %v1729
      %v1748 = vlaneseq
      %v1749 = vshrl.u32 %v1748, 7
      %v1750 = vsub.s32 2, %v1749
      %v1751 = vrot.slane %v1746, %v1750
      %v1753 = vpack.i.b16 %v1730, %v1730
      %v1755 = vlaneseq
      %v1756 = vshrl.u32 %v1755, 7
      %v1757 = vsub.s32 2, %v1756
      %v1758 = vrot.slane %v1753, %v1757
      %v1763 = vcombine.low %v1737, %v1744
      %v1764 = vcombine.low %v1751, %v1758
      %v1766 = vunpack.c.l.s4 1983009808
      %v1767 = vunpack.c.0.s8 %v1766
      %v1768 = vlaneseq
      %v1769 = vshrl.u32 %v1768, 7
      %v1770 = vsub.s32 %v1767, %v1769
      %v1771 = vrot.slane %v1763, %v1770
      %v1773 = vunpack.c.l.s4 1983009808
      %v1774 = vunpack.c.0.s8 %v1773
      %v1775 = vlaneseq
      %v1776 = vshrl.u32 %v1775, 7
      %v1777 = vsub.s32 %v1774, %v1776
      %v1778 = vrot.slane %v1764, %v1777
      %v1779 = vcombine.low %v1771, %v1778
      %1780 = vrot.lane.b32.xlu0 %v1779, 72
      %v1781 = vpop.permute.xlu0 %1780
      %v1782 = vrot.slane %v1781, 6
      %vm1783 = vcmask 588800
      %v1784 = vsel %vm1783, %v1782, %v1781
      %v1787 = vmul.bf16 %v1717, %v1784
      %v1788 = vmul.bf16 %v1718, %v1782
      %v1791 = vcombine.high %v1787, %v1787
      %v1793 = vunpack.c.l.s4 1983009808
      %v1794 = vunpack.c.0.s8 %v1793
      %v1795 = vlaneseq
      %v1796 = vshrl.u32 %v1795, 7
      %v1797 = vsub.s32 %v1794, %v1796
      %v1798 = vrot.slane %v1787, %v1797
      %v1800 = vunpack.c.l.s4 1983009808
      %v1801 = vunpack.c.0.s8 %v1800
      %v1802 = vlaneseq
      %v1803 = vshrl.u32 %v1802, 7
      %v1804 = vsub.s32 %v1801, %v1803
      %v1805 = vrot.slane %v1791, %v1804
      %v1806 = vcombine.high %v1798, %v1798
      %v1807 = vcombine.high %v1805, %v1805
      %v1809 = vunpack.c.l.s4 1983009808
      %v1810 = vunpack.c.0.s8 %v1809
      %v1811 = vlaneseq
      %v1812 = vshrl.u32 %v1811, 7
      %v1813 = vsub.s32 %v1810, %v1812
      %v1814 = vrot.slane %v1788, %v1813
      %1815 = vrot.lane.b32.xlu0 %v1798, 56
      %v1816 = vpop.permute.xlu0 %1815
      %1817 = vrot.lane.b32.xlu0 %v1806, 56
      %v1818 = vpop.permute.xlu0 %1817
      %1819 = vrot.lane.b32.xlu0 %v1805, 56
      %v1820 = vpop.permute.xlu0 %1819
      %1821 = vrot.lane.b32.xlu0 %v1807, 56
      %v1822 = vpop.permute.xlu0 %1821
      %1823 = vrot.lane.b32.xlu0 %v1814, 56
      %v1824 = vpop.permute.xlu0 %1823
      %vm1825 = vcmask 457728
      %v1826 = vsel %vm1825, %v1816, %v1818
      %v1827 = vsel %vm1825, %v1818, %v1820
      %v1828 = vsel %vm1825, %v1820, %v1822
      %v1829 = vsel %vm1825, %v1822, %v1824
      %1834 = vst [vmem:[#allocation2 + $0x60] sm:$0x3] %v1826
      %1835 = vst [vmem:[#allocation2 + $0x68] sm:$0x3] %v1827
      %1836 = vst [vmem:[#allocation2 + $0x70] sm:$0x3] %v1828
      %1837 = vst [vmem:[#allocation2 + $0x78] sm:$0x3] %v1829
      %v1838 = vld [vmem:[%s240] sm:$0xff]
      %v1839 = vld [vmem:[%s240 + $0x8] sm:$0x3]
      %v1840 = vld [vmem:[%s1 + $0x10] sm:$0x44]
      %v1841 = vld [vmem:[%s1 + $0x18] sm:$0x44]
      %v1844 = vunpack.c.l.b16 %v1840
      %v1845 = vunpack.c.h.b16 %v1840
      %v1846 = vunpack.c.l.b16 %v1841
      %v1847 = vunpack.c.h.b16 %v1841
      %v1848 = vpack.c.b16 %v1844, %v1844
      %v1849 = vpack.c.b16 %v1845, %v1845
      %v1850 = vpack.c.b16 %v1846, %v1846
      %v1851 = vpack.c.b16 %v1847, %v1847
      %v1853 = vshrl.u32 %v1848, 16
      %v1854 = vpack.i.b16 %v1853, %v1853
      %v1856 = vlaneseq
      %v1857 = vshrl.u32 %v1856, 7
      %v1858 = vsub.s32 2, %v1857
      %v1859 = vrot.slane %v1854, %v1858
      %v1861 = vshrl.u32 %v1849, 16
      %v1862 = vpack.i.b16 %v1861, %v1861
      %v1864 = vlaneseq
      %v1865 = vshrl.u32 %v1864, 7
      %v1866 = vsub.s32 2, %v1865
      %v1867 = vrot.slane %v1862, %v1866
      %v1869 = vshrl.u32 %v1850, 16
      %v1870 = vpack.i.b16 %v1869, %v1869
      %v1872 = vlaneseq
      %v1873 = vshrl.u32 %v1872, 7
      %v1874 = vsub.s32 2, %v1873
      %v1875 = vrot.slane %v1870, %v1874
      %v1877 = vshrl.u32 %v1851, 16
      %v1878 = vpack.i.b16 %v1877, %v1877
      %v1880 = vlaneseq
      %v1881 = vshrl.u32 %v1880, 7
      %v1882 = vsub.s32 2, %v1881
      %v1883 = vrot.slane %v1878, %v1882
      %v1888 = vcombine.low %v1859, %v1867
      %v1889 = vcombine.low %v1875, %v1883
      %v1891 = vunpack.c.l.s4 1983009808
      %v1892 = vunpack.c.0.s8 %v1891
      %v1893 = vlaneseq
      %v1894 = vshrl.u32 %v1893, 7
      %v1895 = vsub.s32 %v1892, %v1894
      %v1896 = vrot.slane %v1888, %v1895
      %v1898 = vunpack.c.l.s4 1983009808
      %v1899 = vunpack.c.0.s8 %v1898
      %v1900 = vlaneseq
      %v1901 = vshrl.u32 %v1900, 7
      %v1902 = vsub.s32 %v1899, %v1901
      %v1903 = vrot.slane %v1889, %v1902
      %v1904 = vcombine.low %v1896, %v1903
      %1905 = vrot.lane.b32.xlu0 %v1904, 73
      %v1906 = vpop.permute.xlu0 %1905
      %v1907 = vrot.slane %v1906, 6
      %vm1908 = vcmask 596992
      %v1909 = vsel %vm1908, %v1907, %v1906
      %v1912 = vmul.bf16 %v1838, %v1909
      %v1913 = vmul.bf16 %v1839, %v1907
      %v1916 = vcombine.low %v1912, %v1912
      %v1918 = vunpack.c.l.s4 1983009808
      %v1919 = vunpack.c.0.s8 %v1918
      %v1920 = vlaneseq
      %v1921 = vshrl.u32 %v1920, 7
      %v1922 = vsub.s32 %v1919, %v1921
      %v1923 = vrot.slane %v1916, %v1922
      %v1925 = vunpack.c.l.s4 1983009808
      %v1926 = vunpack.c.0.s8 %v1925
      %v1927 = vlaneseq
      %v1928 = vshrl.u32 %v1927, 7
      %v1929 = vsub.s32 %v1926, %v1928
      %v1930 = vrot.slane %v1912, %v1929
      %v1931 = vcombine.high %v1923, %v1923
      %v1932 = vcombine.high %v1930, %v1930
      %v1933 = vcombine.low %v1913, %v1913
      %v1935 = vunpack.c.l.s4 1983009808
      %v1936 = vunpack.c.0.s8 %v1935
      %v1937 = vlaneseq
      %v1938 = vshrl.u32 %v1937, 7
      %v1939 = vsub.s32 %v1936, %v1938
      %v1940 = vrot.slane %v1933, %v1939
      %1941 = vrot.lane.b32.xlu0 %v1923, 55
      %v1942 = vpop.permute.xlu0 %1941
      %1943 = vrot.lane.b32.xlu0 %v1931, 55
      %v1944 = vpop.permute.xlu0 %1943
      %1945 = vrot.lane.b32.xlu0 %v1930, 55
      %v1946 = vpop.permute.xlu0 %1945
      %1947 = vrot.lane.b32.xlu0 %v1932, 55
      %v1948 = vpop.permute.xlu0 %1947
      %1949 = vrot.lane.b32.xlu0 %v1940, 55
      %v1950 = vpop.permute.xlu0 %1949
      %vm1951 = vcmask 449536
      %v1952 = vsel %vm1951, %v1942, %v1944
      %v1953 = vsel %vm1951, %v1944, %v1946
      %v1954 = vsel %vm1951, %v1946, %v1948
      %v1955 = vsel %vm1951, %v1948, %v1950
      %1960 = vst [vmem:[#allocation2 + $0x60] sm:$0xc] %v1952
      %1961 = vst [vmem:[#allocation2 + $0x68] sm:$0xc] %v1953
      %1962 = vst [vmem:[#allocation2 + $0x70] sm:$0xc] %v1954
      %1963 = vst [vmem:[#allocation2 + $0x78] sm:$0xc] %v1955
      %v1964 = vld [vmem:[%s240] sm:$0xff]
      %v1965 = vld [vmem:[%s240 + $0x8] sm:$0x3]
      %v1966 = vld [vmem:[%s1 + $0x10] sm:$0x88]
      %v1967 = vld [vmem:[%s1 + $0x18] sm:$0x88]
      %v1970 = vunpack.c.l.b16 %v1966
      %v1971 = vunpack.c.h.b16 %v1966
      %v1972 = vunpack.c.l.b16 %v1967
      %v1973 = vunpack.c.h.b16 %v1967
      %v1974 = vpack.c.b16 %v1970, %v1970
      %v1975 = vpack.c.b16 %v1971, %v1971
      %v1976 = vpack.c.b16 %v1972, %v1972
      %v1977 = vpack.c.b16 %v1973, %v1973
      %v1979 = vpack.i.b16 %v1974, %v1974
      %v1981 = vlaneseq
      %v1982 = vshrl.u32 %v1981, 7
      %v1983 = vsub.s32 3, %v1982
      %v1984 = vrot.slane %v1979, %v1983
      %v1986 = vpack.i.b16 %v1975, %v1975
      %v1988 = vlaneseq
      %v1989 = vshrl.u32 %v1988, 7
      %v1990 = vsub.s32 3, %v1989
      %v1991 = vrot.slane %v1986, %v1990
      %v1993 = vpack.i.b16 %v1976, %v1976
      %v1995 = vlaneseq
      %v1996 = vshrl.u32 %v1995, 7
      %v1997 = vsub.s32 3, %v1996
      %v1998 = vrot.slane %v1993, %v1997
      %v2000 = vpack.i.b16 %v1977, %v1977
      %v2002 = vlaneseq
      %v2003 = vshrl.u32 %v2002, 7
      %v2004 = vsub.s32 3, %v2003
      %v2005 = vrot.slane %v2000, %v2004
      %v2010 = vcombine.low %v1984, %v1991
      %v2011 = vcombine.low %v1998, %v2005
      %v2013 = vunpack.c.l.s4 1983009808
      %v2014 = vunpack.c.0.s8 %v2013
      %v2015 = vlaneseq
      %v2016 = vshrl.u32 %v2015, 7
      %v2017 = vsub.s32 %v2014, %v2016
      %v2018 = vrot.slane %v2010, %v2017
      %v2020 = vunpack.c.l.s4 1983009808
      %v2021 = vunpack.c.0.s8 %v2020
      %v2022 = vlaneseq
      %v2023 = vshrl.u32 %v2022, 7
      %v2024 = vsub.s32 %v2021, %v2023
      %v2025 = vrot.slane %v2011, %v2024
      %v2026 = vcombine.low %v2018, %v2025
      %2027 = vrot.lane.b32.xlu0 %v2026, 74
      %v2028 = vpop.permute.xlu0 %2027
      %v2029 = vrot.slane %v2028, 6
      %vm2030 = vcmask 605184
      %v2031 = vsel %vm2030, %v2029, %v2028
      %v2034 = vmul.bf16 %v1964, %v2031
      %v2035 = vmul.bf16 %v1965, %v2029
      %v2038 = vcombine.high %v2034, %v2034
      %v2040 = vunpack.c.l.s4 1983009808
      %v2041 = vunpack.c.0.s8 %v2040
      %v2042 = vlaneseq
      %v2043 = vshrl.u32 %v2042, 7
      %v2044 = vsub.s32 %v2041, %v2043
      %v2045 = vrot.slane %v2034, %v2044
      %v2047 = vunpack.c.l.s4 1983009808
      %v2048 = vunpack.c.0.s8 %v2047
      %v2049 = vlaneseq
      %v2050 = vshrl.u32 %v2049, 7
      %v2051 = vsub.s32 %v2048, %v2050
      %v2052 = vrot.slane %v2038, %v2051
      %v2053 = vcombine.low %v2045, %v2045
      %v2054 = vcombine.low %v2052, %v2052
      %v2056 = vunpack.c.l.s4 1983009808
      %v2057 = vunpack.c.0.s8 %v2056
      %v2058 = vlaneseq
      %v2059 = vshrl.u32 %v2058, 7
      %v2060 = vsub.s32 %v2057, %v2059
      %v2061 = vrot.slane %v2035, %v2060
      %v2062 = vcombine.low %v2061, %v2061
      %2063 = vrot.lane.b32.xlu0 %v2053, 54
      %v2064 = vpop.permute.xlu0 %2063
      %2065 = vrot.lane.b32.xlu0 %v2045, 54
      %v2066 = vpop.permute.xlu0 %2065
      %2067 = vrot.lane.b32.xlu0 %v2054, 54
      %v2068 = vpop.permute.xlu0 %2067
      %2069 = vrot.lane.b32.xlu0 %v2052, 54
      %v2070 = vpop.permute.xlu0 %2069
      %2071 = vrot.lane.b32.xlu0 %v2062, 54
      %v2072 = vpop.permute.xlu0 %2071
      %vm2073 = vcmask 441344
      %v2074 = vsel %vm2073, %v2064, %v2066
      %v2075 = vsel %vm2073, %v2066, %v2068
      %v2076 = vsel %vm2073, %v2068, %v2070
      %v2077 = vsel %vm2073, %v2070, %v2072
      %2082 = vst [vmem:[#allocation2 + $0x60] sm:$0x30] %v2074
      %2083 = vst [vmem:[#allocation2 + $0x68] sm:$0x30] %v2075
      %2084 = vst [vmem:[#allocation2 + $0x70] sm:$0x30] %v2076
      %2085 = vst [vmem:[#allocation2 + $0x78] sm:$0x30] %v2077
      %v2086 = vld [vmem:[%s240] sm:$0xff]
      %v2087 = vld [vmem:[%s240 + $0x8] sm:$0x3]
      %v2088 = vld [vmem:[%s1 + $0x10] sm:$0x88]
      %v2089 = vld [vmem:[%s1 + $0x18] sm:$0x88]
      %v2092 = vunpack.c.l.b16 %v2088
      %v2093 = vunpack.c.h.b16 %v2088
      %v2094 = vunpack.c.l.b16 %v2089
      %v2095 = vunpack.c.h.b16 %v2089
      %v2096 = vpack.c.b16 %v2092, %v2092
      %v2097 = vpack.c.b16 %v2093, %v2093
      %v2098 = vpack.c.b16 %v2094, %v2094
      %v2099 = vpack.c.b16 %v2095, %v2095
      %v2101 = vshrl.u32 %v2096, 16
      %v2102 = vpack.i.b16 %v2101, %v2101
      %v2104 = vlaneseq
      %v2105 = vshrl.u32 %v2104, 7
      %v2106 = vsub.s32 3, %v2105
      %v2107 = vrot.slane %v2102, %v2106
      %v2109 = vshrl.u32 %v2097, 16
      %v2110 = vpack.i.b16 %v2109, %v2109
      %v2112 = vlaneseq
      %v2113 = vshrl.u32 %v2112, 7
      %v2114 = vsub.s32 3, %v2113
      %v2115 = vrot.slane %v2110, %v2114
      %v2117 = vshrl.u32 %v2098, 16
      %v2118 = vpack.i.b16 %v2117, %v2117
      %v2120 = vlaneseq
      %v2121 = vshrl.u32 %v2120, 7
      %v2122 = vsub.s32 3, %v2121
      %v2123 = vrot.slane %v2118, %v2122
      %v2125 = vshrl.u32 %v2099, 16
      %v2126 = vpack.i.b16 %v2125, %v2125
      %v2128 = vlaneseq
      %v2129 = vshrl.u32 %v2128, 7
      %v2130 = vsub.s32 3, %v2129
      %v2131 = vrot.slane %v2126, %v2130
      %v2136 = vcombine.low %v2107, %v2115
      %v2137 = vcombine.low %v2123, %v2131
      %v2139 = vunpack.c.l.s4 1983009808
      %v2140 = vunpack.c.0.s8 %v2139
      %v2141 = vlaneseq
      %v2142 = vshrl.u32 %v2141, 7
      %v2143 = vsub.s32 %v2140, %v2142
      %v2144 = vrot.slane %v2136, %v2143
      %v2146 = vunpack.c.l.s4 1983009808
      %v2147 = vunpack.c.0.s8 %v2146
      %v2148 = vlaneseq
      %v2149 = vshrl.u32 %v2148, 7
      %v2150 = vsub.s32 %v2147, %v2149
      %v2151 = vrot.slane %v2137, %v2150
      %v2152 = vcombine.low %v2144, %v2151
      %2153 = vrot.lane.b32.xlu0 %v2152, 80
      %v2154 = vpop.permute.xlu0 %2153
      %v2155 = vrot.slane %v2154, 6
      %vm2156 = vcmask 654336
      %v2157 = vsel %vm2156, %v2155, %v2154
      %v2160 = vmul.bf16 %v2086, %v2157
      %v2161 = vmul.bf16 %v2087, %v2155
      %v2164 = vcombine.low %v2160, %v2160
      %v2166 = vunpack.c.l.s4 1983009808
      %v2167 = vunpack.c.0.s8 %v2166
      %v2168 = vlaneseq
      %v2169 = vshrl.u32 %v2168, 7
      %v2170 = vsub.s32 %v2167, %v2169
      %v2171 = vrot.slane %v2164, %v2170
      %v2173 = vunpack.c.l.s4 1983009808
      %v2174 = vunpack.c.0.s8 %v2173
      %v2175 = vlaneseq
      %v2176 = vshrl.u32 %v2175, 7
      %v2177 = vsub.s32 %v2174, %v2176
      %v2178 = vrot.slane %v2160, %v2177
      %v2179 = vcombine.low %v2171, %v2171
      %v2180 = vcombine.low %v2178, %v2178
      %v2181 = vcombine.low %v2161, %v2161
      %v2183 = vunpack.c.l.s4 1983009808
      %v2184 = vunpack.c.0.s8 %v2183
      %v2185 = vlaneseq
      %v2186 = vshrl.u32 %v2185, 7
      %v2187 = vsub.s32 %v2184, %v2186
      %v2188 = vrot.slane %v2181, %v2187
      %v2189 = vcombine.low %v2188, %v2188
      %2190 = vrot.lane.b32.xlu0 %v2179, 48
      %v2191 = vpop.permute.xlu0 %2190
      %2192 = vrot.lane.b32.xlu0 %v2171, 48
      %v2193 = vpop.permute.xlu0 %2192
      %2194 = vrot.lane.b32.xlu0 %v2180, 48
      %v2195 = vpop.permute.xlu0 %2194
      %2196 = vrot.lane.b32.xlu0 %v2178, 48
      %v2197 = vpop.permute.xlu0 %2196
      %2198 = vrot.lane.b32.xlu0 %v2189, 48
      %v2199 = vpop.permute.xlu0 %2198
      %vm2200 = vcmask 392192
      %v2201 = vsel %vm2200, %v2191, %v2193
      %v2202 = vsel %vm2200, %v2193, %v2195
      %v2203 = vsel %vm2200, %v2195, %v2197
      %v2204 = vsel %vm2200, %v2197, %v2199
      %2209 = vst [vmem:[#allocation2 + $0x60] sm:$0xc0] %v2201
      %2210 = vst [vmem:[#allocation2 + $0x68] sm:$0xc0] %v2202
      %2211 = vst [vmem:[#allocation2 + $0x70] sm:$0xc0] %v2203
      %2212 = vst [vmem:[#allocation2 + $0x78] sm:$0xc0] %v2204
      %v2213 = vld [vmem:[%s240] sm:$0xff]
      %v2214 = vld [vmem:[%s240 + $0x8] sm:$0x3]
      %v2215 = vld [vmem:[%s1 + $0x20] sm:$0x11]
      %v2216 = vld [vmem:[%s1 + $0x28] sm:$0x11]
      %v2219 = vunpack.c.l.b16 %v2215
      %v2220 = vunpack.c.h.b16 %v2215
      %v2221 = vunpack.c.l.b16 %v2216
      %v2222 = vunpack.c.h.b16 %v2216
      %v2223 = vpack.c.b16 %v2219, %v2219
      %v2224 = vpack.c.b16 %v2220, %v2220
      %v2225 = vpack.c.b16 %v2221, %v2221
      %v2226 = vpack.c.b16 %v2222, %v2222
      %v2228 = vpack.i.b16 %v2223, %v2223
      %v2230 = vlaneseq
      %v2231 = vshrl.u32 %v2230, 7
      %v2232 = vsub.s32 0, %v2231
      %v2233 = vrot.slane %v2228, %v2232
      %v2235 = vpack.i.b16 %v2224, %v2224
      %v2237 = vlaneseq
      %v2238 = vshrl.u32 %v2237, 7
      %v2239 = vsub.s32 0, %v2238
      %v2240 = vrot.slane %v2235, %v2239
      %v2242 = vpack.i.b16 %v2225, %v2225
      %v2244 = vlaneseq
      %v2245 = vshrl.u32 %v2244, 7
      %v2246 = vsub.s32 0, %v2245
      %v2247 = vrot.slane %v2242, %v2246
      %v2249 = vpack.i.b16 %v2226, %v2226
      %v2251 = vlaneseq
      %v2252 = vshrl.u32 %v2251, 7
      %v2253 = vsub.s32 0, %v2252
      %v2254 = vrot.slane %v2249, %v2253
      %v2259 = vcombine.low %v2233, %v2240
      %v2260 = vcombine.low %v2247, %v2254
      %v2262 = vunpack.c.l.s4 1983009808
      %v2263 = vunpack.c.0.s8 %v2262
      %v2264 = vlaneseq
      %v2265 = vshrl.u32 %v2264, 7
      %v2266 = vsub.s32 %v2263, %v2265
      %v2267 = vrot.slane %v2259, %v2266
      %v2269 = vunpack.c.l.s4 1983009808
      %v2270 = vunpack.c.0.s8 %v2269
      %v2271 = vlaneseq
      %v2272 = vshrl.u32 %v2271, 7
      %v2273 = vsub.s32 %v2270, %v2272
      %v2274 = vrot.slane %v2260, %v2273
      %v2275 = vcombine.low %v2267, %v2274
      %2276 = vrot.lane.b32.xlu0 %v2275, 81
      %v2277 = vpop.permute.xlu0 %2276
      %v2278 = vrot.slane %v2277, 6
      %vm2279 = vcmask 662528
      %v2280 = vsel %vm2279, %v2278, %v2277
      %v2283 = vmul.bf16 %v2213, %v2280
      %v2284 = vmul.bf16 %v2214, %v2278
      %v2287 = vcombine.high %v2283, %v2283
      %v2289 = vunpack.c.l.s4 1983009808
      %v2290 = vunpack.c.0.s8 %v2289
      %v2291 = vlaneseq
      %v2292 = vshrl.u32 %v2291, 7
      %v2293 = vsub.s32 %v2290, %v2292
      %v2294 = vrot.slane %v2283, %v2293
      %v2296 = vunpack.c.l.s4 1983009808
      %v2297 = vunpack.c.0.s8 %v2296
      %v2298 = vlaneseq
      %v2299 = vshrl.u32 %v2298, 7
      %v2300 = vsub.s32 %v2297, %v2299
      %v2301 = vrot.slane %v2287, %v2300
      %v2302 = vcombine.high %v2294, %v2294
      %v2303 = vcombine.high %v2301, %v2301
      %v2305 = vunpack.c.l.s4 1983009808
      %v2306 = vunpack.c.0.s8 %v2305
      %v2307 = vlaneseq
      %v2308 = vshrl.u32 %v2307, 7
      %v2309 = vsub.s32 %v2306, %v2308
      %v2310 = vrot.slane %v2284, %v2309
      %2311 = vrot.lane.b32.xlu0 %v2294, 47
      %v2312 = vpop.permute.xlu0 %2311
      %2313 = vrot.lane.b32.xlu0 %v2302, 47
      %v2314 = vpop.permute.xlu0 %2313
      %2315 = vrot.lane.b32.xlu0 %v2301, 47
      %v2316 = vpop.permute.xlu0 %2315
      %2317 = vrot.lane.b32.xlu0 %v2303, 47
      %v2318 = vpop.permute.xlu0 %2317
      %2319 = vrot.lane.b32.xlu0 %v2310, 47
      %v2320 = vpop.permute.xlu0 %2319
      %vm2321 = vcmask 384000
      %v2322 = vsel %vm2321, %v2312, %v2314
      %v2323 = vsel %vm2321, %v2314, %v2316
      %v2324 = vsel %vm2321, %v2316, %v2318
      %v2325 = vsel %vm2321, %v2318, %v2320
      %2330 = vst [vmem:[#allocation2 + $0x80] sm:$0x3] %v2322
      %2331 = vst [vmem:[#allocation2 + $0x88] sm:$0x3] %v2323
      %2332 = vst [vmem:[#allocation2 + $0x90] sm:$0x3] %v2324
      %2333 = vst [vmem:[#allocation2 + $0x98] sm:$0x3] %v2325
      %v2334 = vld [vmem:[%s240] sm:$0xff]
      %v2335 = vld [vmem:[%s240 + $0x8] sm:$0x3]
      %v2336 = vld [vmem:[%s1 + $0x20] sm:$0x11]
      %v2337 = vld [vmem:[%s1 + $0x28] sm:$0x11]
      %v2340 = vunpack.c.l.b16 %v2336
      %v2341 = vunpack.c.h.b16 %v2336
      %v2342 = vunpack.c.l.b16 %v2337
      %v2343 = vunpack.c.h.b16 %v2337
      %v2344 = vpack.c.b16 %v2340, %v2340
      %v2345 = vpack.c.b16 %v2341, %v2341
      %v2346 = vpack.c.b16 %v2342, %v2342
      %v2347 = vpack.c.b16 %v2343, %v2343
      %v2349 = vshrl.u32 %v2344, 16
      %v2350 = vpack.i.b16 %v2349, %v2349
      %v2352 = vlaneseq
      %v2353 = vshrl.u32 %v2352, 7
      %v2354 = vsub.s32 0, %v2353
      %v2355 = vrot.slane %v2350, %v2354
      %v2357 = vshrl.u32 %v2345, 16
      %v2358 = vpack.i.b16 %v2357, %v2357
      %v2360 = vlaneseq
      %v2361 = vshrl.u32 %v2360, 7
      %v2362 = vsub.s32 0, %v2361
      %v2363 = vrot.slane %v2358, %v2362
      %v2365 = vshrl.u32 %v2346, 16
      %v2366 = vpack.i.b16 %v2365, %v2365
      %v2368 = vlaneseq
      %v2369 = vshrl.u32 %v2368, 7
      %v2370 = vsub.s32 0, %v2369
      %v2371 = vrot.slane %v2366, %v2370
      %v2373 = vshrl.u32 %v2347, 16
      %v2374 = vpack.i.b16 %v2373, %v2373
      %v2376 = vlaneseq
      %v2377 = vshrl.u32 %v2376, 7
      %v2378 = vsub.s32 0, %v2377
      %v2379 = vrot.slane %v2374, %v2378
      %v2384 = vcombine.low %v2355, %v2363
      %v2385 = vcombine.low %v2371, %v2379
      %v2387 = vunpack.c.l.s4 1983009808
      %v2388 = vunpack.c.0.s8 %v2387
      %v2389 = vlaneseq
      %v2390 = vshrl.u32 %v2389, 7
      %v2391 = vsub.s32 %v2388, %v2390
      %v2392 = vrot.slane %v2384, %v2391
      %v2394 = vunpack.c.l.s4 1983009808
      %v2395 = vunpack.c.0.s8 %v2394
      %v2396 = vlaneseq
      %v2397 = vshrl.u32 %v2396, 7
      %v2398 = vsub.s32 %v2395, %v2397
      %v2399 = vrot.slane %v2385, %v2398
      %v2400 = vcombine.low %v2392, %v2399
      %2401 = vrot.lane.b32.xlu0 %v2400, 82
      %v2402 = vpop.permute.xlu0 %2401
      %v2403 = vrot.slane %v2402, 6
      %vm2404 = vcmask 670720
      %v2405 = vsel %vm2404, %v2403, %v2402
      %v2408 = vmul.bf16 %v2334, %v2405
      %v2409 = vmul.bf16 %v2335, %v2403
      %v2412 = vcombine.low %v2408, %v2408
      %v2414 = vunpack.c.l.s4 1983009808
      %v2415 = vunpack.c.0.s8 %v2414
      %v2416 = vlaneseq
      %v2417 = vshrl.u32 %v2416, 7
      %v2418 = vsub.s32 %v2415, %v2417
      %v2419 = vrot.slane %v2412, %v2418
      %v2421 = vunpack.c.l.s4 1983009808
      %v2422 = vunpack.c.0.s8 %v2421
      %v2423 = vlaneseq
      %v2424 = vshrl.u32 %v2423, 7
      %v2425 = vsub.s32 %v2422, %v2424
      %v2426 = vrot.slane %v2408, %v2425
      %v2427 = vcombine.high %v2419, %v2419
      %v2428 = vcombine.high %v2426, %v2426
      %v2429 = vcombine.low %v2409, %v2409
      %v2431 = vunpack.c.l.s4 1983009808
      %v2432 = vunpack.c.0.s8 %v2431
      %v2433 = vlaneseq
      %v2434 = vshrl.u32 %v2433, 7
      %v2435 = vsub.s32 %v2432, %v2434
      %v2436 = vrot.slane %v2429, %v2435
      %2437 = vrot.lane.b32.xlu0 %v2419, 46
      %v2438 = vpop.permute.xlu0 %2437
      %2439 = vrot.lane.b32.xlu0 %v2427, 46
      %v2440 = vpop.permute.xlu0 %2439
      %2441 = vrot.lane.b32.xlu0 %v2426, 46
      %v2442 = vpop.permute.xlu0 %2441
      %2443 = vrot.lane.b32.xlu0 %v2428, 46
      %v2444 = vpop.permute.xlu0 %2443
      %2445 = vrot.lane.b32.xlu0 %v2436, 46
      %v2446 = vpop.permute.xlu0 %2445
      %vm2447 = vcmask 375808
      %v2448 = vsel %vm2447, %v2438, %v2440
      %v2449 = vsel %vm2447, %v2440, %v2442
      %v2450 = vsel %vm2447, %v2442, %v2444
      %v2451 = vsel %vm2447, %v2444, %v2446
      %2456 = vst [vmem:[#allocation2 + $0x80] sm:$0xc] %v2448
      %2457 = vst [vmem:[#allocation2 + $0x88] sm:$0xc] %v2449
      %2458 = vst [vmem:[#allocation2 + $0x90] sm:$0xc] %v2450
      %2459 = vst [vmem:[#allocation2 + $0x98] sm:$0xc] %v2451
      %v2460 = vld [vmem:[%s240 + $0x2] sm:$0xff]
      %v2461 = vld [vmem:[%s1 + $0x20] sm:$0x22]
      %v2462 = vld [vmem:[%s1 + $0x28] sm:$0x22]
      %v2465 = vunpack.c.l.b16 %v2461
      %v2466 = vunpack.c.h.b16 %v2461
      %v2467 = vunpack.c.l.b16 %v2462
      %v2468 = vunpack.c.h.b16 %v2462
      %v2469 = vpack.c.b16 %v2465, %v2465
      %v2470 = vpack.c.b16 %v2466, %v2466
      %v2471 = vpack.c.b16 %v2467, %v2467
      %v2472 = vpack.c.b16 %v2468, %v2468
      %v2474 = vpack.i.b16 %v2469, %v2469
      %v2476 = vlaneseq
      %v2477 = vshrl.u32 %v2476, 7
      %v2478 = vsub.s32 1, %v2477
      %v2479 = vrot.slane %v2474, %v2478
      %v2481 = vpack.i.b16 %v2470, %v2470
      %v2483 = vlaneseq
      %v2484 = vshrl.u32 %v2483, 7
      %v2485 = vsub.s32 1, %v2484
      %v2486 = vrot.slane %v2481, %v2485
      %v2488 = vpack.i.b16 %v2471, %v2471
      %v2490 = vlaneseq
      %v2491 = vshrl.u32 %v2490, 7
      %v2492 = vsub.s32 1, %v2491
      %v2493 = vrot.slane %v2488, %v2492
      %v2495 = vpack.i.b16 %v2472, %v2472
      %v2497 = vlaneseq
      %v2498 = vshrl.u32 %v2497, 7
      %v2499 = vsub.s32 1, %v2498
      %v2500 = vrot.slane %v2495, %v2499
      %v2505 = vcombine.low %v2479, %v2486
      %v2506 = vcombine.low %v2493, %v2500
      %v2508 = vunpack.c.l.s4 1983009808
      %v2509 = vunpack.c.0.s8 %v2508
      %v2510 = vlaneseq
      %v2511 = vshrl.u32 %v2510, 7
      %v2512 = vsub.s32 %v2509, %v2511
      %v2513 = vrot.slane %v2505, %v2512
      %v2515 = vunpack.c.l.s4 1983009808
      %v2516 = vunpack.c.0.s8 %v2515
      %v2517 = vlaneseq
      %v2518 = vshrl.u32 %v2517, 7
      %v2519 = vsub.s32 %v2516, %v2518
      %v2520 = vrot.slane %v2506, %v2519
      %v2521 = vcombine.low %v2513, %v2520
      %v2523 = vmul.bf16 %v2460, %v2521
      %v2525 = vcombine.high %v2523, %v2523
      %v2527 = vunpack.c.l.s4 1983009808
      %v2528 = vunpack.c.0.s8 %v2527
      %v2529 = vlaneseq
      %v2530 = vshrl.u32 %v2529, 7
      %v2531 = vsub.s32 %v2528, %v2530
      %v2532 = vrot.slane %v2523, %v2531
      %v2534 = vunpack.c.l.s4 1983009808
      %v2535 = vunpack.c.0.s8 %v2534
      %v2536 = vlaneseq
      %v2537 = vshrl.u32 %v2536, 7
      %v2538 = vsub.s32 %v2535, %v2537
      %v2539 = vrot.slane %v2525, %v2538
      %v2540 = vcombine.low %v2532, %v2532
      %v2541 = vcombine.low %v2539, %v2539
      %2546 = vst [vmem:[#allocation2 + $0x80] sm:$0x30] %v2540
      %2547 = vst [vmem:[#allocation2 + $0x88] sm:$0x30] %v2532
      %2548 = vst [vmem:[#allocation2 + $0x90] sm:$0x30] %v2541
      %2549 = vst [vmem:[#allocation2 + $0x98] sm:$0x30] %v2539
      %v2550 = vld [vmem:[%s240 + $0x2] sm:$0xff]
      %v2551 = vld [vmem:[%s240 + $0xa] sm:$0x3]
      %v2552 = vld [vmem:[%s1 + $0x20] sm:$0x22]
      %v2553 = vld [vmem:[%s1 + $0x28] sm:$0x22]
      %v2556 = vunpack.c.l.b16 %v2552
      %v2557 = vunpack.c.h.b16 %v2552
      %v2558 = vunpack.c.l.b16 %v2553
      %v2559 = vunpack.c.h.b16 %v2553
      %v2560 = vpack.c.b16 %v2556, %v2556
      %v2561 = vpack.c.b16 %v2557, %v2557
      %v2562 = vpack.c.b16 %v2558, %v2558
      %v2563 = vpack.c.b16 %v2559, %v2559
      %v2565 = vshrl.u32 %v2560, 16
      %v2566 = vpack.i.b16 %v2565, %v2565
      %v2568 = vlaneseq
      %v2569 = vshrl.u32 %v2568, 7
      %v2570 = vsub.s32 1, %v2569
      %v2571 = vrot.slane %v2566, %v2570
      %v2573 = vshrl.u32 %v2561, 16
      %v2574 = vpack.i.b16 %v2573, %v2573
      %v2576 = vlaneseq
      %v2577 = vshrl.u32 %v2576, 7
      %v2578 = vsub.s32 1, %v2577
      %v2579 = vrot.slane %v2574, %v2578
      %v2581 = vshrl.u32 %v2562, 16
      %v2582 = vpack.i.b16 %v2581, %v2581
      %v2584 = vlaneseq
      %v2585 = vshrl.u32 %v2584, 7
      %v2586 = vsub.s32 1, %v2585
      %v2587 = vrot.slane %v2582, %v2586
      %v2589 = vshrl.u32 %v2563, 16
      %v2590 = vpack.i.b16 %v2589, %v2589
      %v2592 = vlaneseq
      %v2593 = vshrl.u32 %v2592, 7
      %v2594 = vsub.s32 1, %v2593
      %v2595 = vrot.slane %v2590, %v2594
      %v2600 = vcombine.low %v2571, %v2579
      %v2601 = vcombine.low %v2587, %v2595
      %v2603 = vunpack.c.l.s4 1983009808
      %v2604 = vunpack.c.0.s8 %v2603
      %v2605 = vlaneseq
      %v2606 = vshrl.u32 %v2605, 7
      %v2607 = vsub.s32 %v2604, %v2606
      %v2608 = vrot.slane %v2600, %v2607
      %v2610 = vunpack.c.l.s4 1983009808
      %v2611 = vunpack.c.0.s8 %v2610
      %v2612 = vlaneseq
      %v2613 = vshrl.u32 %v2612, 7
      %v2614 = vsub.s32 %v2611, %v2613
      %v2615 = vrot.slane %v2601, %v2614
      %v2616 = vcombine.low %v2608, %v2615
      %2617 = vrot.lane.b32.xlu0 %v2616, 1
      %v2618 = vpop.permute.xlu0 %2617
      %v2619 = vrot.slane %v2618, 6
      %v2620 = vsel %vm421, %v2619, %v2618
      %v2623 = vmul.bf16 %v2550, %v2620
      %v2624 = vmul.bf16 %v2551, %v2619
      %v2627 = vcombine.low %v2623, %v2623
      %v2629 = vunpack.c.l.s4 1983009808
      %v2630 = vunpack.c.0.s8 %v2629
      %v2631 = vlaneseq
      %v2632 = vshrl.u32 %v2631, 7
      %v2633 = vsub.s32 %v2630, %v2632
      %v2634 = vrot.slane %v2627, %v2633
      %v2636 = vunpack.c.l.s4 1983009808
      %v2637 = vunpack.c.0.s8 %v2636
      %v2638 = vlaneseq
      %v2639 = vshrl.u32 %v2638, 7
      %v2640 = vsub.s32 %v2637, %v2639
      %v2641 = vrot.slane %v2623, %v2640
      %v2642 = vcombine.low %v2634, %v2634
      %v2643 = vcombine.low %v2641, %v2641
      %v2644 = vcombine.low %v2624, %v2624
      %v2646 = vunpack.c.l.s4 1983009808
      %v2647 = vunpack.c.0.s8 %v2646
      %v2648 = vlaneseq
      %v2649 = vshrl.u32 %v2648, 7
      %v2650 = vsub.s32 %v2647, %v2649
      %v2651 = vrot.slane %v2644, %v2650
      %v2652 = vcombine.low %v2651, %v2651
      %2653 = vrot.lane.b32.xlu0 %v2642, 127
      %v2654 = vpop.permute.xlu0 %2653
      %2655 = vrot.lane.b32.xlu0 %v2634, 127
      %v2656 = vpop.permute.xlu0 %2655
      %2657 = vrot.lane.b32.xlu0 %v2643, 127
      %v2658 = vpop.permute.xlu0 %2657
      %2659 = vrot.lane.b32.xlu0 %v2641, 127
      %v2660 = vpop.permute.xlu0 %2659
      %2661 = vrot.lane.b32.xlu0 %v2652, 127
      %v2662 = vpop.permute.xlu0 %2661
      %v2663 = vsel %vm464, %v2654, %v2656
      %v2664 = vsel %vm464, %v2656, %v2658
      %v2665 = vsel %vm464, %v2658, %v2660
      %v2666 = vsel %vm464, %v2660, %v2662
      %2671 = vst [vmem:[#allocation2 + $0x80] sm:$0xc0] %v2663
      %2672 = vst [vmem:[#allocation2 + $0x88] sm:$0xc0] %v2664
      %2673 = vst [vmem:[#allocation2 + $0x90] sm:$0xc0] %v2665
      %2674 = vst [vmem:[#allocation2 + $0x98] sm:$0xc0] %v2666
      %v2675 = vld [vmem:[%s240 + $0x2] sm:$0xff]
      %v2676 = vld [vmem:[%s240 + $0xa] sm:$0x3]
      %v2677 = vld [vmem:[%s1 + $0x20] sm:$0x44]
      %v2678 = vld [vmem:[%s1 + $0x28] sm:$0x44]
      %v2681 = vunpack.c.l.b16 %v2677
      %v2682 = vunpack.c.h.b16 %v2677
      %v2683 = vunpack.c.l.b16 %v2678
      %v2684 = vunpack.c.h.b16 %v2678
      %v2685 = vpack.c.b16 %v2681, %v2681
      %v2686 = vpack.c.b16 %v2682, %v2682
      %v2687 = vpack.c.b16 %v2683, %v2683
      %v2688 = vpack.c.b16 %v2684, %v2684
      %v2690 = vpack.i.b16 %v2685, %v2685
      %v2692 = vlaneseq
      %v2693 = vshrl.u32 %v2692, 7
      %v2694 = vsub.s32 2, %v2693
      %v2695 = vrot.slane %v2690, %v2694
      %v2697 = vpack.i.b16 %v2686, %v2686
      %v2699 = vlaneseq
      %v2700 = vshrl.u32 %v2699, 7
      %v2701 = vsub.s32 2, %v2700
      %v2702 = vrot.slane %v2697, %v2701
      %v2704 = vpack.i.b16 %v2687, %v2687
      %v2706 = vlaneseq
      %v2707 = vshrl.u32 %v2706, 7
      %v2708 = vsub.s32 2, %v2707
      %v2709 = vrot.slane %v2704, %v2708
      %v2711 = vpack.i.b16 %v2688, %v2688
      %v2713 = vlaneseq
      %v2714 = vshrl.u32 %v2713, 7
      %v2715 = vsub.s32 2, %v2714
      %v2716 = vrot.slane %v2711, %v2715
      %v2721 = vcombine.low %v2695, %v2702
      %v2722 = vcombine.low %v2709, %v2716
      %v2724 = vunpack.c.l.s4 1983009808
      %v2725 = vunpack.c.0.s8 %v2724
      %v2726 = vlaneseq
      %v2727 = vshrl.u32 %v2726, 7
      %v2728 = vsub.s32 %v2725, %v2727
      %v2729 = vrot.slane %v2721, %v2728
      %v2731 = vunpack.c.l.s4 1983009808
      %v2732 = vunpack.c.0.s8 %v2731
      %v2733 = vlaneseq
      %v2734 = vshrl.u32 %v2733, 7
      %v2735 = vsub.s32 %v2732, %v2734
      %v2736 = vrot.slane %v2722, %v2735
      %v2737 = vcombine.low %v2729, %v2736
      %2738 = vrot.lane.b32.xlu0 %v2737, 2
      %v2739 = vpop.permute.xlu0 %2738
      %v2740 = vrot.slane %v2739, 6
      %v2741 = vsel %vm543, %v2740, %v2739
      %v2744 = vmul.bf16 %v2675, %v2741
      %v2745 = vmul.bf16 %v2676, %v2740
      %v2748 = vcombine.high %v2744, %v2744
      %v2750 = vunpack.c.l.s4 1983009808
      %v2751 = vunpack.c.0.s8 %v2750
      %v2752 = vlaneseq
      %v2753 = vshrl.u32 %v2752, 7
      %v2754 = vsub.s32 %v2751, %v2753
      %v2755 = vrot.slane %v2744, %v2754
      %v2757 = vunpack.c.l.s4 1983009808
      %v2758 = vunpack.c.0.s8 %v2757
      %v2759 = vlaneseq
      %v2760 = vshrl.u32 %v2759, 7
      %v2761 = vsub.s32 %v2758, %v2760
      %v2762 = vrot.slane %v2748, %v2761
      %v2763 = vcombine.high %v2755, %v2755
      %v2764 = vcombine.high %v2762, %v2762
      %v2766 = vunpack.c.l.s4 1983009808
      %v2767 = vunpack.c.0.s8 %v2766
      %v2768 = vlaneseq
      %v2769 = vshrl.u32 %v2768, 7
      %v2770 = vsub.s32 %v2767, %v2769
      %v2771 = vrot.slane %v2745, %v2770
      %2772 = vrot.lane.b32.xlu0 %v2755, 126
      %v2773 = vpop.permute.xlu0 %2772
      %2774 = vrot.lane.b32.xlu0 %v2763, 126
      %v2775 = vpop.permute.xlu0 %2774
      %2776 = vrot.lane.b32.xlu0 %v2762, 126
      %v2777 = vpop.permute.xlu0 %2776
      %2778 = vrot.lane.b32.xlu0 %v2764, 126
      %v2779 = vpop.permute.xlu0 %2778
      %2780 = vrot.lane.b32.xlu0 %v2771, 126
      %v2781 = vpop.permute.xlu0 %2780
      %v2782 = vsel %vm586, %v2773, %v2775
      %v2783 = vsel %vm586, %v2775, %v2777
      %v2784 = vsel %vm586, %v2777, %v2779
      %v2785 = vsel %vm586, %v2779, %v2781
      %2790 = vst [vmem:[#allocation2 + $0xa0] sm:$0x3] %v2782
      %2791 = vst [vmem:[#allocation2 + $0xa8] sm:$0x3] %v2783
      %2792 = vst [vmem:[#allocation2 + $0xb0] sm:$0x3] %v2784
      %2793 = vst [vmem:[#allocation2 + $0xb8] sm:$0x3] %v2785
      %v2794 = vld [vmem:[%s240 + $0x2] sm:$0xff]
      %v2795 = vld [vmem:[%s240 + $0xa] sm:$0x3]
      %v2796 = vld [vmem:[%s1 + $0x20] sm:$0x44]
      %v2797 = vld [vmem:[%s1 + $0x28] sm:$0x44]
      %v2800 = vunpack.c.l.b16 %v2796
      %v2801 = vunpack.c.h.b16 %v2796
      %v2802 = vunpack.c.l.b16 %v2797
      %v2803 = vunpack.c.h.b16 %v2797
      %v2804 = vpack.c.b16 %v2800, %v2800
      %v2805 = vpack.c.b16 %v2801, %v2801
      %v2806 = vpack.c.b16 %v2802, %v2802
      %v2807 = vpack.c.b16 %v2803, %v2803
      %v2809 = vshrl.u32 %v2804, 16
      %v2810 = vpack.i.b16 %v2809, %v2809
      %v2812 = vlaneseq
      %v2813 = vshrl.u32 %v2812, 7
      %v2814 = vsub.s32 2, %v2813
      %v2815 = vrot.slane %v2810, %v2814
      %v2817 = vshrl.u32 %v2805, 16
      %v2818 = vpack.i.b16 %v2817, %v2817
      %v2820 = vlaneseq
      %v2821 = vshrl.u32 %v2820, 7
      %v2822 = vsub.s32 2, %v2821
      %v2823 = vrot.slane %v2818, %v2822
      %v2825 = vshrl.u32 %v2806, 16
      %v2826 = vpack.i.b16 %v2825, %v2825
      %v2828 = vlaneseq
      %v2829 = vshrl.u32 %v2828, 7
      %v2830 = vsub.s32 2, %v2829
      %v2831 = vrot.slane %v2826, %v2830
      %v2833 = vshrl.u32 %v2807, 16
      %v2834 = vpack.i.b16 %v2833, %v2833
      %v2836 = vlaneseq
      %v2837 = vshrl.u32 %v2836, 7
      %v2838 = vsub.s32 2, %v2837
      %v2839 = vrot.slane %v2834, %v2838
      %v2844 = vcombine.low %v2815, %v2823
      %v2845 = vcombine.low %v2831, %v2839
      %v2847 = vunpack.c.l.s4 1983009808
      %v2848 = vunpack.c.0.s8 %v2847
      %v2849 = vlaneseq
      %v2850 = vshrl.u32 %v2849, 7
      %v2851 = vsub.s32 %v2848, %v2850
      %v2852 = vrot.slane %v2844, %v2851
      %v2854 = vunpack.c.l.s4 1983009808
      %v2855 = vunpack.c.0.s8 %v2854
      %v2856 = vlaneseq
      %v2857 = vshrl.u32 %v2856, 7
      %v2858 = vsub.s32 %v2855, %v2857
      %v2859 = vrot.slane %v2845, %v2858
      %v2860 = vcombine.low %v2852, %v2859
      %2861 = vrot.lane.b32.xlu0 %v2860, 8
      %v2862 = vpop.permute.xlu0 %2861
      %v2863 = vrot.slane %v2862, 6
      %v2864 = vsel %vm669, %v2863, %v2862
      %v2867 = vmul.bf16 %v2794, %v2864
      %v2868 = vmul.bf16 %v2795, %v2863
      %v2871 = vcombine.low %v2867, %v2867
      %v2873 = vunpack.c.l.s4 1983009808
      %v2874 = vunpack.c.0.s8 %v2873
      %v2875 = vlaneseq
      %v2876 = vshrl.u32 %v2875, 7
      %v2877 = vsub.s32 %v2874, %v2876
      %v2878 = vrot.slane %v2871, %v2877
      %v2880 = vunpack.c.l.s4 1983009808
      %v2881 = vunpack.c.0.s8 %v2880
      %v2882 = vlaneseq
      %v2883 = vshrl.u32 %v2882, 7
      %v2884 = vsub.s32 %v2881, %v2883
      %v2885 = vrot.slane %v2867, %v2884
      %v2886 = vcombine.high %v2878, %v2878
      %v2887 = vcombine.high %v2885, %v2885
      %v2888 = vcombine.low %v2868, %v2868
      %v2890 = vunpack.c.l.s4 1983009808
      %v2891 = vunpack.c.0.s8 %v2890
      %v2892 = vlaneseq
      %v2893 = vshrl.u32 %v2892, 7
      %v2894 = vsub.s32 %v2891, %v2893
      %v2895 = vrot.slane %v2888, %v2894
      %2896 = vrot.lane.b32.xlu0 %v2878, 120
      %v2897 = vpop.permute.xlu0 %2896
      %2898 = vrot.lane.b32.xlu0 %v2886, 120
      %v2899 = vpop.permute.xlu0 %2898
      %2900 = vrot.lane.b32.xlu0 %v2885, 120
      %v2901 = vpop.permute.xlu0 %2900
      %2902 = vrot.lane.b32.xlu0 %v2887, 120
      %v2903 = vpop.permute.xlu0 %2902
      %2904 = vrot.lane.b32.xlu0 %v2895, 120
      %v2905 = vpop.permute.xlu0 %2904
      %v2906 = vsel %vm713, %v2897, %v2899
      %v2907 = vsel %vm713, %v2899, %v2901
      %v2908 = vsel %vm713, %v2901, %v2903
      %v2909 = vsel %vm713, %v2903, %v2905
      %2914 = vst [vmem:[#allocation2 + $0xa0] sm:$0xc] %v2906
      %2915 = vst [vmem:[#allocation2 + $0xa8] sm:$0xc] %v2907
      %2916 = vst [vmem:[#allocation2 + $0xb0] sm:$0xc] %v2908
      %2917 = vst [vmem:[#allocation2 + $0xb8] sm:$0xc] %v2909
      %v2918 = vld [vmem:[%s240 + $0x2] sm:$0xff]
      %v2919 = vld [vmem:[%s240 + $0xa] sm:$0x3]
      %v2920 = vld [vmem:[%s1 + $0x20] sm:$0x88]
      %v2921 = vld [vmem:[%s1 + $0x28] sm:$0x88]
      %v2924 = vunpack.c.l.b16 %v2920
      %v2925 = vunpack.c.h.b16 %v2920
      %v2926 = vunpack.c.l.b16 %v2921
      %v2927 = vunpack.c.h.b16 %v2921
      %v2928 = vpack.c.b16 %v2924, %v2924
      %v2929 = vpack.c.b16 %v2925, %v2925
      %v2930 = vpack.c.b16 %v2926, %v2926
      %v2931 = vpack.c.b16 %v2927, %v2927
      %v2933 = vpack.i.b16 %v2928, %v2928
      %v2935 = vlaneseq
      %v2936 = vshrl.u32 %v2935, 7
      %v2937 = vsub.s32 3, %v2936
      %v2938 = vrot.slane %v2933, %v2937
      %v2940 = vpack.i.b16 %v2929, %v2929
      %v2942 = vlaneseq
      %v2943 = vshrl.u32 %v2942, 7
      %v2944 = vsub.s32 3, %v2943
      %v2945 = vrot.slane %v2940, %v2944
      %v2947 = vpack.i.b16 %v2930, %v2930
      %v2949 = vlaneseq
      %v2950 = vshrl.u32 %v2949, 7
      %v2951 = vsub.s32 3, %v2950
      %v2952 = vrot.slane %v2947, %v2951
      %v2954 = vpack.i.b16 %v2931, %v2931
      %v2956 = vlaneseq
      %v2957 = vshrl.u32 %v2956, 7
      %v2958 = vsub.s32 3, %v2957
      %v2959 = vrot.slane %v2954, %v2958
      %v2964 = vcombine.low %v2938, %v2945
      %v2965 = vcombine.low %v2952, %v2959
      %v2967 = vunpack.c.l.s4 1983009808
      %v2968 = vunpack.c.0.s8 %v2967
      %v2969 = vlaneseq
      %v2970 = vshrl.u32 %v2969, 7
      %v2971 = vsub.s32 %v2968, %v2970
      %v2972 = vrot.slane %v2964, %v2971
      %v2974 = vunpack.c.l.s4 1983009808
      %v2975 = vunpack.c.0.s8 %v2974
      %v2976 = vlaneseq
      %v2977 = vshrl.u32 %v2976, 7
      %v2978 = vsub.s32 %v2975, %v2977
      %v2979 = vrot.slane %v2965, %v2978
      %v2980 = vcombine.low %v2972, %v2979
      %2981 = vrot.lane.b32.xlu0 %v2980, 9
      %v2982 = vpop.permute.xlu0 %2981
      %v2983 = vrot.slane %v2982, 6
      %v2984 = vsel %vm792, %v2983, %v2982
      %v2987 = vmul.bf16 %v2918, %v2984
      %v2988 = vmul.bf16 %v2919, %v2983
      %v2991 = vcombine.high %v2987, %v2987
      %v2993 = vunpack.c.l.s4 1983009808
      %v2994 = vunpack.c.0.s8 %v2993
      %v2995 = vlaneseq
      %v2996 = vshrl.u32 %v2995, 7
      %v2997 = vsub.s32 %v2994, %v2996
      %v2998 = vrot.slane %v2987, %v2997
      %v3000 = vunpack.c.l.s4 1983009808
      %v3001 = vunpack.c.0.s8 %v3000
      %v3002 = vlaneseq
      %v3003 = vshrl.u32 %v3002, 7
      %v3004 = vsub.s32 %v3001, %v3003
      %v3005 = vrot.slane %v2991, %v3004
      %v3006 = vcombine.low %v2998, %v2998
      %v3007 = vcombine.low %v3005, %v3005
      %v3009 = vunpack.c.l.s4 1983009808
      %v3010 = vunpack.c.0.s8 %v3009
      %v3011 = vlaneseq
      %v3012 = vshrl.u32 %v3011, 7
      %v3013 = vsub.s32 %v3010, %v3012
      %v3014 = vrot.slane %v2988, %v3013
      %v3015 = vcombine.low %v3014, %v3014
      %3016 = vrot.lane.b32.xlu0 %v3006, 119
      %v3017 = vpop.permute.xlu0 %3016
      %3018 = vrot.lane.b32.xlu0 %v2998, 119
      %v3019 = vpop.permute.xlu0 %3018
      %3020 = vrot.lane.b32.xlu0 %v3007, 119
      %v3021 = vpop.permute.xlu0 %3020
      %3022 = vrot.lane.b32.xlu0 %v3005, 119
      %v3023 = vpop.permute.xlu0 %3022
      %3024 = vrot.lane.b32.xlu0 %v3015, 119
      %v3025 = vpop.permute.xlu0 %3024
      %v3026 = vsel %vm834, %v3017, %v3019
      %v3027 = vsel %vm834, %v3019, %v3021
      %v3028 = vsel %vm834, %v3021, %v3023
      %v3029 = vsel %vm834, %v3023, %v3025
      %3034 = vst [vmem:[#allocation2 + $0xa0] sm:$0x30] %v3026
      %3035 = vst [vmem:[#allocation2 + $0xa8] sm:$0x30] %v3027
      %3036 = vst [vmem:[#allocation2 + $0xb0] sm:$0x30] %v3028
      %3037 = vst [vmem:[#allocation2 + $0xb8] sm:$0x30] %v3029
      %v3038 = vld [vmem:[%s240 + $0x2] sm:$0xff]
      %v3039 = vld [vmem:[%s240 + $0xa] sm:$0x3]
      %v3040 = vld [vmem:[%s1 + $0x20] sm:$0x88]
      %v3041 = vld [vmem:[%s1 + $0x28] sm:$0x88]
      %v3044 = vunpack.c.l.b16 %v3040
      %v3045 = vunpack.c.h.b16 %v3040
      %v3046 = vunpack.c.l.b16 %v3041
      %v3047 = vunpack.c.h.b16 %v3041
      %v3048 = vpack.c.b16 %v3044, %v3044
      %v3049 = vpack.c.b16 %v3045, %v3045
      %v3050 = vpack.c.b16 %v3046, %v3046
      %v3051 = vpack.c.b16 %v3047, %v3047
      %v3053 = vshrl.u32 %v3048, 16
      %v3054 = vpack.i.b16 %v3053, %v3053
      %v3056 = vlaneseq
      %v3057 = vshrl.u32 %v3056, 7
      %v3058 = vsub.s32 3, %v3057
      %v3059 = vrot.slane %v3054, %v3058
      %v3061 = vshrl.u32 %v3049, 16
      %v3062 = vpack.i.b16 %v3061, %v3061
      %v3064 = vlaneseq
      %v3065 = vshrl.u32 %v3064, 7
      %v3066 = vsub.s32 3, %v3065
      %v3067 = vrot.slane %v3062, %v3066
      %v3069 = vshrl.u32 %v3050, 16
      %v3070 = vpack.i.b16 %v3069, %v3069
      %v3072 = vlaneseq
      %v3073 = vshrl.u32 %v3072, 7
      %v3074 = vsub.s32 3, %v3073
      %v3075 = vrot.slane %v3070, %v3074
      %v3077 = vshrl.u32 %v3051, 16
      %v3078 = vpack.i.b16 %v3077, %v3077
      %v3080 = vlaneseq
      %v3081 = vshrl.u32 %v3080, 7
      %v3082 = vsub.s32 3, %v3081
      %v3083 = vrot.slane %v3078, %v3082
      %v3088 = vcombine.low %v3059, %v3067
      %v3089 = vcombine.low %v3075, %v3083
      %v3091 = vunpack.c.l.s4 1983009808
      %v3092 = vunpack.c.0.s8 %v3091
      %v3093 = vlaneseq
      %v3094 = vshrl.u32 %v3093, 7
      %v3095 = vsub.s32 %v3092, %v3094
      %v3096 = vrot.slane %v3088, %v3095
      %v3098 = vunpack.c.l.s4 1983009808
      %v3099 = vunpack.c.0.s8 %v3098
      %v3100 = vlaneseq
      %v3101 = vshrl.u32 %v3100, 7
      %v3102 = vsub.s32 %v3099, %v3101
      %v3103 = vrot.slane %v3089, %v3102
      %v3104 = vcombine.low %v3096, %v3103
      %3105 = vrot.lane.b32.xlu0 %v3104, 10
      %v3106 = vpop.permute.xlu0 %3105
      %v3107 = vrot.slane %v3106, 6
      %v3108 = vsel %vm917, %v3107, %v3106
      %v3111 = vmul.bf16 %v3038, %v3108
      %v3112 = vmul.bf16 %v3039, %v3107
      %v3115 = vcombine.low %v3111, %v3111
      %v3117 = vunpack.c.l.s4 1983009808
      %v3118 = vunpack.c.0.s8 %v3117
      %v3119 = vlaneseq
      %v3120 = vshrl.u32 %v3119, 7
      %v3121 = vsub.s32 %v3118, %v3120
      %v3122 = vrot.slane %v3115, %v3121
      %v3124 = vunpack.c.l.s4 1983009808
      %v3125 = vunpack.c.0.s8 %v3124
      %v3126 = vlaneseq
      %v3127 = vshrl.u32 %v3126, 7
      %v3128 = vsub.s32 %v3125, %v3127
      %v3129 = vrot.slane %v3111, %v3128
      %v3130 = vcombine.low %v3122, %v3122
      %v3131 = vcombine.low %v3129, %v3129
      %v3132 = vcombine.low %v3112, %v3112
      %v3134 = vunpack.c.l.s4 1983009808
      %v3135 = vunpack.c.0.s8 %v3134
      %v3136 = vlaneseq
      %v3137 = vshrl.u32 %v3136, 7
      %v3138 = vsub.s32 %v3135, %v3137
      %v3139 = vrot.slane %v3132, %v3138
      %v3140 = vcombine.low %v3139, %v3139
      %3141 = vrot.lane.b32.xlu0 %v3130, 118
      %v3142 = vpop.permute.xlu0 %3141
      %3143 = vrot.lane.b32.xlu0 %v3122, 118
      %v3144 = vpop.permute.xlu0 %3143
      %3145 = vrot.lane.b32.xlu0 %v3131, 118
      %v3146 = vpop.permute.xlu0 %3145
      %3147 = vrot.lane.b32.xlu0 %v3129, 118
      %v3148 = vpop.permute.xlu0 %3147
      %3149 = vrot.lane.b32.xlu0 %v3140, 118
      %v3150 = vpop.permute.xlu0 %3149
      %v3151 = vsel %vm960, %v3142, %v3144
      %v3152 = vsel %vm960, %v3144, %v3146
      %v3153 = vsel %vm960, %v3146, %v3148
      %v3154 = vsel %vm960, %v3148, %v3150
      %3159 = vst [vmem:[#allocation2 + $0xa0] sm:$0xc0] %v3151
      %3160 = vst [vmem:[#allocation2 + $0xa8] sm:$0xc0] %v3152
      %3161 = vst [vmem:[#allocation2 + $0xb0] sm:$0xc0] %v3153
      %3162 = vst [vmem:[#allocation2 + $0xb8] sm:$0xc0] %v3154
      %v3163 = vld [vmem:[%s240 + $0x2] sm:$0xff]
      %v3164 = vld [vmem:[%s240 + $0xa] sm:$0x3]
      %v3165 = vld [vmem:[%s1 + $0x30] sm:$0x11]
      %v3166 = vld [vmem:[%s1 + $0x38] sm:$0x11]
      %v3169 = vunpack.c.l.b16 %v3165
      %v3170 = vunpack.c.h.b16 %v3165
      %v3171 = vunpack.c.l.b16 %v3166
      %v3172 = vunpack.c.h.b16 %v3166
      %v3173 = vpack.c.b16 %v3169, %v3169
      %v3174 = vpack.c.b16 %v3170, %v3170
      %v3175 = vpack.c.b16 %v3171, %v3171
      %v3176 = vpack.c.b16 %v3172, %v3172
      %v3178 = vpack.i.b16 %v3173, %v3173
      %v3180 = vlaneseq
      %v3181 = vshrl.u32 %v3180, 7
      %v3182 = vsub.s32 0, %v3181
      %v3183 = vrot.slane %v3178, %v3182
      %v3185 = vpack.i.b16 %v3174, %v3174
      %v3187 = vlaneseq
      %v3188 = vshrl.u32 %v3187, 7
      %v3189 = vsub.s32 0, %v3188
      %v3190 = vrot.slane %v3185, %v3189
      %v3192 = vpack.i.b16 %v3175, %v3175
      %v3194 = vlaneseq
      %v3195 = vshrl.u32 %v3194, 7
      %v3196 = vsub.s32 0, %v3195
      %v3197 = vrot.slane %v3192, %v3196
      %v3199 = vpack.i.b16 %v3176, %v3176
      %v3201 = vlaneseq
      %v3202 = vshrl.u32 %v3201, 7
      %v3203 = vsub.s32 0, %v3202
      %v3204 = vrot.slane %v3199, %v3203
      %v3209 = vcombine.low %v3183, %v3190
      %v3210 = vcombine.low %v3197, %v3204
      %v3212 = vunpack.c.l.s4 1983009808
      %v3213 = vunpack.c.0.s8 %v3212
      %v3214 = vlaneseq
      %v3215 = vshrl.u32 %v3214, 7
      %v3216 = vsub.s32 %v3213, %v3215
      %v3217 = vrot.slane %v3209, %v3216
      %v3219 = vunpack.c.l.s4 1983009808
      %v3220 = vunpack.c.0.s8 %v3219
      %v3221 = vlaneseq
      %v3222 = vshrl.u32 %v3221, 7
      %v3223 = vsub.s32 %v3220, %v3222
      %v3224 = vrot.slane %v3210, %v3223
      %v3225 = vcombine.low %v3217, %v3224
      %3226 = vrot.lane.b32.xlu0 %v3225, 16
      %v3227 = vpop.permute.xlu0 %3226
      %v3228 = vrot.slane %v3227, 6
      %v3229 = vsel %vm1039, %v3228, %v3227
      %v3232 = vmul.bf16 %v3163, %v3229
      %v3233 = vmul.bf16 %v3164, %v3228
      %v3236 = vcombine.high %v3232, %v3232
      %v3238 = vunpack.c.l.s4 1983009808
      %v3239 = vunpack.c.0.s8 %v3238
      %v3240 = vlaneseq
      %v3241 = vshrl.u32 %v3240, 7
      %v3242 = vsub.s32 %v3239, %v3241
      %v3243 = vrot.slane %v3232, %v3242
      %v3245 = vunpack.c.l.s4 1983009808
      %v3246 = vunpack.c.0.s8 %v3245
      %v3247 = vlaneseq
      %v3248 = vshrl.u32 %v3247, 7
      %v3249 = vsub.s32 %v3246, %v3248
      %v3250 = vrot.slane %v3236, %v3249
      %v3251 = vcombine.high %v3243, %v3243
      %v3252 = vcombine.high %v3250, %v3250
      %v3254 = vunpack.c.l.s4 1983009808
      %v3255 = vunpack.c.0.s8 %v3254
      %v3256 = vlaneseq
      %v3257 = vshrl.u32 %v3256, 7
      %v3258 = vsub.s32 %v3255, %v3257
      %v3259 = vrot.slane %v3233, %v3258
      %3260 = vrot.lane.b32.xlu0 %v3243, 112
      %v3261 = vpop.permute.xlu0 %3260
      %3262 = vrot.lane.b32.xlu0 %v3251, 112
      %v3263 = vpop.permute.xlu0 %3262
      %3264 = vrot.lane.b32.xlu0 %v3250, 112
      %v3265 = vpop.permute.xlu0 %3264
      %3266 = vrot.lane.b32.xlu0 %v3252, 112
      %v3267 = vpop.permute.xlu0 %3266
      %3268 = vrot.lane.b32.xlu0 %v3259, 112
      %v3269 = vpop.permute.xlu0 %3268
      %v3270 = vsel %vm1082, %v3261, %v3263
      %v3271 = vsel %vm1082, %v3263, %v3265
      %v3272 = vsel %vm1082, %v3265, %v3267
      %v3273 = vsel %vm1082, %v3267, %v3269
      %3278 = vst [vmem:[#allocation2 + $0xc0] sm:$0x3] %v3270
      %3279 = vst [vmem:[#allocation2 + $0xc8] sm:$0x3] %v3271
      %3280 = vst [vmem:[#allocation2 + $0xd0] sm:$0x3] %v3272
      %3281 = vst [vmem:[#allocation2 + $0xd8] sm:$0x3] %v3273
      %v3282 = vld [vmem:[%s240 + $0x2] sm:$0xff]
      %v3283 = vld [vmem:[%s240 + $0xa] sm:$0x3]
      %v3284 = vld [vmem:[%s1 + $0x30] sm:$0x11]
      %v3285 = vld [vmem:[%s1 + $0x38] sm:$0x11]
      %v3288 = vunpack.c.l.b16 %v3284
      %v3289 = vunpack.c.h.b16 %v3284
      %v3290 = vunpack.c.l.b16 %v3285
      %v3291 = vunpack.c.h.b16 %v3285
      %v3292 = vpack.c.b16 %v3288, %v3288
      %v3293 = vpack.c.b16 %v3289, %v3289
      %v3294 = vpack.c.b16 %v3290, %v3290
      %v3295 = vpack.c.b16 %v3291, %v3291
      %v3297 = vshrl.u32 %v3292, 16
      %v3298 = vpack.i.b16 %v3297, %v3297
      %v3300 = vlaneseq
      %v3301 = vshrl.u32 %v3300, 7
      %v3302 = vsub.s32 0, %v3301
      %v3303 = vrot.slane %v3298, %v3302
      %v3305 = vshrl.u32 %v3293, 16
      %v3306 = vpack.i.b16 %v3305, %v3305
      %v3308 = vlaneseq
      %v3309 = vshrl.u32 %v3308, 7
      %v3310 = vsub.s32 0, %v3309
      %v3311 = vrot.slane %v3306, %v3310
      %v3313 = vshrl.u32 %v3294, 16
      %v3314 = vpack.i.b16 %v3313, %v3313
      %v3316 = vlaneseq
      %v3317 = vshrl.u32 %v3316, 7
      %v3318 = vsub.s32 0, %v3317
      %v3319 = vrot.slane %v3314, %v3318
      %v3321 = vshrl.u32 %v3295, 16
      %v3322 = vpack.i.b16 %v3321, %v3321
      %v3324 = vlaneseq
      %v3325 = vshrl.u32 %v3324, 7
      %v3326 = vsub.s32 0, %v3325
      %v3327 = vrot.slane %v3322, %v3326
      %v3332 = vcombine.low %v3303, %v3311
      %v3333 = vcombine.low %v3319, %v3327
      %v3335 = vunpack.c.l.s4 1983009808
      %v3336 = vunpack.c.0.s8 %v3335
      %v3337 = vlaneseq
      %v3338 = vshrl.u32 %v3337, 7
      %v3339 = vsub.s32 %v3336, %v3338
      %v3340 = vrot.slane %v3332, %v3339
      %v3342 = vunpack.c.l.s4 1983009808
      %v3343 = vunpack.c.0.s8 %v3342
      %v3344 = vlaneseq
      %v3345 = vshrl.u32 %v3344, 7
      %v3346 = vsub.s32 %v3343, %v3345
      %v3347 = vrot.slane %v3333, %v3346
      %v3348 = vcombine.low %v3340, %v3347
      %3349 = vrot.lane.b32.xlu0 %v3348, 17
      %v3350 = vpop.permute.xlu0 %3349
      %v3351 = vrot.slane %v3350, 6
      %v3352 = vsel %vm1165, %v3351, %v3350
      %v3355 = vmul.bf16 %v3282, %v3352
      %v3356 = vmul.bf16 %v3283, %v3351
      %v3359 = vcombine.low %v3355, %v3355
      %v3361 = vunpack.c.l.s4 1983009808
      %v3362 = vunpack.c.0.s8 %v3361
      %v3363 = vlaneseq
      %v3364 = vshrl.u32 %v3363, 7
      %v3365 = vsub.s32 %v3362, %v3364
      %v3366 = vrot.slane %v3359, %v3365
      %v3368 = vunpack.c.l.s4 1983009808
      %v3369 = vunpack.c.0.s8 %v3368
      %v3370 = vlaneseq
      %v3371 = vshrl.u32 %v3370, 7
      %v3372 = vsub.s32 %v3369, %v3371
      %v3373 = vrot.slane %v3355, %v3372
      %v3374 = vcombine.high %v3366, %v3366
      %v3375 = vcombine.high %v3373, %v3373
      %v3376 = vcombine.low %v3356, %v3356
      %v3378 = vunpack.c.l.s4 1983009808
      %v3379 = vunpack.c.0.s8 %v3378
      %v3380 = vlaneseq
      %v3381 = vshrl.u32 %v3380, 7
      %v3382 = vsub.s32 %v3379, %v3381
      %v3383 = vrot.slane %v3376, %v3382
      %3384 = vrot.lane.b32.xlu0 %v3366, 111
      %v3385 = vpop.permute.xlu0 %3384
      %3386 = vrot.lane.b32.xlu0 %v3374, 111
      %v3387 = vpop.permute.xlu0 %3386
      %3388 = vrot.lane.b32.xlu0 %v3373, 111
      %v3389 = vpop.permute.xlu0 %3388
      %3390 = vrot.lane.b32.xlu0 %v3375, 111
      %v3391 = vpop.permute.xlu0 %3390
      %3392 = vrot.lane.b32.xlu0 %v3383, 111
      %v3393 = vpop.permute.xlu0 %3392
      %v3394 = vsel %vm1209, %v3385, %v3387
      %v3395 = vsel %vm1209, %v3387, %v3389
      %v3396 = vsel %vm1209, %v3389, %v3391
      %v3397 = vsel %vm1209, %v3391, %v3393
      %3402 = vst [vmem:[#allocation2 + $0xc0] sm:$0xc] %v3394
      %3403 = vst [vmem:[#allocation2 + $0xc8] sm:$0xc] %v3395
      %3404 = vst [vmem:[#allocation2 + $0xd0] sm:$0xc] %v3396
      %3405 = vst [vmem:[#allocation2 + $0xd8] sm:$0xc] %v3397
      %v3406 = vld [vmem:[%s240 + $0x2] sm:$0xff]
      %v3407 = vld [vmem:[%s240 + $0xa] sm:$0x3]
      %v3408 = vld [vmem:[%s1 + $0x30] sm:$0x22]
      %v3409 = vld [vmem:[%s1 + $0x38] sm:$0x22]
      %v3412 = vunpack.c.l.b16 %v3408
      %v3413 = vunpack.c.h.b16 %v3408
      %v3414 = vunpack.c.l.b16 %v3409
      %v3415 = vunpack.c.h.b16 %v3409
      %v3416 = vpack.c.b16 %v3412, %v3412
      %v3417 = vpack.c.b16 %v3413, %v3413
      %v3418 = vpack.c.b16 %v3414, %v3414
      %v3419 = vpack.c.b16 %v3415, %v3415
      %v3421 = vpack.i.b16 %v3416, %v3416
      %v3423 = vlaneseq
      %v3424 = vshrl.u32 %v3423, 7
      %v3425 = vsub.s32 1, %v3424
      %v3426 = vrot.slane %v3421, %v3425
      %v3428 = vpack.i.b16 %v3417, %v3417
      %v3430 = vlaneseq
      %v3431 = vshrl.u32 %v3430, 7
      %v3432 = vsub.s32 1, %v3431
      %v3433 = vrot.slane %v3428, %v3432
      %v3435 = vpack.i.b16 %v3418, %v3418
      %v3437 = vlaneseq
      %v3438 = vshrl.u32 %v3437, 7
      %v3439 = vsub.s32 1, %v3438
      %v3440 = vrot.slane %v3435, %v3439
      %v3442 = vpack.i.b16 %v3419, %v3419
      %v3444 = vlaneseq
      %v3445 = vshrl.u32 %v3444, 7
      %v3446 = vsub.s32 1, %v3445
      %v3447 = vrot.slane %v3442, %v3446
      %v3452 = vcombine.low %v3426, %v3433
      %v3453 = vcombine.low %v3440, %v3447
      %v3455 = vunpack.c.l.s4 1983009808
      %v3456 = vunpack.c.0.s8 %v3455
      %v3457 = vlaneseq
      %v3458 = vshrl.u32 %v3457, 7
      %v3459 = vsub.s32 %v3456, %v3458
      %v3460 = vrot.slane %v3452, %v3459
      %v3462 = vunpack.c.l.s4 1983009808
      %v3463 = vunpack.c.0.s8 %v3462
      %v3464 = vlaneseq
      %v3465 = vshrl.u32 %v3464, 7
      %v3466 = vsub.s32 %v3463, %v3465
      %v3467 = vrot.slane %v3453, %v3466
      %v3468 = vcombine.low %v3460, %v3467
      %3469 = vrot.lane.b32.xlu0 %v3468, 18
      %v3470 = vpop.permute.xlu0 %3469
      %v3471 = vrot.slane %v3470, 6
      %v3472 = vsel %vm1288, %v3471, %v3470
      %v3475 = vmul.bf16 %v3406, %v3472
      %v3476 = vmul.bf16 %v3407, %v3471
      %v3479 = vcombine.high %v3475, %v3475
      %v3481 = vunpack.c.l.s4 1983009808
      %v3482 = vunpack.c.0.s8 %v3481
      %v3483 = vlaneseq
      %v3484 = vshrl.u32 %v3483, 7
      %v3485 = vsub.s32 %v3482, %v3484
      %v3486 = vrot.slane %v3475, %v3485
      %v3488 = vunpack.c.l.s4 1983009808
      %v3489 = vunpack.c.0.s8 %v3488
      %v3490 = vlaneseq
      %v3491 = vshrl.u32 %v3490, 7
      %v3492 = vsub.s32 %v3489, %v3491
      %v3493 = vrot.slane %v3479, %v3492
      %v3494 = vcombine.low %v3486, %v3486
      %v3495 = vcombine.low %v3493, %v3493
      %v3497 = vunpack.c.l.s4 1983009808
      %v3498 = vunpack.c.0.s8 %v3497
      %v3499 = vlaneseq
      %v3500 = vshrl.u32 %v3499, 7
      %v3501 = vsub.s32 %v3498, %v3500
      %v3502 = vrot.slane %v3476, %v3501
      %v3503 = vcombine.low %v3502, %v3502
      %3504 = vrot.lane.b32.xlu0 %v3494, 110
      %v3505 = vpop.permute.xlu0 %3504
      %3506 = vrot.lane.b32.xlu0 %v3486, 110
      %v3507 = vpop.permute.xlu0 %3506
      %3508 = vrot.lane.b32.xlu0 %v3495, 110
      %v3509 = vpop.permute.xlu0 %3508
      %3510 = vrot.lane.b32.xlu0 %v3493, 110
      %v3511 = vpop.permute.xlu0 %3510
      %3512 = vrot.lane.b32.xlu0 %v3503, 110
      %v3513 = vpop.permute.xlu0 %3512
      %v3514 = vsel %vm1330, %v3505, %v3507
      %v3515 = vsel %vm1330, %v3507, %v3509
      %v3516 = vsel %vm1330, %v3509, %v3511
      %v3517 = vsel %vm1330, %v3511, %v3513
      %3522 = vst [vmem:[#allocation2 + $0xc0] sm:$0x30] %v3514
      %3523 = vst [vmem:[#allocation2 + $0xc8] sm:$0x30] %v3515
      %3524 = vst [vmem:[#allocation2 + $0xd0] sm:$0x30] %v3516
      %3525 = vst [vmem:[#allocation2 + $0xd8] sm:$0x30] %v3517
      %3526 = vst [vmem:[#allocation2 + $0xc0] sm:$0xc0] 0
      %3527 = vst [vmem:[#allocation2 + $0xc8] sm:$0xc0] 0
      %3528 = vst [vmem:[#allocation2 + $0xd0] sm:$0xc0] 0
      %3529 = vst [vmem:[#allocation2 + $0xd8] sm:$0xc0] 0
      %v3530 = vld [vmem:[%s245] sm:$0xf]
      %v3531 = vld [vmem:[%s245 + $0x4] sm:$0xf]
      %v3532 = vld [vmem:[%s245 + $0x8] sm:$0xf]
      %v3533 = vld [vmem:[%s245 + $0xc] sm:$0xf]
      %v3534 = vld [vmem:[%s245 + $0x10] sm:$0xf]
      %v3535 = vld [vmem:[%s245 + $0x14] sm:$0xf]
      %v3536 = vld [vmem:[%s245 + $0x18] sm:$0xf]
      %v3537 = vld [vmem:[%s245 + $0x1c] sm:$0xf]
      %v3538 = vld [vmem:[#allocation2] sm:$0xff]
      %v3539 = vld [vmem:[#allocation2 + $0x8] sm:$0xff]
      %v3540 = vld [vmem:[#allocation2 + $0x10] sm:$0xff]
      %v3541 = vld [vmem:[#allocation2 + $0x18] sm:$0xff]
      %v3542 = vld [vmem:[#allocation2 + $0x20] sm:$0xff]
      %v3543 = vld [vmem:[#allocation2 + $0x28] sm:$0xff]
      %v3544 = vld [vmem:[#allocation2 + $0x30] sm:$0xff]
      %v3545 = vld [vmem:[#allocation2 + $0x38] sm:$0xff]
      %v3546 = vld [vmem:[#allocation2 + $0x40] sm:$0xff]
      %v3547 = vld [vmem:[#allocation2 + $0x48] sm:$0xff]
      %v3548 = vld [vmem:[#allocation2 + $0x50] sm:$0xff]
      %v3549 = vld [vmem:[#allocation2 + $0x58] sm:$0xff]
      %v3550 = vld [vmem:[#allocation2 + $0x60] sm:$0xff]
      %v3551 = vld [vmem:[#allocation2 + $0x68] sm:$0xff]
      %v3552 = vld [vmem:[#allocation2 + $0x70] sm:$0xff]
      %v3553 = vld [vmem:[#allocation2 + $0x78] sm:$0xff]
      %v3554 = vld [vmem:[#allocation2 + $0x80] sm:$0xff]
      %v3555 = vld [vmem:[#allocation2 + $0x88] sm:$0xff]
      %v3556 = vld [vmem:[#allocation2 + $0x90] sm:$0xff]
      %v3557 = vld [vmem:[#allocation2 + $0x98] sm:$0xff]
      %v3558 = vld [vmem:[#allocation2 + $0xa0] sm:$0xff]
      %v3559 = vld [vmem:[#allocation2 + $0xa8] sm:$0xff]
      %v3560 = vld [vmem:[#allocation2 + $0xb0] sm:$0xff]
      %v3561 = vld [vmem:[#allocation2 + $0xb8] sm:$0xff]
      %v3562 = vld [vmem:[#allocation2 + $0xc0] sm:$0xff]
      %v3563 = vld [vmem:[#allocation2 + $0xc8] sm:$0xff]
      %v3564 = vld [vmem:[#allocation2 + $0xd0] sm:$0xff]
      %v3565 = vld [vmem:[#allocation2 + $0xd8] sm:$0xff]
      %v3566 = vld [vmem:[%s250] sm:$0xff]
      %v3567 = vld [vmem:[%s250 + $0x8] sm:$0xff]
      %v3568 = vld [vmem:[%s250 + $0x10] sm:$0xff]
      %v3569 = vld [vmem:[%s250 + $0x18] sm:$0xff]
      %v3570 = vld [vmem:[%s250 + $0x20] sm:$0xff]
      %v3571 = vld [vmem:[%s250 + $0x28] sm:$0xff]
      %v3572 = vld [vmem:[%s250 + $0x30] sm:$0xff]
      %v3573 = vld [vmem:[%s250 + $0x38] sm:$0xff]
      %3575 = vset.pattern.permute.xlu0 0
      %3576 = vperm.xlu0 %3575, %v3566
      %v3577 = vpop.permute.xlu0 %3576
      %3580 = vset.pattern.permute.xlu0 0
      %3581 = vperm.xlu0 %3580, %v3567
      %v3582 = vpop.permute.xlu0 %3581
      %3585 = vset.pattern.permute.xlu0 0
      %3586 = vperm.xlu0 %3585, %v3568
      %v3587 = vpop.permute.xlu0 %3586
      %3590 = vset.pattern.permute.xlu0 0
      %3591 = vperm.xlu0 %3590, %v3569
      %v3592 = vpop.permute.xlu0 %3591
      %3595 = vset.pattern.permute.xlu0 0
      %3596 = vperm.xlu0 %3595, %v3570
      %v3597 = vpop.permute.xlu0 %3596
      %3600 = vset.pattern.permute.xlu0 0
      %3601 = vperm.xlu0 %3600, %v3571
      %v3602 = vpop.permute.xlu0 %3601
      %3605 = vset.pattern.permute.xlu0 0
      %3606 = vperm.xlu0 %3605, %v3572
      %v3607 = vpop.permute.xlu0 %3606
      %3610 = vset.pattern.permute.xlu0 0
      %3611 = vperm.xlu0 %3610, %v3573
      %v3612 = vpop.permute.xlu0 %3611
      %v3622 = vunpack.c.l.b16 %v3530
      %v3623 = vunpack.c.l.b16 %v3531
      %v3624 = vunpack.c.l.b16 %v3532
      %v3625 = vunpack.c.l.b16 %v3533
      %v3626 = vunpack.c.l.b16 %v3534
      %v3627 = vunpack.c.l.b16 %v3535
      %v3628 = vunpack.c.l.b16 %v3536
      %v3629 = vunpack.c.l.b16 %v3537
      %v3630 = vpack.c.b16 %v3623, %v3622
      %v3631 = vpack.c.b16 %v3625, %v3624
      %v3632 = vpack.c.b16 %v3627, %v3626
      %v3633 = vpack.c.b16 %v3629, %v3628
      %vm3634 = vcmask 916480
      %v3636 = vsel %vm3634, %v3630, 0
      %v3639 = vsel %vm3634, %v3631, 0
      %v3642 = vsel %vm3634, %v3632, 0
      %v3645 = vsel %vm3634, %v3633, 0
      %3647 = vmatprep.subr.bf16.mxu0 %v3539
      %3648 = vmatpush1.bf16.msra.mxu0 %v3538
      %3649 = vmatprep.subr.bf16.mxu0 %v3543
      %3650 = vmatpush1.bf16.msra.mxu0 %v3542
      %3651 = vmatprep.subr.bf16.mxu0 %v3547
      %3652 = vmatpush1.bf16.msra.mxu0 %v3546
      %3653 = vmatprep.subr.bf16.mxu0 %v3551
      %3654 = vmatpush1.bf16.msra.mxu0 %v3550
      %3655 = vmatprep.subr.bf16.mxu0 %v3555
      %3656 = vmatpush1.bf16.msra.mxu0 %v3554
      %3657 = vmatprep.subr.bf16.mxu0 %v3559
      %3658 = vmatpush1.bf16.msra.mxu0 %v3558
      %3659 = vmatprep.subr.bf16.mxu0 %v3563
      %3660 = vmatpush1.bf16.msra.mxu0 %v3562
      %3661 = vmatprep.subr.bf16.mxu0 0
      %3662 = vmatpush1.bf16.msra.mxu0 0
      %3663 = vmatprep.subr.bf16.mxu0 0
      %3664 = vmatpush1.bf16.msra.mxu0 0
      %3665 = vmatprep.subr.bf16.mxu0 0
      %3666 = vmatpush1.bf16.msra.mxu0 0
      %3667 = vmatprep.subr.bf16.mxu0 0
      %3668 = vmatpush1.bf16.msra.mxu0 0
      %3669 = vmatprep.subr.bf16.mxu0 0
      %3670 = vmatpush1.bf16.msra.mxu0 0
      %3671 = vmatprep.subr.bf16.mxu0 0
      %3672 = vmatpush1.bf16.msra.mxu0 0
      %3673 = vmatprep.subr.bf16.mxu0 0
      %3674 = vmatpush1.bf16.msra.mxu0 0
      %3675 = vmatprep.subr.bf16.mxu0 0
      %3676 = vmatpush1.bf16.msra.mxu0 0
      %3677 = vmatprep.subr.bf16.mxu0 0
      %3678 = vmatpush1.bf16.msra.mxu0 0
      %3679 = vmatprep.mubr.bf16.mxu0 0
      %3680 = vmatmul.mubr.bf16.gmra.mrb[0].mxu0 %v3636
      %v3681 = vpop.f32.mrb[0].mxu0
      %v3682 = vadd.f32 %v3577, %v3681
      %v3683 = vpop.f32.mrb[0].mxu0
      %v3684 = vadd.f32 %v3577, %v3683
      %v3685 = vpop.f32.mrb[0].mxu0
      %v3686 = vadd.f32 %v3582, %v3685
      %v3687 = vpop.f32.mrb[0].mxu0
      %v3688 = vadd.f32 %v3582, %v3687
      %3689 = vmatprep.mubr.bf16.mxu0 0
      %3690 = vmatmul.mubr.bf16.gmra.mrb[0].mxu0 %v3639
      %v3691 = vpop.f32.mrb[0].mxu0
      %v3692 = vadd.f32 %v3587, %v3691
      %v3693 = vpop.f32.mrb[0].mxu0
      %v3694 = vadd.f32 %v3587, %v3693
      %v3695 = vpop.f32.mrb[0].mxu0
      %v3696 = vadd.f32 %v3592, %v3695
      %v3697 = vpop.f32.mrb[0].mxu0
      %v3698 = vadd.f32 %v3592, %v3697
      %3699 = vmatprep.mubr.bf16.mxu0 0
      %3700 = vmatmul.mubr.bf16.gmra.mrb[0].mxu0 %v3642
      %v3701 = vpop.f32.mrb[0].mxu0
      %v3702 = vadd.f32 %v3597, %v3701
      %v3703 = vpop.f32.mrb[0].mxu0
      %v3704 = vadd.f32 %v3597, %v3703
      %v3705 = vpop.f32.mrb[0].mxu0
      %v3706 = vadd.f32 %v3602, %v3705
      %v3707 = vpop.f32.mrb[0].mxu0
      %v3708 = vadd.f32 %v3602, %v3707
      %3709 = vmatprep.mubr.bf16.mxu0 0
      %3710 = vmatmul.mubr.bf16.gmra.mrb[0].mxu0 %v3645
      %v3711 = vpop.f32.mrb[0].mxu0
      %v3712 = vadd.f32 %v3607, %v3711
      %v3713 = vpop.f32.mrb[0].mxu0
      %v3714 = vadd.f32 %v3607, %v3713
      %v3715 = vpop.f32.mrb[0].mxu0
      %v3716 = vadd.f32 %v3612, %v3715
      %v3717 = vpop.f32.mrb[0].mxu0
      %v3718 = vadd.f32 %v3612, %v3717
      %3719 = vdwg.mxu0
      %3720 = vmatprep.subr.bf16.mxu0 %v3541
      %3721 = vmatpush1.bf16.msra.mxu0 %v3540
      %3722 = vmatprep.subr.bf16.mxu0 %v3545
      %3723 = vmatpush1.bf16.msra.mxu0 %v3544
      %3724 = vmatprep.subr.bf16.mxu0 %v3549
      %3725 = vmatpush1.bf16.msra.mxu0 %v3548
      %3726 = vmatprep.subr.bf16.mxu0 %v3553
      %3727 = vmatpush1.bf16.msra.mxu0 %v3552
      %3728 = vmatprep.subr.bf16.mxu0 %v3557
      %3729 = vmatpush1.bf16.msra.mxu0 %v3556
      %3730 = vmatprep.subr.bf16.mxu0 %v3561
      %3731 = vmatpush1.bf16.msra.mxu0 %v3560
      %3732 = vmatprep.subr.bf16.mxu0 %v3565
      %3733 = vmatpush1.bf16.msra.mxu0 %v3564
      %3734 = vmatprep.subr.bf16.mxu0 0
      %3735 = vmatpush1.bf16.msra.mxu0 0
      %3736 = vmatprep.subr.bf16.mxu0 0
      %3737 = vmatpush1.bf16.msra.mxu0 0
      %3738 = vmatprep.subr.bf16.mxu0 0
      %3739 = vmatpush1.bf16.msra.mxu0 0
      %3740 = vmatprep.subr.bf16.mxu0 0
      %3741 = vmatpush1.bf16.msra.mxu0 0
      %3742 = vmatprep.subr.bf16.mxu0 0
      %3743 = vmatpush1.bf16.msra.mxu0 0
      %3744 = vmatprep.subr.bf16.mxu0 0
      %3745 = vmatpush1.bf16.msra.mxu0 0
      %3746 = vmatprep.subr.bf16.mxu0 0
      %3747 = vmatpush1.bf16.msra.mxu0 0
      %3748 = vmatprep.subr.bf16.mxu0 0
      %3749 = vmatpush1.bf16.msra.mxu0 0
      %3750 = vmatprep.subr.bf16.mxu0 0
      %3751 = vmatpush1.bf16.msra.mxu0 0
      %3752 = vmatprep.mubr.bf16.mxu0 0
      %3753 = vmatmul.mubr.bf16.gmra.mrb[0].mxu0 %v3636
      %v3754 = vpop.f32.mrb[0].mxu0
      %v3755 = vadd.f32 %v3577, %v3754
      %v3756 = vpop.f32.mrb[0].mxu0
      %v3757 = vadd.f32 %v3577, %v3756
      %v3758 = vpop.f32.mrb[0].mxu0
      %v3759 = vadd.f32 %v3582, %v3758
      %v3760 = vpop.f32.mrb[0].mxu0
      %v3761 = vadd.f32 %v3582, %v3760
      %3762 = vmatprep.mubr.bf16.mxu0 0
      %3763 = vmatmul.mubr.bf16.gmra.mrb[0].mxu0 %v3639
      %v3764 = vpop.f32.mrb[0].mxu0
      %v3765 = vadd.f32 %v3587, %v3764
      %v3766 = vpop.f32.mrb[0].mxu0
      %v3767 = vadd.f32 %v3587, %v3766
      %v3768 = vpop.f32.mrb[0].mxu0
      %v3769 = vadd.f32 %v3592, %v3768
      %v3770 = vpop.f32.mrb[0].mxu0
      %v3771 = vadd.f32 %v3592, %v3770
      %3772 = vmatprep.mubr.bf16.mxu0 0
      %3773 = vmatmul.mubr.bf16.gmra.mrb[0].mxu0 %v3642
      %v3774 = vpop.f32.mrb[0].mxu0
      %v3775 = vadd.f32 %v3597, %v3774
      %v3776 = vpop.f32.mrb[0].mxu0
      %v3777 = vadd.f32 %v3597, %v3776
      %v3778 = vpop.f32.mrb[0].mxu0
      %v3779 = vadd.f32 %v3602, %v3778
      %v3780 = vpop.f32.mrb[0].mxu0
      %v3781 = vadd.f32 %v3602, %v3780
      %3782 = vmatprep.mubr.bf16.mxu0 0
      %3783 = vmatmul.mubr.bf16.gmra.mrb[0].mxu0 %v3645
      %v3784 = vpop.f32.mrb[0].mxu0
      %v3785 = vadd.f32 %v3607, %v3784
      %v3786 = vpop.f32.mrb[0].mxu0
      %v3787 = vadd.f32 %v3607, %v3786
      %v3788 = vpop.f32.mrb[0].mxu0
      %v3789 = vadd.f32 %v3612, %v3788
      %v3790 = vpop.f32.mrb[0].mxu0
      %v3791 = vadd.f32 %v3612, %v3790
      %3792 = vdwg.mxu0
      %3793 = vst [vmem:[#allocation3] sm:$0xff] %v3682
      %3794 = vst [vmem:[#allocation3 + $0x8] sm:$0xff] %v3684
      %3795 = vst [vmem:[#allocation3 + $0x10] sm:$0xff] %v3755
      %3796 = vst [vmem:[#allocation3 + $0x18] sm:$0xff] %v3757
      %3797 = vst [vmem:[#allocation3 + $0x20] sm:$0xff] %v3686
      %3798 = vst [vmem:[#allocation3 + $0x28] sm:$0xff] %v3688
      %3799 = vst [vmem:[#allocation3 + $0x30] sm:$0xff] %v3759
      %3800 = vst [vmem:[#allocation3 + $0x38] sm:$0xff] %v3761
      %3801 = vst [vmem:[#allocation3 + $0x40] sm:$0xff] %v3692
      %3802 = vst [vmem:[#allocation3 + $0x48] sm:$0xff] %v3694
      %3803 = vst [vmem:[#allocation3 + $0x50] sm:$0xff] %v3765
      %3804 = vst [vmem:[#allocation3 + $0x58] sm:$0xff] %v3767
      %3805 = vst [vmem:[#allocation3 + $0x60] sm:$0xff] %v3696
      %3806 = vst [vmem:[#allocation3 + $0x68] sm:$0xff] %v3698
      %3807 = vst [vmem:[#allocation3 + $0x70] sm:$0xff] %v3769
      %3808 = vst [vmem:[#allocation3 + $0x78] sm:$0xff] %v3771
      %3809 = vst [vmem:[#allocation3 + $0x80] sm:$0xff] %v3702
      %3810 = vst [vmem:[#allocation3 + $0x88] sm:$0xff] %v3704
      %3811 = vst [vmem:[#allocation3 + $0x90] sm:$0xff] %v3775
      %3812 = vst [vmem:[#allocation3 + $0x98] sm:$0xff] %v3777
      %3813 = vst [vmem:[#allocation3 + $0xa0] sm:$0xff] %v3706
      %3814 = vst [vmem:[#allocation3 + $0xa8] sm:$0xff] %v3708
      %3815 = vst [vmem:[#allocation3 + $0xb0] sm:$0xff] %v3779
      %3816 = vst [vmem:[#allocation3 + $0xb8] sm:$0xff] %v3781
      %3817 = vst [vmem:[#allocation3 + $0xc0] sm:$0xff] %v3712
      %3818 = vst [vmem:[#allocation3 + $0xc8] sm:$0xff] %v3714
      %3819 = vst [vmem:[#allocation3 + $0xd0] sm:$0xff] %v3785
      %3820 = vst [vmem:[#allocation3 + $0xd8] sm:$0xff] %v3787
      %3821 = vst [vmem:[#allocation3 + $0xe0] sm:$0xff] %v3716
      %3822 = vst [vmem:[#allocation3 + $0xe8] sm:$0xff] %v3718
      %3823 = vst [vmem:[#allocation3 + $0xf0] sm:$0xff] %v3789
      %3824 = vst [vmem:[#allocation3 + $0xf8] sm:$0xff] %v3791
      %v3825 = vld [vmem:[#allocation3] sm:$0xff]
      %v3826 = vld [vmem:[#allocation3 + $0x8] sm:$0xff]
      %v3827 = vld [vmem:[#allocation3 + $0x10] sm:$0xff]
      %v3828 = vld [vmem:[#allocation3 + $0x18] sm:$0xff]
      %v3829 = vld [vmem:[#allocation3 + $0x20] sm:$0xff]
      %v3830 = vld [vmem:[#allocation3 + $0x28] sm:$0xff]
      %v3831 = vld [vmem:[#allocation3 + $0x30] sm:$0xff]
      %v3832 = vld [vmem:[#allocation3 + $0x38] sm:$0xff]
      %v3833 = vld [vmem:[#allocation3 + $0x40] sm:$0xff]
      %v3834 = vld [vmem:[#allocation3 + $0x48] sm:$0xff]
      %v3835 = vld [vmem:[#allocation3 + $0x50] sm:$0xff]
      %v3836 = vld [vmem:[#allocation3 + $0x58] sm:$0xff]
      %v3837 = vld [vmem:[#allocation3 + $0x60] sm:$0xff]
      %v3838 = vld [vmem:[#allocation3 + $0x68] sm:$0xff]
      %v3839 = vld [vmem:[#allocation3 + $0x70] sm:$0xff]
      %v3840 = vld [vmem:[#allocation3 + $0x78] sm:$0xff]
      %v3841 = vld [vmem:[#allocation3 + $0x80] sm:$0xff]
      %v3842 = vld [vmem:[#allocation3 + $0x88] sm:$0xff]
      %v3843 = vld [vmem:[#allocation3 + $0x90] sm:$0xff]
      %v3844 = vld [vmem:[#allocation3 + $0x98] sm:$0xff]
      %v3845 = vld [vmem:[#allocation3 + $0xa0] sm:$0xff]
      %v3846 = vld [vmem:[#allocation3 + $0xa8] sm:$0xff]
      %v3847 = vld [vmem:[#allocation3 + $0xb0] sm:$0xff]
      %v3848 = vld [vmem:[#allocation3 + $0xb8] sm:$0xff]
      %v3849 = vld [vmem:[#allocation3 + $0xc0] sm:$0xff]
      %v3850 = vld [vmem:[#allocation3 + $0xc8] sm:$0xff]
      %v3851 = vld [vmem:[#allocation3 + $0xd0] sm:$0xff]
      %v3852 = vld [vmem:[#allocation3 + $0xd8] sm:$0xff]
      %v3853 = vld [vmem:[#allocation3 + $0xe0] sm:$0xff]
      %v3854 = vld [vmem:[#allocation3 + $0xe8] sm:$0xff]
      %v3855 = vld [vmem:[#allocation3 + $0xf0] sm:$0xff]
      %v3856 = vld [vmem:[#allocation3 + $0xf8] sm:$0xff]
      %v3857 = vadd.f32 %v3825, %v3826
      %v3858 = vadd.f32 %v3857, %v3827
      %v3859 = vadd.f32 %v3858, %v3828
      %3860 = vadd.xlane.f32.xlu0 %v3859
      %v3861 = vpop.xlane.xlu0 %3860
      %v3862 = vadd.f32 %v3829, %v3830
      %v3863 = vadd.f32 %v3862, %v3831
      %v3864 = vadd.f32 %v3863, %v3832
      %3865 = vadd.xlane.f32.xlu0 %v3864
      %v3866 = vpop.xlane.xlu0 %3865
      %v3867 = vadd.f32 %v3833, %v3834
      %v3868 = vadd.f32 %v3867, %v3835
      %v3869 = vadd.f32 %v3868, %v3836
      %3870 = vadd.xlane.f32.xlu0 %v3869
      %v3871 = vpop.xlane.xlu0 %3870
      %v3872 = vadd.f32 %v3837, %v3838
      %v3873 = vadd.f32 %v3872, %v3839
      %v3874 = vadd.f32 %v3873, %v3840
      %3875 = vadd.xlane.f32.xlu0 %v3874
      %v3876 = vpop.xlane.xlu0 %3875
      %v3877 = vadd.f32 %v3841, %v3842
      %v3878 = vadd.f32 %v3877, %v3843
      %v3879 = vadd.f32 %v3878, %v3844
      %3880 = vadd.xlane.f32.xlu0 %v3879
      %v3881 = vpop.xlane.xlu0 %3880
      %v3882 = vadd.f32 %v3845, %v3846
      %v3883 = vadd.f32 %v3882, %v3847
      %v3884 = vadd.f32 %v3883, %v3848
      %3885 = vadd.xlane.f32.xlu0 %v3884
      %v3886 = vpop.xlane.xlu0 %3885
      %v3887 = vadd.f32 %v3849, %v3850
      %v3888 = vadd.f32 %v3887, %v3851
      %v3889 = vadd.f32 %v3888, %v3852
      %3890 = vadd.xlane.f32.xlu0 %v3889
      %v3891 = vpop.xlane.xlu0 %3890
      %v3892 = vadd.f32 %v3853, %v3854
      %v3893 = vadd.f32 %v3892, %v3855
      %v3894 = vadd.f32 %v3893, %v3856
      %3895 = vadd.xlane.f32.xlu0 %v3894
      %v3896 = vpop.xlane.xlu0 %3895
      %v3897 = vadd.f32 %v3861, %v3866
      %v3898 = vadd.f32 %v3897, %v3871
      %v3899 = vadd.f32 %v3898, %v3876
      %v3900 = vadd.f32 %v3899, %v3881
      %v3901 = vadd.f32 %v3900, %v3886
      %v3902 = vadd.f32 %v3901, %v3891
      %v3903 = vadd.f32 %v3902, %v3896
      %v3904 = vmul.f32 %v3903, 0.00024414063
      %v3905 = vsub.f32 %v3825, %v3904
      %v3906 = vsub.f32 %v3826, %v3904
      %v3907 = vsub.f32 %v3827, %v3904
      %v3908 = vsub.f32 %v3828, %v3904
      %v3909 = vsub.f32 %v3829, %v3904
      %v3910 = vsub.f32 %v3830, %v3904
      %v3911 = vsub.f32 %v3831, %v3904
      %v3912 = vsub.f32 %v3832, %v3904
      %v3913 = vsub.f32 %v3833, %v3904
      %v3914 = vsub.f32 %v3834, %v3904
      %v3915 = vsub.f32 %v3835, %v3904
      %v3916 = vsub.f32 %v3836, %v3904
      %v3917 = vsub.f32 %v3837, %v3904
      %v3918 = vsub.f32 %v3838, %v3904
      %v3919 = vsub.f32 %v3839, %v3904
      %v3920 = vsub.f32 %v3840, %v3904
      %v3921 = vsub.f32 %v3841, %v3904
      %v3922 = vsub.f32 %v3842, %v3904
      %v3923 = vsub.f32 %v3843, %v3904
      %v3924 = vsub.f32 %v3844, %v3904
      %v3925 = vsub.f32 %v3845, %v3904
      %v3926 = vsub.f32 %v3846, %v3904
      %v3927 = vsub.f32 %v3847, %v3904
      %v3928 = vsub.f32 %v3848, %v3904
      %v3929 = vsub.f32 %v3849, %v3904
      %v3930 = vsub.f32 %v3850, %v3904
      %v3931 = vsub.f32 %v3851, %v3904
      %v3932 = vsub.f32 %v3852, %v3904
      %v3933 = vsub.f32 %v3853, %v3904
      %v3934 = vsub.f32 %v3854, %v3904
      %v3935 = vsub.f32 %v3855, %v3904
      %v3936 = vsub.f32 %v3856, %v3904
      %v3937 = vmul.f32 %v3905, %v3905
      %v3938 = vmul.f32 %v3906, %v3906
      %v3939 = vmul.f32 %v3907, %v3907
      %v3940 = vmul.f32 %v3908, %v3908
      %v3941 = vmul.f32 %v3909, %v3909
      %v3942 = vmul.f32 %v3910, %v3910
      %v3943 = vmul.f32 %v3911, %v3911
      %v3944 = vmul.f32 %v3912, %v3912
      %v3945 = vmul.f32 %v3913, %v3913
      %v3946 = vmul.f32 %v3914, %v3914
      %v3947 = vmul.f32 %v3915, %v3915
      %v3948 = vmul.f32 %v3916, %v3916
      %v3949 = vmul.f32 %v3917, %v3917
      %v3950 = vmul.f32 %v3918, %v3918
      %v3951 = vmul.f32 %v3919, %v3919
      %v3952 = vmul.f32 %v3920, %v3920
      %v3953 = vmul.f32 %v3921, %v3921
      %v3954 = vmul.f32 %v3922, %v3922
      %v3955 = vmul.f32 %v3923, %v3923
      %v3956 = vmul.f32 %v3924, %v3924
      %v3957 = vmul.f32 %v3925, %v3925
      %v3958 = vmul.f32 %v3926, %v3926
      %v3959 = vmul.f32 %v3927, %v3927
      %v3960 = vmul.f32 %v3928, %v3928
      %v3961 = vmul.f32 %v3929, %v3929
      %v3962 = vmul.f32 %v3930, %v3930
      %v3963 = vmul.f32 %v3931, %v3931
      %v3964 = vmul.f32 %v3932, %v3932
      %v3965 = vmul.f32 %v3933, %v3933
      %v3966 = vmul.f32 %v3934, %v3934
      %v3967 = vmul.f32 %v3935, %v3935
      %v3968 = vmul.f32 %v3936, %v3936
      %v3969 = vadd.f32 %v3937, %v3938
      %v3970 = vadd.f32 %v3969, %v3939
      %v3971 = vadd.f32 %v3970, %v3940
      %3972 = vadd.xlane.f32.xlu0 %v3971
      %v3973 = vpop.xlane.xlu0 %3972
      %v3974 = vadd.f32 %v3941, %v3942
      %v3975 = vadd.f32 %v3974, %v3943
      %v3976 = vadd.f32 %v3975, %v3944
      %3977 = vadd.xlane.f32.xlu0 %v3976
      %v3978 = vpop.xlane.xlu0 %3977
      %v3979 = vadd.f32 %v3945, %v3946
      %v3980 = vadd.f32 %v3979, %v3947
      %v3981 = vadd.f32 %v3980, %v3948
      %3982 = vadd.xlane.f32.xlu0 %v3981
      %v3983 = vpop.xlane.xlu0 %3982
      %v3984 = vadd.f32 %v3949, %v3950
      %v3985 = vadd.f32 %v3984, %v3951
      %v3986 = vadd.f32 %v3985, %v3952
      %3987 = vadd.xlane.f32.xlu0 %v3986
      %v3988 = vpop.xlane.xlu0 %3987
      %v3989 = vadd.f32 %v3953, %v3954
      %v3990 = vadd.f32 %v3989, %v3955
      %v3991 = vadd.f32 %v3990, %v3956
      %3992 = vadd.xlane.f32.xlu0 %v3991
      %v3993 = vpop.xlane.xlu0 %3992
      %v3994 = vadd.f32 %v3957, %v3958
      %v3995 = vadd.f32 %v3994, %v3959
      %v3996 = vadd.f32 %v3995, %v3960
      %3997 = vadd.xlane.f32.xlu0 %v3996
      %v3998 = vpop.xlane.xlu0 %3997
      %v3999 = vadd.f32 %v3961, %v3962
      %v4000 = vadd.f32 %v3999, %v3963
      %v4001 = vadd.f32 %v4000, %v3964
      %4002 = vadd.xlane.f32.xlu0 %v4001
      %v4003 = vpop.xlane.xlu0 %4002
      %v4004 = vadd.f32 %v3965, %v3966
      %v4005 = vadd.f32 %v4004, %v3967
      %v4006 = vadd.f32 %v4005, %v3968
      %4007 = vadd.xlane.f32.xlu0 %v4006
      %v4008 = vpop.xlane.xlu0 %4007
      %v4009 = vadd.f32 %v3973, %v3978
      %v4010 = vadd.f32 %v4009, %v3983
      %v4011 = vadd.f32 %v4010, %v3988
      %v4012 = vadd.f32 %v4011, %v3993
      %v4013 = vadd.f32 %v4012, %v3998
      %v4014 = vadd.f32 %v4013, %v4003
      %v4015 = vadd.f32 %v4014, %v4008
      %v4016 = vmul.f32 %v4015, 0.00024414063
      %v4017 = vadd.f32 %v4016, 1e-05
      %v4018 = vrsqrt.pop %v4017
      %v4019 = vmul.f32 %v3905, %v4018
      %v4020 = vmul.f32 %v3906, %v4018
      %v4021 = vmul.f32 %v3907, %v4018
      %v4022 = vmul.f32 %v3908, %v4018
      %v4023 = vmul.f32 %v3909, %v4018
      %v4024 = vmul.f32 %v3910, %v4018
      %v4025 = vmul.f32 %v3911, %v4018
      %v4026 = vmul.f32 %v3912, %v4018
      %v4027 = vmul.f32 %v3913, %v4018
      %v4028 = vmul.f32 %v3914, %v4018
      %v4029 = vmul.f32 %v3915, %v4018
      %v4030 = vmul.f32 %v3916, %v4018
      %v4031 = vmul.f32 %v3917, %v4018
      %v4032 = vmul.f32 %v3918, %v4018
      %v4033 = vmul.f32 %v3919, %v4018
      %v4034 = vmul.f32 %v3920, %v4018
      %v4035 = vmul.f32 %v3921, %v4018
      %v4036 = vmul.f32 %v3922, %v4018
      %v4037 = vmul.f32 %v3923, %v4018
      %v4038 = vmul.f32 %v3924, %v4018
      %v4039 = vmul.f32 %v3925, %v4018
      %v4040 = vmul.f32 %v3926, %v4018
      %v4041 = vmul.f32 %v3927, %v4018
      %v4042 = vmul.f32 %v3928, %v4018
      %v4043 = vmul.f32 %v3929, %v4018
      %v4044 = vmul.f32 %v3930, %v4018
      %v4045 = vmul.f32 %v3931, %v4018
      %v4046 = vmul.f32 %v3932, %v4018
      %v4047 = vmul.f32 %v3933, %v4018
      %v4048 = vmul.f32 %v3934, %v4018
      %v4049 = vmul.f32 %v3935, %v4018
      %v4050 = vmul.f32 %v3936, %v4018
      %v4051 = vpack.c.bf16 %v4019, %v4019
      %v4052 = vpack.c.bf16 %v4020, %v4020
      %v4053 = vpack.c.bf16 %v4021, %v4021
      %v4054 = vpack.c.bf16 %v4022, %v4022
      %v4055 = vpack.c.bf16 %v4023, %v4023
      %v4056 = vpack.c.bf16 %v4024, %v4024
      %v4057 = vpack.c.bf16 %v4025, %v4025
      %v4058 = vpack.c.bf16 %v4026, %v4026
      %v4059 = vpack.c.bf16 %v4027, %v4027
      %v4060 = vpack.c.bf16 %v4028, %v4028
      %v4061 = vpack.c.bf16 %v4029, %v4029
      %v4062 = vpack.c.bf16 %v4030, %v4030
      %v4063 = vpack.c.bf16 %v4031, %v4031
      %v4064 = vpack.c.bf16 %v4032, %v4032
      %v4065 = vpack.c.bf16 %v4033, %v4033
      %v4066 = vpack.c.bf16 %v4034, %v4034
      %v4067 = vpack.c.bf16 %v4035, %v4035
      %v4068 = vpack.c.bf16 %v4036, %v4036
      %v4069 = vpack.c.bf16 %v4037, %v4037
      %v4070 = vpack.c.bf16 %v4038, %v4038
      %v4071 = vpack.c.bf16 %v4039, %v4039
      %v4072 = vpack.c.bf16 %v4040, %v4040
      %v4073 = vpack.c.bf16 %v4041, %v4041
      %v4074 = vpack.c.bf16 %v4042, %v4042
      %v4075 = vpack.c.bf16 %v4043, %v4043
      %v4076 = vpack.c.bf16 %v4044, %v4044
      %v4077 = vpack.c.bf16 %v4045, %v4045
      %v4078 = vpack.c.bf16 %v4046, %v4046
      %v4079 = vpack.c.bf16 %v4047, %v4047
      %v4080 = vpack.c.bf16 %v4048, %v4048
      %v4081 = vpack.c.bf16 %v4049, %v4049
      %v4082 = vpack.c.bf16 %v4050, %v4050
      %v4115 = vunpack.c.l.b16 %v4051
      %v4116 = vunpack.c.l.b16 %v4052
      %v4117 = vunpack.c.l.b16 %v4053
      %v4118 = vunpack.c.l.b16 %v4054
      %v4119 = vunpack.c.l.b16 %v4055
      %v4120 = vunpack.c.l.b16 %v4056
      %v4121 = vunpack.c.l.b16 %v4057
      %v4122 = vunpack.c.l.b16 %v4058
      %v4123 = vunpack.c.l.b16 %v4059
      %v4124 = vunpack.c.l.b16 %v4060
      %v4125 = vunpack.c.l.b16 %v4061
      %v4126 = vunpack.c.l.b16 %v4062
      %v4127 = vunpack.c.l.b16 %v4063
      %v4128 = vunpack.c.l.b16 %v4064
      %v4129 = vunpack.c.l.b16 %v4065
      %v4130 = vunpack.c.l.b16 %v4066
      %v4131 = vunpack.c.l.b16 %v4067
      %v4132 = vunpack.c.l.b16 %v4068
      %v4133 = vunpack.c.l.b16 %v4069
      %v4134 = vunpack.c.l.b16 %v4070
      %v4135 = vunpack.c.l.b16 %v4071
      %v4136 = vunpack.c.l.b16 %v4072
      %v4137 = vunpack.c.l.b16 %v4073
      %v4138 = vunpack.c.l.b16 %v4074
      %v4139 = vunpack.c.l.b16 %v4075
      %v4140 = vunpack.c.l.b16 %v4076
      %v4141 = vunpack.c.l.b16 %v4077
      %v4142 = vunpack.c.l.b16 %v4078
      %v4143 = vunpack.c.l.b16 %v4079
      %v4144 = vunpack.c.l.b16 %v4080
      %v4145 = vunpack.c.l.b16 %v4081
      %v4146 = vunpack.c.l.b16 %v4082
      %v4147 = vpack.c.b16 %v4116, %v4115
      %v4148 = vpack.c.b16 %v4118, %v4117
      %v4149 = vpack.c.b16 %v4120, %v4119
      %v4150 = vpack.c.b16 %v4122, %v4121
      %v4151 = vpack.c.b16 %v4124, %v4123
      %v4152 = vpack.c.b16 %v4126, %v4125
      %v4153 = vpack.c.b16 %v4128, %v4127
      %v4154 = vpack.c.b16 %v4130, %v4129
      %v4155 = vpack.c.b16 %v4132, %v4131
      %v4156 = vpack.c.b16 %v4134, %v4133
      %v4157 = vpack.c.b16 %v4136, %v4135
      %v4158 = vpack.c.b16 %v4138, %v4137
      %v4159 = vpack.c.b16 %v4140, %v4139
      %v4160 = vpack.c.b16 %v4142, %v4141
      %v4161 = vpack.c.b16 %v4144, %v4143
      %v4162 = vpack.c.b16 %v4146, %v4145
      %4179 = vst [vmem:[%s259] sm:$0xff] %v4147
      %4180 = vst [vmem:[%s259 + $0x8] sm:$0xff] %v4148
      %4181 = vst [vmem:[%s259 + $0x10] sm:$0xff] %v4149
      %4182 = vst [vmem:[%s259 + $0x18] sm:$0xff] %v4150
      %4183 = vst [vmem:[%s259 + $0x20] sm:$0xff] %v4151
      %4184 = vst [vmem:[%s259 + $0x28] sm:$0xff] %v4152
      %4185 = vst [vmem:[%s259 + $0x30] sm:$0xff] %v4153
      %4186 = vst [vmem:[%s259 + $0x38] sm:$0xff] %v4154
      %4187 = vst [vmem:[%s259 + $0x40] sm:$0xff] %v4155
      %4188 = vst [vmem:[%s259 + $0x48] sm:$0xff] %v4156
      %4189 = vst [vmem:[%s259 + $0x50] sm:$0xff] %v4157
      %4190 = vst [vmem:[%s259 + $0x58] sm:$0xff] %v4158
      %4191 = vst [vmem:[%s259 + $0x60] sm:$0xff] %v4159
      %4192 = vst [vmem:[%s259 + $0x68] sm:$0xff] %v4160
      %4193 = vst [vmem:[%s259 + $0x70] sm:$0xff] %v4161
      %4194 = vst [vmem:[%s259 + $0x78] sm:$0xff] %v4162
      %p4195 = scmp.lt.s32.totalorder %s19, 1
      %s4196 = scalar_select %p4195, %s19, 1
      %p4197 = scmp.lt.s32.totalorder %s20, 0
      %s4198 = scalar_select %p4197, %s20, 0
      %s4199 = smul.addr %s4198, 32
      %s4200 = smul.addr %s4196, 32
      %s4201 = sadd.s32 %s4199, %s4200
      %s4202 = smul.addr %s4201, 4
      %s4203 = scalar_lea.vmem %s4, %s4202
      // Predicated region
      $region37: #{_upconv3d_forward.1} parent=35 // pred_check
        %p4204 = pneg %p146
      $region38: #{_upconv3d_forward.1} parent=35 // pred_check_branch
        %4206 = sbr.rel (%p4204) target = $region40
      $region39: #{_upconv3d_forward.1} parent=35 // pred_region
        _
      $region40: #{_upconv3d_forward.1} parent=35 // pred_fallthru
        _
    $region36: #{_upconv3d_forward.1} parent=5 // pred_fallthru
      _
    %p4207 = scmp.le.s32.totalorder 2, %s10
    // Predicated region
    $region41: #{_upconv3d_forward.1} parent=5 // pred_check
      %p4208 = pneg %p4207
    $region42: #{_upconv3d_forward.1} parent=5 // pred_check_branch
      %4210 = sbr.rel (%p4208) target = $region44
    $region43: #{_upconv3d_forward.1} parent=5 // pred_region
      %s4211 = ssub.s32 %s10, 2
      // Predicated region
      $region45: #{_upconv3d_forward.1} parent=43 // pred_check
        %p4212 = pneg %p152
      $region46: #{_upconv3d_forward.1} parent=43 // pred_check_branch
        %4214 = sbr.rel (%p4212) target = $region48
      $region47: #{_upconv3d_forward.1} parent=43 // pred_region
        %p4215 = scmp.lt.s32.totalorder %s21, 1
        %s4216 = scalar_select %p4215, %s21, 1
        %p4217 = scmp.lt.s32.totalorder %s22, 0
        %s4218 = scalar_select %p4217, %s22, 0
        %s4219 = smul.addr %s4218, 32
        %s4220 = smul.addr %s4216, 32
        %s4221 = sadd.s32 %s4219, %s4220
        %s4222 = smul.addr %s4221, 4
        %s4223 = scalar_lea.vmem %s4, %s4222
      $region48: #{_upconv3d_forward.1} parent=43 // pred_fallthru
        _
    $region44: #{_upconv3d_forward.1} parent=5 // pred_fallthru
      _
  $region6: #{_upconv3d_forward.1} parent=0 // loop_footer
    %s14 = sadd.s32 1, %s10
  $region7: #{_upconv3d_forward.1} parent=0 // loop_footer_branch
    %9 = sbr.rel target = $region3
  $region8: #{_upconv3d_forward.1} parent=0 // loop_exit
    _

</llo_original>
